<compile_context>
chip_gen: v5e
topology: v5e:2x2
jax: 0.10.0
libtpu: 0.0.40
codegen_flags: <defaults>
</compile_context>

<pallas_src>
import jax
import jax.numpy as jnp
from jax import lax
from jax.experimental import pallas as pl
from jax.experimental.pallas import tpu as pltpu


_RF = 16  # receptive field / total stride of the four stride-2 layers


def _round_up(n, m):
    return ((n + m - 1) // m) * m


# ------------------------------- Pallas kernel --------------------------------
def _grad_encoder_kernel(x_ref, w_ref, b_ref, o_ref):
    """One fused matmul for a tile of tokens (= batch x final output positions).

    x_ref: (tile, 16*192) bf16    w_ref: (16*192, 128) bf16 (cols 24: are zero)
    b_ref: (1, 128) f32           o_ref: (tile, 128) f32
    """
    acc = jnp.dot(x_ref[...], w_ref[...], preferred_element_type=jnp.float32)
    o_ref[...] = (acc + b_ref[...]).astype(o_ref.dtype)


# ------------------------- trace-time weight composition -----------------------
def _pack_weight(w):
    # (C_out, C_in, 2) -> (2*C_in, C_out); rows = [tap-0 channels, tap-1 channels],
    # matching the position-major / channel-minor token-row layout.
    c_out, c_in, k = w.shape
    assert k == 2
    return jnp.transpose(w, (2, 1, 0)).reshape(k * c_in, c_out)


def _compose_params(params):
    """Fold the four stride-2 convs into one (16*192, 24) matrix + (24,) bias."""
    wa, ba = params["conva"]
    wb, bb = params["convb"]
    wc, bc = params["convc"]
    wd, bd = params["convd"]
    ma, mb, mc, md = (_pack_weight(w) for w in (wa, wb, wc, wd))

    # Block-diagonal lift of each layer over its output positions inside one
    # final-output token (layout is position-major, channel-minor throughout).
    A = jnp.kron(jnp.eye(8, dtype=ma.dtype), ma)   # (16*192, 8*144)
    B = jnp.kron(jnp.eye(4, dtype=mb.dtype), mb)   # (8*144, 4*96)
    C = jnp.kron(jnp.eye(2, dtype=mc.dtype), mc)   # (4*96, 2*48)
    D = md                                         # (2*48, 24)

    w_total = A @ B @ C @ D                        # (3072, 24), f32
    v = jnp.tile(ba, 8)
    v = v @ B + jnp.tile(bb, 4)
    v = v @ C + jnp.tile(bc, 2)
    b_total = v @ D + bd                           # (24,), f32
    return w_total, b_total


# ---------------------------------- forward -----------------------------------
def grad_encoder_forward(params, x, *, token_tile=1024):
    """Forward pass of Grad_Encoder.  x: (N, 192, L) -> (N, 24, L_out)."""
    n, c_in, length = x.shape

    # PyTorch Conv1d output lengths (conva has padding=1, the rest padding=0).
    l_a = (length + 2 - 2) // 2 + 1
    l_b = (l_a - 2) // 2 + 1
    l_c = (l_b - 2) // 2 + 1
    l_d = (l_c - 2) // 2 + 1
    assert l_d >= 1, "input too short for four stride-2 convs"
    assert _RF * l_d <= length + 2

    # Composed weight / bias, output channels padded to 128 for full-lane stores.
    w_total, b_total = _compose_params(params)
    cd = w_total.shape[1]                           # 24
    cd_pad = _round_up(cd, 128)                     # 128
    w_pad = jnp.pad(w_total, ((0, 0), (0, cd_pad - cd))).astype(jnp.bfloat16)
    b_pad = jnp.pad(b_total, (0, cd_pad - cd)).reshape(1, cd_pad).astype(jnp.float32)

    # Single fused XLA layout pass: pad for conva, channels-minor, keep exactly
    # the receptive field of surviving outputs, one row per final output
    # position, downcast to bf16 (halves the bytes the kernel reads).
    xp = jnp.pad(x, ((0, 0), (0, 0), (1, 1)))                   # conva padding=1
    xt = jnp.transpose(xp, (0, 2, 1))[:, :_RF * l_d, :]         # (N, 16*l_d, 192)
    x_rows = xt.reshape(n * l_d, _RF * c_in).astype(jnp.bfloat16)

    tokens = n * l_d
    row_align = 16                                  # bf16 packs 16 sublanes/vreg
    tokens_aligned = _round_up(tokens, row_align)
    tile = min(_round_up(token_tile, row_align), tokens_aligned)
    if tokens_aligned <= tile and tokens_aligned >= 2 * row_align:
        # Keep >=2 grid steps so the "parallel" axis can shard across the two
        # v7x TensorCores (negligible extra per-step overhead on v5e/v6e).
        tile = _round_up(pl.cdiv(tokens_aligned, 2), row_align)
    tokens_pad = _round_up(tokens, tile)
    if tokens_pad != tokens:
        x_rows = jnp.pad(x_rows, ((0, tokens_pad - tokens), (0, 0)))

    def full(arr):  # small parameter array, resident across grid steps
        return pl.BlockSpec(arr.shape, lambda i: (0, 0))

    out2d = pl.pallas_call(
        _grad_encoder_kernel,
        out_shape=jax.ShapeDtypeStruct((tokens_pad, cd_pad), jnp.float32),
        grid=(tokens_pad // tile,),
        in_specs=[
            pl.BlockSpec((tile, _RF * c_in), lambda i: (i, 0)),
            full(w_pad),
            full(b_pad),
        ],
        out_specs=pl.BlockSpec((tile, cd_pad), lambda i: (i, 0)),
        compiler_params=pltpu.CompilerParams(
            dimension_semantics=("parallel",),
            vmem_limit_bytes=40 * 1024 * 1024),
    )(x_rows, w_pad, b_pad)

    y = out2d[:tokens, :cd].reshape(n, l_d, cd)
    return jnp.transpose(y, (0, 2, 1)).astype(x.dtype)             # (N, 24, l_d)


# --------------------------------- parameters ----------------------------------
def init_params(key):
    """Deterministic synthetic params matching Grad_Encoder.__init__ shapes."""
    def conv_init(k, c_out, c_in, ksz):
        kw, kb = jax.random.split(k)
        bound = 1.0 / jnp.sqrt(c_in * ksz)       # PyTorch default uniform bound
        w = jax.random.uniform(kw, (c_out, c_in, ksz), jnp.float32, -bound, bound)
        b = jax.random.uniform(kb, (c_out,), jnp.float32, -bound, bound)
        return w, b

    ka, kb_, kc, kd = jax.random.split(key, 4)
    return {
        "conva": conv_init(ka, 144, 192, 2),
        "convb": conv_init(kb_, 96, 144, 2),
        "convc": conv_init(kc, 48, 96, 2),
        "convd": conv_init(kd, 24, 48, 2),
    }


# ----------------------------- pure-JAX reference -----------------------------
def _conv1d_ref(x, w, b, *, stride=2, pad=0):
    y = lax.conv_general_dilated(
        x, w, window_strides=(stride,), padding=[(pad, pad)],
        dimension_numbers=("NCH", "OIH", "NCH"))
    return y + b[None, :, None]


def grad_encoder_ref(params, x):
    wa, ba = params["conva"]
    wb, bb = params["convb"]
    wc, bc = params["convc"]
    wd, bd = params["convd"]
    x = _conv1d_ref(x, wa, ba, pad=1)
    x = _conv1d_ref(x, wb, bb, pad=0)
    x = _conv1d_ref(x, wc, bc, pad=0)
    x = _conv1d_ref(x, wd, bd, pad=0)
    return x


if __name__ == "__main__":
    key = jax.random.PRNGKey(0)
    k_params, k_x = jax.random.split(key)
    params = init_params(k_params)

    # input: (batch=2, channels=192, length=30) -> output (2, 24, 2)
    x = jax.random.normal(k_x, (2, 192, 30), jnp.float32)

    fwd = jax.jit(grad_encoder_forward)
    out = jax.block_until_ready(fwd(params, x))
    ref = jax.block_until_ready(grad_encoder_ref(params, x))

    assert out.shape == (2, 24, 2), out.shape
    max_err = jnp.max(jnp.abs(out - ref))
    # Tolerance loosened for the bf16 MXU path (f32 accumulation).
    assert jnp.allclose(out, ref, atol=2e-2, rtol=2e-2), \
        f"mismatch: max abs err {max_err}"

    print("KERNEL_OK")
</pallas_src>

<mosaic_0001>
module attributes {stable_mosaic.version = 11 : i64} {
  func.func @_grad_encoder_kernel(%arg0: i32, %arg1: memref<16x3072xbf16, #tpu.memory_space<vmem>>, %arg2: memref<3072x128xbf16, #tpu.memory_space<vmem>>, %arg3: memref<1x128xf32, #tpu.memory_space<vmem>>, %arg4: memref<16x128xf32, #tpu.memory_space<vmem>>) attributes {dimension_semantics = [#tpu.dimension_semantics<parallel>], iteration_bounds = array<i64: 1>, scalar_prefetch = 0 : i64, scratch_operands = 0 : i64, tpu.core_type = #tpu.core_type<tc>, window_params = [{transform_indices = @transform_0, window_bounds = array<i64: 16, 3072>}, {pipeline_mode = #tpu.pipeline_mode<synchronous>, transform_indices = @transform_1, window_bounds = array<i64: 3072, 128>}, {pipeline_mode = #tpu.pipeline_mode<synchronous>, transform_indices = @transform_2, window_bounds = array<i64: 1, 128>}, {transform_indices = @transform_3, window_bounds = array<i64: 16, 128>}]} {
    %c0 = arith.constant 0 : index
    %c0_0 = arith.constant 0 : index
    %0 = vector.load %arg1[%c0, %c0_0] : memref<16x3072xbf16, #tpu.memory_space<vmem>>, vector<16x3072xbf16>
    %c0_1 = arith.constant 0 : index
    %c0_2 = arith.constant 0 : index
    %1 = vector.load %arg2[%c0_1, %c0_2] : memref<3072x128xbf16, #tpu.memory_space<vmem>>, vector<3072x128xbf16>
    %cst = arith.constant dense<0.000000e+00> : vector<16x128xf32>
    %2 = tpu.matmul %0, %1, %cst {dimension_numbers = #tpu.dot_dimension_numbers<[1], [0], [0], [1], [0, 0, 1, 1], [], []>} : vector<16x3072xbf16>, vector<3072x128xbf16>, vector<16x128xf32> -> vector<16x128xf32>
    %c0_3 = arith.constant 0 : index
    %c0_4 = arith.constant 0 : index
    %3 = vector.load %arg3[%c0_3, %c0_4] : memref<1x128xf32, #tpu.memory_space<vmem>>, vector<1x128xf32>
    %4 = vector.broadcast %3 : vector<1x128xf32> to vector<16x128xf32>
    %5 = arith.addf %2, %4 : vector<16x128xf32>
    %c0_5 = arith.constant 0 : index
    %c0_6 = arith.constant 0 : index
    %6 = vector.load %arg4[%c0_5, %c0_6] : memref<16x128xf32, #tpu.memory_space<vmem>>, vector<16x128xf32>
    tpu.vector_store %arg4[%c0_5, %c0_6], %5 {strides = array<i32>} : memref<16x128xf32, #tpu.memory_space<vmem>>, vector<16x128xf32>,
    return
  }
  func.func @transform_0(%arg0: i32) -> (i32, i32) {
    %c0_i32 = arith.constant 0 : i32
    %c0_i32_0 = arith.constant 0 : i32
    return %arg0, %c0_i32 : i32, i32
  }
  func.func @transform_1(%arg0: i32) -> (i32, i32) {
    %c0_i32 = arith.constant 0 : i32
    %c0_i32_0 = arith.constant 0 : i32
    %c0_i32_1 = arith.constant 0 : i32
    return %c0_i32, %c0_i32_0 : i32, i32
  }
  func.func @transform_2(%arg0: i32) -> (i32, i32) {
    %c0_i32 = arith.constant 0 : i32
    %c0_i32_0 = arith.constant 0 : i32
    %c0_i32_1 = arith.constant 0 : i32
    return %c0_i32, %c0_i32_0 : i32, i32
  }
  func.func @transform_3(%arg0: i32) -> (i32, i32) {
    %c0_i32 = arith.constant 0 : i32
    %c0_i32_0 = arith.constant 0 : i32
    return %arg0, %c0_i32 : i32, i32
  }
}

</mosaic_0001>

<llo_original>
// kernel: mul.4
$region0: #{mul.4}
  %s0 = inlined_call_operand.hbm [shape: f32[2,192,144], index: 0, kind: input, shape index: {}]
  %s1 = inlined_call_operand.vmem [shape: f32[384,144], index: 1, kind: output, shape index: {}]
  $region1: #{mul.4} parent=0
    #allocation0 [shape = 'u8[294912]{0}', space=vmem, size = 0x48000, scoped, tag = 'operand span for operand 0']
    #allocation1 [shape = 's32[1]{0}', space=sflag, size = 0x4, scoped, tag = 'scoped memory for mul.4']
    #allocation2 [shape = 'u8[1179648]{0}', space=vmem, size = 0x120000, scoped, tag = 'scoped mem for input reshape']
    %2 = vsyncpa [#allocation1], 0
    %4 = vsyncadd [#allocation1], 0
    %s6 = sshll.u32 %s0, 4
    %s7 = int_to_ptr.hbm [resolvable:$true] %s6
    %s8 = sshll.u32 [#allocation0], 4
    %s9 = int_to_ptr.vmem [resolvable:$true] %s8
    %11 = dma.hbm_to_vmem [thread:$0]  %s7, 9216, %s9, [#allocation1]
    %13 = dma.done [#allocation1], 9216
    %s15 = ssub.s32 4, 1
    %s16 = scalar_lea.vmem [#allocation0], 574
    %v17 = vld [vmem:[%s16] sm:%s15]
    %s18 = scalar_lea.vmem [#allocation2], 2296
    %19 = vst [vmem:[%s18] sm:%s15] %v17
    %s20 = scalar_lea.vmem [#allocation0], 572
    %v21 = vld [vmem:[%s20] sm:%s15]
    %s22 = scalar_lea.vmem [#allocation2], 2288
    %23 = vst [vmem:[%s22] sm:%s15] %v21
    %s24 = scalar_lea.vmem [#allocation0], 570
    %v25 = vld [vmem:[%s24] sm:%s15]
    %s26 = scalar_lea.vmem [#allocation2], 2280
    %27 = vst [vmem:[%s26] sm:%s15] %v25
    %s28 = scalar_lea.vmem [#allocation0], 568
    %v29 = vld [vmem:[%s28] sm:%s15]
    %s30 = scalar_lea.vmem [#allocation2], 2272
    %31 = vst [vmem:[%s30] sm:%s15] %v29
    %s32 = scalar_lea.vmem [#allocation0], 566
    %v33 = vld [vmem:[%s32] sm:%s15]
    %s34 = scalar_lea.vmem [#allocation2], 2264
    %35 = vst [vmem:[%s34] sm:%s15] %v33
    %s36 = scalar_lea.vmem [#allocation0], 564
    %v37 = vld [vmem:[%s36] sm:%s15]
    %s38 = scalar_lea.vmem [#allocation2], 2256
    %39 = vst [vmem:[%s38] sm:%s15] %v37
    %s40 = scalar_lea.vmem [#allocation0], 562
    %v41 = vld [vmem:[%s40] sm:%s15]
    %s42 = scalar_lea.vmem [#allocation2], 2248
    %43 = vst [vmem:[%s42] sm:%s15] %v41
    %s44 = scalar_lea.vmem [#allocation0], 560
    %v45 = vld [vmem:[%s44] sm:%s15]
    %s46 = scalar_lea.vmem [#allocation2], 2240
    %47 = vst [vmem:[%s46] sm:%s15] %v45
    %s48 = scalar_lea.vmem [#allocation0], 558
    %v49 = vld [vmem:[%s48] sm:%s15]
    %s50 = scalar_lea.vmem [#allocation2], 2232
    %51 = vst [vmem:[%s50] sm:%s15] %v49
    %s52 = scalar_lea.vmem [#allocation0], 556
    %v53 = vld [vmem:[%s52] sm:%s15]
    %s54 = scalar_lea.vmem [#allocation2], 2224
    %55 = vst [vmem:[%s54] sm:%s15] %v53
    %s56 = scalar_lea.vmem [#allocation0], 554
    %v57 = vld [vmem:[%s56] sm:%s15]
    %s58 = scalar_lea.vmem [#allocation2], 2216
    %59 = vst [vmem:[%s58] sm:%s15] %v57
    %s60 = scalar_lea.vmem [#allocation0], 552
    %v61 = vld [vmem:[%s60] sm:%s15]
    %s62 = scalar_lea.vmem [#allocation2], 2208
    %63 = vst [vmem:[%s62] sm:%s15] %v61
    %s64 = scalar_lea.vmem [#allocation0], 550
    %v65 = vld [vmem:[%s64] sm:%s15]
    %s66 = scalar_lea.vmem [#allocation2], 2200
    %67 = vst [vmem:[%s66] sm:%s15] %v65
    %s68 = scalar_lea.vmem [#allocation0], 548
    %v69 = vld [vmem:[%s68] sm:%s15]
    %s70 = scalar_lea.vmem [#allocation2], 2192
    %71 = vst [vmem:[%s70] sm:%s15] %v69
    %s72 = scalar_lea.vmem [#allocation0], 546
    %v73 = vld [vmem:[%s72] sm:%s15]
    %s74 = scalar_lea.vmem [#allocation2], 2184
    %75 = vst [vmem:[%s74] sm:%s15] %v73
    %s76 = scalar_lea.vmem [#allocation0], 544
    %v77 = vld [vmem:[%s76] sm:%s15]
    %s78 = scalar_lea.vmem [#allocation2], 2176
    %79 = vst [vmem:[%s78] sm:%s15] %v77
    %s80 = scalar_lea.vmem [#allocation0], 542
    %v81 = vld [vmem:[%s80] sm:%s15]
    %s82 = scalar_lea.vmem [#allocation2], 2168
    %83 = vst [vmem:[%s82] sm:%s15] %v81
    %s84 = scalar_lea.vmem [#allocation0], 540
    %v85 = vld [vmem:[%s84] sm:%s15]
    %s86 = scalar_lea.vmem [#allocation2], 2160
    %87 = vst [vmem:[%s86] sm:%s15] %v85
    %s88 = scalar_lea.vmem [#allocation0], 538
    %v89 = vld [vmem:[%s88] sm:%s15]
    %s90 = scalar_lea.vmem [#allocation2], 2152
    %91 = vst [vmem:[%s90] sm:%s15] %v89
    %s92 = scalar_lea.vmem [#allocation0], 536
    %v93 = vld [vmem:[%s92] sm:%s15]
    %s94 = scalar_lea.vmem [#allocation2], 2144
    %95 = vst [vmem:[%s94] sm:%s15] %v93
    %s96 = scalar_lea.vmem [#allocation0], 534
    %v97 = vld [vmem:[%s96] sm:%s15]
    %s98 = scalar_lea.vmem [#allocation2], 2136
    %99 = vst [vmem:[%s98] sm:%s15] %v97
    %s100 = scalar_lea.vmem [#allocation0], 532
    %v101 = vld [vmem:[%s100] sm:%s15]
    %s102 = scalar_lea.vmem [#allocation2], 2128
    %103 = vst [vmem:[%s102] sm:%s15] %v101
    %s104 = scalar_lea.vmem [#allocation0], 530
    %v105 = vld [vmem:[%s104] sm:%s15]
    %s106 = scalar_lea.vmem [#allocation2], 2120
    %107 = vst [vmem:[%s106] sm:%s15] %v105
    %s108 = scalar_lea.vmem [#allocation0], 528
    %v109 = vld [vmem:[%s108] sm:%s15]
    %s110 = scalar_lea.vmem [#allocation2], 2112
    %111 = vst [vmem:[%s110] sm:%s15] %v109
    %s112 = scalar_lea.vmem [#allocation0], 526
    %v113 = vld [vmem:[%s112] sm:%s15]
    %s114 = scalar_lea.vmem [#allocation2], 2104
    %115 = vst [vmem:[%s114] sm:%s15] %v113
    %s116 = scalar_lea.vmem [#allocation0], 524
    %v117 = vld [vmem:[%s116] sm:%s15]
    %s118 = scalar_lea.vmem [#allocation2], 2096
    %119 = vst [vmem:[%s118] sm:%s15] %v117
    %s120 = scalar_lea.vmem [#allocation0], 522
    %v121 = vld [vmem:[%s120] sm:%s15]
    %s122 = scalar_lea.vmem [#allocation2], 2088
    %123 = vst [vmem:[%s122] sm:%s15] %v121
    %s124 = scalar_lea.vmem [#allocation0], 520
    %v125 = vld [vmem:[%s124] sm:%s15]
    %s126 = scalar_lea.vmem [#allocation2], 2080
    %127 = vst [vmem:[%s126] sm:%s15] %v125
    %s128 = scalar_lea.vmem [#allocation0], 518
    %v129 = vld [vmem:[%s128] sm:%s15]
    %s130 = scalar_lea.vmem [#allocation2], 2072
    %131 = vst [vmem:[%s130] sm:%s15] %v129
    %s132 = scalar_lea.vmem [#allocation0], 516
    %v133 = vld [vmem:[%s132] sm:%s15]
    %s134 = scalar_lea.vmem [#allocation2], 2064
    %135 = vst [vmem:[%s134] sm:%s15] %v133
    %s136 = scalar_lea.vmem [#allocation0], 514
    %v137 = vld [vmem:[%s136] sm:%s15]
    %s138 = scalar_lea.vmem [#allocation2], 2056
    %139 = vst [vmem:[%s138] sm:%s15] %v137
    %s140 = scalar_lea.vmem [#allocation0], 512
    %v141 = vld [vmem:[%s140] sm:%s15]
    %s142 = scalar_lea.vmem [#allocation2], 2048
    %143 = vst [vmem:[%s142] sm:%s15] %v141
    %s144 = scalar_lea.vmem [#allocation0], 510
    %v145 = vld [vmem:[%s144] sm:%s15]
    %s146 = scalar_lea.vmem [#allocation2], 2040
    %147 = vst [vmem:[%s146] sm:%s15] %v145
    %s148 = scalar_lea.vmem [#allocation0], 508
    %v149 = vld [vmem:[%s148] sm:%s15]
    %s150 = scalar_lea.vmem [#allocation2], 2032
    %151 = vst [vmem:[%s150] sm:%s15] %v149
    %s152 = scalar_lea.vmem [#allocation0], 506
    %v153 = vld [vmem:[%s152] sm:%s15]
    %s154 = scalar_lea.vmem [#allocation2], 2024
    %155 = vst [vmem:[%s154] sm:%s15] %v153
    %s156 = scalar_lea.vmem [#allocation0], 504
    %v157 = vld [vmem:[%s156] sm:%s15]
    %s158 = scalar_lea.vmem [#allocation2], 2016
    %159 = vst [vmem:[%s158] sm:%s15] %v157
    %s160 = scalar_lea.vmem [#allocation0], 502
    %v161 = vld [vmem:[%s160] sm:%s15]
    %s162 = scalar_lea.vmem [#allocation2], 2008
    %163 = vst [vmem:[%s162] sm:%s15] %v161
    %s164 = scalar_lea.vmem [#allocation0], 500
    %v165 = vld [vmem:[%s164] sm:%s15]
    %s166 = scalar_lea.vmem [#allocation2], 2000
    %167 = vst [vmem:[%s166] sm:%s15] %v165
    %s168 = scalar_lea.vmem [#allocation0], 498
    %v169 = vld [vmem:[%s168] sm:%s15]
    %s170 = scalar_lea.vmem [#allocation2], 1992
    %171 = vst [vmem:[%s170] sm:%s15] %v169
    %s172 = scalar_lea.vmem [#allocation0], 496
    %v173 = vld [vmem:[%s172] sm:%s15]
    %s174 = scalar_lea.vmem [#allocation2], 1984
    %175 = vst [vmem:[%s174] sm:%s15] %v173
    %s176 = scalar_lea.vmem [#allocation0], 494
    %v177 = vld [vmem:[%s176] sm:%s15]
    %s178 = scalar_lea.vmem [#allocation2], 1976
    %179 = vst [vmem:[%s178] sm:%s15] %v177
    %s180 = scalar_lea.vmem [#allocation0], 492
    %v181 = vld [vmem:[%s180] sm:%s15]
    %s182 = scalar_lea.vmem [#allocation2], 1968
    %183 = vst [vmem:[%s182] sm:%s15] %v181
    %s184 = scalar_lea.vmem [#allocation0], 490
    %v185 = vld [vmem:[%s184] sm:%s15]
    %s186 = scalar_lea.vmem [#allocation2], 1960
    %187 = vst [vmem:[%s186] sm:%s15] %v185
    %s188 = scalar_lea.vmem [#allocation0], 488
    %v189 = vld [vmem:[%s188] sm:%s15]
    %s190 = scalar_lea.vmem [#allocation2], 1952
    %191 = vst [vmem:[%s190] sm:%s15] %v189
    %s192 = scalar_lea.vmem [#allocation0], 486
    %v193 = vld [vmem:[%s192] sm:%s15]
    %s194 = scalar_lea.vmem [#allocation2], 1944
    %195 = vst [vmem:[%s194] sm:%s15] %v193
    %s196 = scalar_lea.vmem [#allocation0], 484
    %v197 = vld [vmem:[%s196] sm:%s15]
    %s198 = scalar_lea.vmem [#allocation2], 1936
    %199 = vst [vmem:[%s198] sm:%s15] %v197
    %s200 = scalar_lea.vmem [#allocation0], 482
    %v201 = vld [vmem:[%s200] sm:%s15]
    %s202 = scalar_lea.vmem [#allocation2], 1928
    %203 = vst [vmem:[%s202] sm:%s15] %v201
    %s204 = scalar_lea.vmem [#allocation0], 480
    %v205 = vld [vmem:[%s204] sm:%s15]
    %s206 = scalar_lea.vmem [#allocation2], 1920
    %207 = vst [vmem:[%s206] sm:%s15] %v205
    %s208 = scalar_lea.vmem [#allocation0], 478
    %v209 = vld [vmem:[%s208] sm:%s15]
    %s210 = scalar_lea.vmem [#allocation2], 1912
    %211 = vst [vmem:[%s210] sm:%s15] %v209
    %s212 = scalar_lea.vmem [#allocation0], 476
    %v213 = vld [vmem:[%s212] sm:%s15]
    %s214 = scalar_lea.vmem [#allocation2], 1904
    %215 = vst [vmem:[%s214] sm:%s15] %v213
    %s216 = scalar_lea.vmem [#allocation0], 474
    %v217 = vld [vmem:[%s216] sm:%s15]
    %s218 = scalar_lea.vmem [#allocation2], 1896
    %219 = vst [vmem:[%s218] sm:%s15] %v217
    %s220 = scalar_lea.vmem [#allocation0], 472
    %v221 = vld [vmem:[%s220] sm:%s15]
    %s222 = scalar_lea.vmem [#allocation2], 1888
    %223 = vst [vmem:[%s222] sm:%s15] %v221
    %s224 = scalar_lea.vmem [#allocation0], 470
    %v225 = vld [vmem:[%s224] sm:%s15]
    %s226 = scalar_lea.vmem [#allocation2], 1880
    %227 = vst [vmem:[%s226] sm:%s15] %v225
    %s228 = scalar_lea.vmem [#allocation0], 468
    %v229 = vld [vmem:[%s228] sm:%s15]
    %s230 = scalar_lea.vmem [#allocation2], 1872
    %231 = vst [vmem:[%s230] sm:%s15] %v229
    %s232 = scalar_lea.vmem [#allocation0], 466
    %v233 = vld [vmem:[%s232] sm:%s15]
    %s234 = scalar_lea.vmem [#allocation2], 1864
    %235 = vst [vmem:[%s234] sm:%s15] %v233
    %s236 = scalar_lea.vmem [#allocation0], 464
    %v237 = vld [vmem:[%s236] sm:%s15]
    %s238 = scalar_lea.vmem [#allocation2], 1856
    %239 = vst [vmem:[%s238] sm:%s15] %v237
    %s240 = scalar_lea.vmem [#allocation0], 462
    %v241 = vld [vmem:[%s240] sm:%s15]
    %s242 = scalar_lea.vmem [#allocation2], 1848
    %243 = vst [vmem:[%s242] sm:%s15] %v241
    %s244 = scalar_lea.vmem [#allocation0], 460
    %v245 = vld [vmem:[%s244] sm:%s15]
    %s246 = scalar_lea.vmem [#allocation2], 1840
    %247 = vst [vmem:[%s246] sm:%s15] %v245
    %s248 = scalar_lea.vmem [#allocation0], 458
    %v249 = vld [vmem:[%s248] sm:%s15]
    %s250 = scalar_lea.vmem [#allocation2], 1832
    %251 = vst [vmem:[%s250] sm:%s15] %v249
    %s252 = scalar_lea.vmem [#allocation0], 456
    %v253 = vld [vmem:[%s252] sm:%s15]
    %s254 = scalar_lea.vmem [#allocation2], 1824
    %255 = vst [vmem:[%s254] sm:%s15] %v253
    %s256 = scalar_lea.vmem [#allocation0], 454
    %v257 = vld [vmem:[%s256] sm:%s15]
    %s258 = scalar_lea.vmem [#allocation2], 1816
    %259 = vst [vmem:[%s258] sm:%s15] %v257
    %s260 = scalar_lea.vmem [#allocation0], 452
    %v261 = vld [vmem:[%s260] sm:%s15]
    %s262 = scalar_lea.vmem [#allocation2], 1808
    %263 = vst [vmem:[%s262] sm:%s15] %v261
    %s264 = scalar_lea.vmem [#allocation0], 450
    %v265 = vld [vmem:[%s264] sm:%s15]
    %s266 = scalar_lea.vmem [#allocation2], 1800
    %267 = vst [vmem:[%s266] sm:%s15] %v265
    %s268 = scalar_lea.vmem [#allocation0], 448
    %v269 = vld [vmem:[%s268] sm:%s15]
    %s270 = scalar_lea.vmem [#allocation2], 1792
    %271 = vst [vmem:[%s270] sm:%s15] %v269
    %s272 = scalar_lea.vmem [#allocation0], 446
    %v273 = vld [vmem:[%s272] sm:%s15]
    %s274 = scalar_lea.vmem [#allocation2], 1784
    %275 = vst [vmem:[%s274] sm:%s15] %v273
    %s276 = scalar_lea.vmem [#allocation0], 444
    %v277 = vld [vmem:[%s276] sm:%s15]
    %s278 = scalar_lea.vmem [#allocation2], 1776
    %279 = vst [vmem:[%s278] sm:%s15] %v277
    %s280 = scalar_lea.vmem [#allocation0], 442
    %v281 = vld [vmem:[%s280] sm:%s15]
    %s282 = scalar_lea.vmem [#allocation2], 1768
    %283 = vst [vmem:[%s282] sm:%s15] %v281
    %s284 = scalar_lea.vmem [#allocation0], 440
    %v285 = vld [vmem:[%s284] sm:%s15]
    %s286 = scalar_lea.vmem [#allocation2], 1760
    %287 = vst [vmem:[%s286] sm:%s15] %v285
    %s288 = scalar_lea.vmem [#allocation0], 438
    %v289 = vld [vmem:[%s288] sm:%s15]
    %s290 = scalar_lea.vmem [#allocation2], 1752
    %291 = vst [vmem:[%s290] sm:%s15] %v289
    %s292 = scalar_lea.vmem [#allocation0], 436
    %v293 = vld [vmem:[%s292] sm:%s15]
    %s294 = scalar_lea.vmem [#allocation2], 1744
    %295 = vst [vmem:[%s294] sm:%s15] %v293
    %s296 = scalar_lea.vmem [#allocation0], 434
    %v297 = vld [vmem:[%s296] sm:%s15]
    %s298 = scalar_lea.vmem [#allocation2], 1736
    %299 = vst [vmem:[%s298] sm:%s15] %v297
    %s300 = scalar_lea.vmem [#allocation0], 432
    %v301 = vld [vmem:[%s300] sm:%s15]
    %s302 = scalar_lea.vmem [#allocation2], 1728
    %303 = vst [vmem:[%s302] sm:%s15] %v301
    %s304 = scalar_lea.vmem [#allocation0], 430
    %v305 = vld [vmem:[%s304] sm:%s15]
    %s306 = scalar_lea.vmem [#allocation2], 1720
    %307 = vst [vmem:[%s306] sm:%s15] %v305
    %s308 = scalar_lea.vmem [#allocation0], 428
    %v309 = vld [vmem:[%s308] sm:%s15]
    %s310 = scalar_lea.vmem [#allocation2], 1712
    %311 = vst [vmem:[%s310] sm:%s15] %v309
    %s312 = scalar_lea.vmem [#allocation0], 426
    %v313 = vld [vmem:[%s312] sm:%s15]
    %s314 = scalar_lea.vmem [#allocation2], 1704
    %315 = vst [vmem:[%s314] sm:%s15] %v313
    %s316 = scalar_lea.vmem [#allocation0], 424
    %v317 = vld [vmem:[%s316] sm:%s15]
    %s318 = scalar_lea.vmem [#allocation2], 1696
    %319 = vst [vmem:[%s318] sm:%s15] %v317
    %s320 = scalar_lea.vmem [#allocation0], 422
    %v321 = vld [vmem:[%s320] sm:%s15]
    %s322 = scalar_lea.vmem [#allocation2], 1688
    %323 = vst [vmem:[%s322] sm:%s15] %v321
    %s324 = scalar_lea.vmem [#allocation0], 420
    %v325 = vld [vmem:[%s324] sm:%s15]
    %s326 = scalar_lea.vmem [#allocation2], 1680
    %327 = vst [vmem:[%s326] sm:%s15] %v325
    %s328 = scalar_lea.vmem [#allocation0], 418
    %v329 = vld [vmem:[%s328] sm:%s15]
    %s330 = scalar_lea.vmem [#allocation2], 1672
    %331 = vst [vmem:[%s330] sm:%s15] %v329
    %s332 = scalar_lea.vmem [#allocation0], 416
    %v333 = vld [vmem:[%s332] sm:%s15]
    %s334 = scalar_lea.vmem [#allocation2], 1664
    %335 = vst [vmem:[%s334] sm:%s15] %v333
    %s336 = scalar_lea.vmem [#allocation0], 414
    %v337 = vld [vmem:[%s336] sm:%s15]
    %s338 = scalar_lea.vmem [#allocation2], 1656
    %339 = vst [vmem:[%s338] sm:%s15] %v337
    %s340 = scalar_lea.vmem [#allocation0], 412
    %v341 = vld [vmem:[%s340] sm:%s15]
    %s342 = scalar_lea.vmem [#allocation2], 1648
    %343 = vst [vmem:[%s342] sm:%s15] %v341
    %s344 = scalar_lea.vmem [#allocation0], 410
    %v345 = vld [vmem:[%s344] sm:%s15]
    %s346 = scalar_lea.vmem [#allocation2], 1640
    %347 = vst [vmem:[%s346] sm:%s15] %v345
    %s348 = scalar_lea.vmem [#allocation0], 408
    %v349 = vld [vmem:[%s348] sm:%s15]
    %s350 = scalar_lea.vmem [#allocation2], 1632
    %351 = vst [vmem:[%s350] sm:%s15] %v349
    %s352 = scalar_lea.vmem [#allocation0], 406
    %v353 = vld [vmem:[%s352] sm:%s15]
    %s354 = scalar_lea.vmem [#allocation2], 1624
    %355 = vst [vmem:[%s354] sm:%s15] %v353
    %s356 = scalar_lea.vmem [#allocation0], 404
    %v357 = vld [vmem:[%s356] sm:%s15]
    %s358 = scalar_lea.vmem [#allocation2], 1616
    %359 = vst [vmem:[%s358] sm:%s15] %v357
    %s360 = scalar_lea.vmem [#allocation0], 402
    %v361 = vld [vmem:[%s360] sm:%s15]
    %s362 = scalar_lea.vmem [#allocation2], 1608
    %363 = vst [vmem:[%s362] sm:%s15] %v361
    %s364 = scalar_lea.vmem [#allocation0], 400
    %v365 = vld [vmem:[%s364] sm:%s15]
    %s366 = scalar_lea.vmem [#allocation2], 1600
    %367 = vst [vmem:[%s366] sm:%s15] %v365
    %s368 = scalar_lea.vmem [#allocation0], 398
    %v369 = vld [vmem:[%s368] sm:%s15]
    %s370 = scalar_lea.vmem [#allocation2], 1592
    %371 = vst [vmem:[%s370] sm:%s15] %v369
    %s372 = scalar_lea.vmem [#allocation0], 396
    %v373 = vld [vmem:[%s372] sm:%s15]
    %s374 = scalar_lea.vmem [#allocation2], 1584
    %375 = vst [vmem:[%s374] sm:%s15] %v373
    %s376 = scalar_lea.vmem [#allocation0], 394
    %v377 = vld [vmem:[%s376] sm:%s15]
    %s378 = scalar_lea.vmem [#allocation2], 1576
    %379 = vst [vmem:[%s378] sm:%s15] %v377
    %s380 = scalar_lea.vmem [#allocation0], 392
    %v381 = vld [vmem:[%s380] sm:%s15]
    %s382 = scalar_lea.vmem [#allocation2], 1568
    %383 = vst [vmem:[%s382] sm:%s15] %v381
    %s384 = scalar_lea.vmem [#allocation0], 390
    %v385 = vld [vmem:[%s384] sm:%s15]
    %s386 = scalar_lea.vmem [#allocation2], 1560
    %387 = vst [vmem:[%s386] sm:%s15] %v385
    %s388 = scalar_lea.vmem [#allocation0], 388
    %v389 = vld [vmem:[%s388] sm:%s15]
    %s390 = scalar_lea.vmem [#allocation2], 1552
    %391 = vst [vmem:[%s390] sm:%s15] %v389
    %s392 = scalar_lea.vmem [#allocation0], 386
    %v393 = vld [vmem:[%s392] sm:%s15]
    %s394 = scalar_lea.vmem [#allocation2], 1544
    %395 = vst [vmem:[%s394] sm:%s15] %v393
    %s396 = scalar_lea.vmem [#allocation0], 384
    %v397 = vld [vmem:[%s396] sm:%s15]
    %s398 = scalar_lea.vmem [#allocation2], 1536
    %399 = vst [vmem:[%s398] sm:%s15] %v397
    %s400 = scalar_lea.vmem [#allocation0], 382
    %v401 = vld [vmem:[%s400] sm:%s15]
    %s402 = scalar_lea.vmem [#allocation2], 1528
    %403 = vst [vmem:[%s402] sm:%s15] %v401
    %s404 = scalar_lea.vmem [#allocation0], 380
    %v405 = vld [vmem:[%s404] sm:%s15]
    %s406 = scalar_lea.vmem [#allocation2], 1520
    %407 = vst [vmem:[%s406] sm:%s15] %v405
    %s408 = scalar_lea.vmem [#allocation0], 378
    %v409 = vld [vmem:[%s408] sm:%s15]
    %s410 = scalar_lea.vmem [#allocation2], 1512
    %411 = vst [vmem:[%s410] sm:%s15] %v409
    %s412 = scalar_lea.vmem [#allocation0], 376
    %v413 = vld [vmem:[%s412] sm:%s15]
    %s414 = scalar_lea.vmem [#allocation2], 1504
    %415 = vst [vmem:[%s414] sm:%s15] %v413
    %s416 = scalar_lea.vmem [#allocation0], 374
    %v417 = vld [vmem:[%s416] sm:%s15]
    %s418 = scalar_lea.vmem [#allocation2], 1496
    %419 = vst [vmem:[%s418] sm:%s15] %v417
    %s420 = scalar_lea.vmem [#allocation0], 372
    %v421 = vld [vmem:[%s420] sm:%s15]
    %s422 = scalar_lea.vmem [#allocation2], 1488
    %423 = vst [vmem:[%s422] sm:%s15] %v421
    %s424 = scalar_lea.vmem [#allocation0], 370
    %v425 = vld [vmem:[%s424] sm:%s15]
    %s426 = scalar_lea.vmem [#allocation2], 1480
    %427 = vst [vmem:[%s426] sm:%s15] %v425
    %s428 = scalar_lea.vmem [#allocation0], 368
    %v429 = vld [vmem:[%s428] sm:%s15]
    %s430 = scalar_lea.vmem [#allocation2], 1472
    %431 = vst [vmem:[%s430] sm:%s15] %v429
    %s432 = scalar_lea.vmem [#allocation0], 366
    %v433 = vld [vmem:[%s432] sm:%s15]
    %s434 = scalar_lea.vmem [#allocation2], 1464
    %435 = vst [vmem:[%s434] sm:%s15] %v433
    %s436 = scalar_lea.vmem [#allocation0], 364
    %v437 = vld [vmem:[%s436] sm:%s15]
    %s438 = scalar_lea.vmem [#allocation2], 1456
    %439 = vst [vmem:[%s438] sm:%s15] %v437
    %s440 = scalar_lea.vmem [#allocation0], 362
    %v441 = vld [vmem:[%s440] sm:%s15]
    %s442 = scalar_lea.vmem [#allocation2], 1448
    %443 = vst [vmem:[%s442] sm:%s15] %v441
    %s444 = scalar_lea.vmem [#allocation0], 360
    %v445 = vld [vmem:[%s444] sm:%s15]
    %s446 = scalar_lea.vmem [#allocation2], 1440
    %447 = vst [vmem:[%s446] sm:%s15] %v445
    %s448 = scalar_lea.vmem [#allocation0], 358
    %v449 = vld [vmem:[%s448] sm:%s15]
    %s450 = scalar_lea.vmem [#allocation2], 1432
    %451 = vst [vmem:[%s450] sm:%s15] %v449
    %s452 = scalar_lea.vmem [#allocation0], 356
    %v453 = vld [vmem:[%s452] sm:%s15]
    %s454 = scalar_lea.vmem [#allocation2], 1424
    %455 = vst [vmem:[%s454] sm:%s15] %v453
    %s456 = scalar_lea.vmem [#allocation0], 354
    %v457 = vld [vmem:[%s456] sm:%s15]
    %s458 = scalar_lea.vmem [#allocation2], 1416
    %459 = vst [vmem:[%s458] sm:%s15] %v457
    %s460 = scalar_lea.vmem [#allocation0], 352
    %v461 = vld [vmem:[%s460] sm:%s15]
    %s462 = scalar_lea.vmem [#allocation2], 1408
    %463 = vst [vmem:[%s462] sm:%s15] %v461
    %s464 = scalar_lea.vmem [#allocation0], 350
    %v465 = vld [vmem:[%s464] sm:%s15]
    %s466 = scalar_lea.vmem [#allocation2], 1400
    %467 = vst [vmem:[%s466] sm:%s15] %v465
    %s468 = scalar_lea.vmem [#allocation0], 348
    %v469 = vld [vmem:[%s468] sm:%s15]
    %s470 = scalar_lea.vmem [#allocation2], 1392
    %471 = vst [vmem:[%s470] sm:%s15] %v469
    %s472 = scalar_lea.vmem [#allocation0], 346
    %v473 = vld [vmem:[%s472] sm:%s15]
    %s474 = scalar_lea.vmem [#allocation2], 1384
    %475 = vst [vmem:[%s474] sm:%s15] %v473
    %s476 = scalar_lea.vmem [#allocation0], 344
    %v477 = vld [vmem:[%s476] sm:%s15]
    %s478 = scalar_lea.vmem [#allocation2], 1376
    %479 = vst [vmem:[%s478] sm:%s15] %v477
    %s480 = scalar_lea.vmem [#allocation0], 342
    %v481 = vld [vmem:[%s480] sm:%s15]
    %s482 = scalar_lea.vmem [#allocation2], 1368
    %483 = vst [vmem:[%s482] sm:%s15] %v481
    %s484 = scalar_lea.vmem [#allocation0], 340
    %v485 = vld [vmem:[%s484] sm:%s15]
    %s486 = scalar_lea.vmem [#allocation2], 1360
    %487 = vst [vmem:[%s486] sm:%s15] %v485
    %s488 = scalar_lea.vmem [#allocation0], 338
    %v489 = vld [vmem:[%s488] sm:%s15]
    %s490 = scalar_lea.vmem [#allocation2], 1352
    %491 = vst [vmem:[%s490] sm:%s15] %v489
    %s492 = scalar_lea.vmem [#allocation0], 336
    %v493 = vld [vmem:[%s492] sm:%s15]
    %s494 = scalar_lea.vmem [#allocation2], 1344
    %495 = vst [vmem:[%s494] sm:%s15] %v493
    %s496 = scalar_lea.vmem [#allocation0], 334
    %v497 = vld [vmem:[%s496] sm:%s15]
    %s498 = scalar_lea.vmem [#allocation2], 1336
    %499 = vst [vmem:[%s498] sm:%s15] %v497
    %s500 = scalar_lea.vmem [#allocation0], 332
    %v501 = vld [vmem:[%s500] sm:%s15]
    %s502 = scalar_lea.vmem [#allocation2], 1328
    %503 = vst [vmem:[%s502] sm:%s15] %v501
    %s504 = scalar_lea.vmem [#allocation0], 330
    %v505 = vld [vmem:[%s504] sm:%s15]
    %s506 = scalar_lea.vmem [#allocation2], 1320
    %507 = vst [vmem:[%s506] sm:%s15] %v505
    %s508 = scalar_lea.vmem [#allocation0], 328
    %v509 = vld [vmem:[%s508] sm:%s15]
    %s510 = scalar_lea.vmem [#allocation2], 1312
    %511 = vst [vmem:[%s510] sm:%s15] %v509
    %s512 = scalar_lea.vmem [#allocation0], 326
    %v513 = vld [vmem:[%s512] sm:%s15]
    %s514 = scalar_lea.vmem [#allocation2], 1304
    %515 = vst [vmem:[%s514] sm:%s15] %v513
    %s516 = scalar_lea.vmem [#allocation0], 324
    %v517 = vld [vmem:[%s516] sm:%s15]
    %s518 = scalar_lea.vmem [#allocation2], 1296
    %519 = vst [vmem:[%s518] sm:%s15] %v517
    %s520 = scalar_lea.vmem [#allocation0], 322
    %v521 = vld [vmem:[%s520] sm:%s15]
    %s522 = scalar_lea.vmem [#allocation2], 1288
    %523 = vst [vmem:[%s522] sm:%s15] %v521
    %s524 = scalar_lea.vmem [#allocation0], 320
    %v525 = vld [vmem:[%s524] sm:%s15]
    %s526 = scalar_lea.vmem [#allocation2], 1280
    %527 = vst [vmem:[%s526] sm:%s15] %v525
    %s528 = scalar_lea.vmem [#allocation0], 318
    %v529 = vld [vmem:[%s528] sm:%s15]
    %s530 = scalar_lea.vmem [#allocation2], 1272
    %531 = vst [vmem:[%s530] sm:%s15] %v529
    %s532 = scalar_lea.vmem [#allocation0], 316
    %v533 = vld [vmem:[%s532] sm:%s15]
    %s534 = scalar_lea.vmem [#allocation2], 1264
    %535 = vst [vmem:[%s534] sm:%s15] %v533
    %s536 = scalar_lea.vmem [#allocation0], 314
    %v537 = vld [vmem:[%s536] sm:%s15]
    %s538 = scalar_lea.vmem [#allocation2], 1256
    %539 = vst [vmem:[%s538] sm:%s15] %v537
    %s540 = scalar_lea.vmem [#allocation0], 312
    %v541 = vld [vmem:[%s540] sm:%s15]
    %s542 = scalar_lea.vmem [#allocation2], 1248
    %543 = vst [vmem:[%s542] sm:%s15] %v541
    %s544 = scalar_lea.vmem [#allocation0], 310
    %v545 = vld [vmem:[%s544] sm:%s15]
    %s546 = scalar_lea.vmem [#allocation2], 1240
    %547 = vst [vmem:[%s546] sm:%s15] %v545
    %s548 = scalar_lea.vmem [#allocation0], 308
    %v549 = vld [vmem:[%s548] sm:%s15]
    %s550 = scalar_lea.vmem [#allocation2], 1232
    %551 = vst [vmem:[%s550] sm:%s15] %v549
    %s552 = scalar_lea.vmem [#allocation0], 306
    %v553 = vld [vmem:[%s552] sm:%s15]
    %s554 = scalar_lea.vmem [#allocation2], 1224
    %555 = vst [vmem:[%s554] sm:%s15] %v553
    %s556 = scalar_lea.vmem [#allocation0], 304
    %v557 = vld [vmem:[%s556] sm:%s15]
    %s558 = scalar_lea.vmem [#allocation2], 1216
    %559 = vst [vmem:[%s558] sm:%s15] %v557
    %s560 = scalar_lea.vmem [#allocation0], 302
    %v561 = vld [vmem:[%s560] sm:%s15]
    %s562 = scalar_lea.vmem [#allocation2], 1208
    %563 = vst [vmem:[%s562] sm:%s15] %v561
    %s564 = scalar_lea.vmem [#allocation0], 300
    %v565 = vld [vmem:[%s564] sm:%s15]
    %s566 = scalar_lea.vmem [#allocation2], 1200
    %567 = vst [vmem:[%s566] sm:%s15] %v565
    %s568 = scalar_lea.vmem [#allocation0], 298
    %v569 = vld [vmem:[%s568] sm:%s15]
    %s570 = scalar_lea.vmem [#allocation2], 1192
    %571 = vst [vmem:[%s570] sm:%s15] %v569
    %s572 = scalar_lea.vmem [#allocation0], 296
    %v573 = vld [vmem:[%s572] sm:%s15]
    %s574 = scalar_lea.vmem [#allocation2], 1184
    %575 = vst [vmem:[%s574] sm:%s15] %v573
    %s576 = scalar_lea.vmem [#allocation0], 294
    %v577 = vld [vmem:[%s576] sm:%s15]
    %s578 = scalar_lea.vmem [#allocation2], 1176
    %579 = vst [vmem:[%s578] sm:%s15] %v577
    %s580 = scalar_lea.vmem [#allocation0], 292
    %v581 = vld [vmem:[%s580] sm:%s15]
    %s582 = scalar_lea.vmem [#allocation2], 1168
    %583 = vst [vmem:[%s582] sm:%s15] %v581
    %s584 = scalar_lea.vmem [#allocation0], 290
    %v585 = vld [vmem:[%s584] sm:%s15]
    %s586 = scalar_lea.vmem [#allocation2], 1160
    %587 = vst [vmem:[%s586] sm:%s15] %v585
    %s588 = scalar_lea.vmem [#allocation0], 288
    %v589 = vld [vmem:[%s588] sm:%s15]
    %s590 = scalar_lea.vmem [#allocation2], 1152
    %591 = vst [vmem:[%s590] sm:%s15] %v589
    %s592 = scalar_lea.vmem [#allocation0], 286
    %v593 = vld [vmem:[%s592] sm:%s15]
    %s594 = scalar_lea.vmem [#allocation2], 1144
    %595 = vst [vmem:[%s594] sm:%s15] %v593
    %s596 = scalar_lea.vmem [#allocation0], 284
    %v597 = vld [vmem:[%s596] sm:%s15]
    %s598 = scalar_lea.vmem [#allocation2], 1136
    %599 = vst [vmem:[%s598] sm:%s15] %v597
    %s600 = scalar_lea.vmem [#allocation0], 282
    %v601 = vld [vmem:[%s600] sm:%s15]
    %s602 = scalar_lea.vmem [#allocation2], 1128
    %603 = vst [vmem:[%s602] sm:%s15] %v601
    %s604 = scalar_lea.vmem [#allocation0], 280
    %v605 = vld [vmem:[%s604] sm:%s15]
    %s606 = scalar_lea.vmem [#allocation2], 1120
    %607 = vst [vmem:[%s606] sm:%s15] %v605
    %s608 = scalar_lea.vmem [#allocation0], 278
    %v609 = vld [vmem:[%s608] sm:%s15]
    %s610 = scalar_lea.vmem [#allocation2], 1112
    %611 = vst [vmem:[%s610] sm:%s15] %v609
    %s612 = scalar_lea.vmem [#allocation0], 276
    %v613 = vld [vmem:[%s612] sm:%s15]
    %s614 = scalar_lea.vmem [#allocation2], 1104
    %615 = vst [vmem:[%s614] sm:%s15] %v613
    %s616 = scalar_lea.vmem [#allocation0], 274
    %v617 = vld [vmem:[%s616] sm:%s15]
    %s618 = scalar_lea.vmem [#allocation2], 1096
    %619 = vst [vmem:[%s618] sm:%s15] %v617
    %s620 = scalar_lea.vmem [#allocation0], 272
    %v621 = vld [vmem:[%s620] sm:%s15]
    %s622 = scalar_lea.vmem [#allocation2], 1088
    %623 = vst [vmem:[%s622] sm:%s15] %v621
    %s624 = scalar_lea.vmem [#allocation0], 270
    %v625 = vld [vmem:[%s624] sm:%s15]
    %s626 = scalar_lea.vmem [#allocation2], 1080
    %627 = vst [vmem:[%s626] sm:%s15] %v625
    %s628 = scalar_lea.vmem [#allocation0], 268
    %v629 = vld [vmem:[%s628] sm:%s15]
    %s630 = scalar_lea.vmem [#allocation2], 1072
    %631 = vst [vmem:[%s630] sm:%s15] %v629
    %s632 = scalar_lea.vmem [#allocation0], 266
    %v633 = vld [vmem:[%s632] sm:%s15]
    %s634 = scalar_lea.vmem [#allocation2], 1064
    %635 = vst [vmem:[%s634] sm:%s15] %v633
    %s636 = scalar_lea.vmem [#allocation0], 264
    %v637 = vld [vmem:[%s636] sm:%s15]
    %s638 = scalar_lea.vmem [#allocation2], 1056
    %639 = vst [vmem:[%s638] sm:%s15] %v637
    %s640 = scalar_lea.vmem [#allocation0], 262
    %v641 = vld [vmem:[%s640] sm:%s15]
    %s642 = scalar_lea.vmem [#allocation2], 1048
    %643 = vst [vmem:[%s642] sm:%s15] %v641
    %s644 = scalar_lea.vmem [#allocation0], 260
    %v645 = vld [vmem:[%s644] sm:%s15]
    %s646 = scalar_lea.vmem [#allocation2], 1040
    %647 = vst [vmem:[%s646] sm:%s15] %v645
    %s648 = scalar_lea.vmem [#allocation0], 258
    %v649 = vld [vmem:[%s648] sm:%s15]
    %s650 = scalar_lea.vmem [#allocation2], 1032
    %651 = vst [vmem:[%s650] sm:%s15] %v649
    %s652 = scalar_lea.vmem [#allocation0], 256
    %v653 = vld [vmem:[%s652] sm:%s15]
    %s654 = scalar_lea.vmem [#allocation2], 1024
    %655 = vst [vmem:[%s654] sm:%s15] %v653
    %s656 = scalar_lea.vmem [#allocation0], 254
    %v657 = vld [vmem:[%s656] sm:%s15]
    %s658 = scalar_lea.vmem [#allocation2], 1016
    %659 = vst [vmem:[%s658] sm:%s15] %v657
    %s660 = scalar_lea.vmem [#allocation0], 252
    %v661 = vld [vmem:[%s660] sm:%s15]
    %s662 = scalar_lea.vmem [#allocation2], 1008
    %663 = vst [vmem:[%s662] sm:%s15] %v661
    %s664 = scalar_lea.vmem [#allocation0], 250
    %v665 = vld [vmem:[%s664] sm:%s15]
    %s666 = scalar_lea.vmem [#allocation2], 1000
    %667 = vst [vmem:[%s666] sm:%s15] %v665
    %s668 = scalar_lea.vmem [#allocation0], 248
    %v669 = vld [vmem:[%s668] sm:%s15]
    %s670 = scalar_lea.vmem [#allocation2], 992
    %671 = vst [vmem:[%s670] sm:%s15] %v669
    %s672 = scalar_lea.vmem [#allocation0], 246
    %v673 = vld [vmem:[%s672] sm:%s15]
    %s674 = scalar_lea.vmem [#allocation2], 984
    %675 = vst [vmem:[%s674] sm:%s15] %v673
    %s676 = scalar_lea.vmem [#allocation0], 244
    %v677 = vld [vmem:[%s676] sm:%s15]
    %s678 = scalar_lea.vmem [#allocation2], 976
    %679 = vst [vmem:[%s678] sm:%s15] %v677
    %s680 = scalar_lea.vmem [#allocation0], 242
    %v681 = vld [vmem:[%s680] sm:%s15]
    %s682 = scalar_lea.vmem [#allocation2], 968
    %683 = vst [vmem:[%s682] sm:%s15] %v681
    %s684 = scalar_lea.vmem [#allocation0], 240
    %v685 = vld [vmem:[%s684] sm:%s15]
    %s686 = scalar_lea.vmem [#allocation2], 960
    %687 = vst [vmem:[%s686] sm:%s15] %v685
    %s688 = scalar_lea.vmem [#allocation0], 238
    %v689 = vld [vmem:[%s688] sm:%s15]
    %s690 = scalar_lea.vmem [#allocation2], 952
    %691 = vst [vmem:[%s690] sm:%s15] %v689
    %s692 = scalar_lea.vmem [#allocation0], 236
    %v693 = vld [vmem:[%s692] sm:%s15]
    %s694 = scalar_lea.vmem [#allocation2], 944
    %695 = vst [vmem:[%s694] sm:%s15] %v693
    %s696 = scalar_lea.vmem [#allocation0], 234
    %v697 = vld [vmem:[%s696] sm:%s15]
    %s698 = scalar_lea.vmem [#allocation2], 936
    %699 = vst [vmem:[%s698] sm:%s15] %v697
    %s700 = scalar_lea.vmem [#allocation0], 232
    %v701 = vld [vmem:[%s700] sm:%s15]
    %s702 = scalar_lea.vmem [#allocation2], 928
    %703 = vst [vmem:[%s702] sm:%s15] %v701
    %s704 = scalar_lea.vmem [#allocation0], 230
    %v705 = vld [vmem:[%s704] sm:%s15]
    %s706 = scalar_lea.vmem [#allocation2], 920
    %707 = vst [vmem:[%s706] sm:%s15] %v705
    %s708 = scalar_lea.vmem [#allocation0], 228
    %v709 = vld [vmem:[%s708] sm:%s15]
    %s710 = scalar_lea.vmem [#allocation2], 912
    %711 = vst [vmem:[%s710] sm:%s15] %v709
    %s712 = scalar_lea.vmem [#allocation0], 226
    %v713 = vld [vmem:[%s712] sm:%s15]
    %s714 = scalar_lea.vmem [#allocation2], 904
    %715 = vst [vmem:[%s714] sm:%s15] %v713
    %s716 = scalar_lea.vmem [#allocation0], 224
    %v717 = vld [vmem:[%s716] sm:%s15]
    %s718 = scalar_lea.vmem [#allocation2], 896
    %719 = vst [vmem:[%s718] sm:%s15] %v717
    %s720 = scalar_lea.vmem [#allocation0], 222
    %v721 = vld [vmem:[%s720] sm:%s15]
    %s722 = scalar_lea.vmem [#allocation2], 888
    %723 = vst [vmem:[%s722] sm:%s15] %v721
    %s724 = scalar_lea.vmem [#allocation0], 220
    %v725 = vld [vmem:[%s724] sm:%s15]
    %s726 = scalar_lea.vmem [#allocation2], 880
    %727 = vst [vmem:[%s726] sm:%s15] %v725
    %s728 = scalar_lea.vmem [#allocation0], 218
    %v729 = vld [vmem:[%s728] sm:%s15]
    %s730 = scalar_lea.vmem [#allocation2], 872
    %731 = vst [vmem:[%s730] sm:%s15] %v729
    %s732 = scalar_lea.vmem [#allocation0], 216
    %v733 = vld [vmem:[%s732] sm:%s15]
    %s734 = scalar_lea.vmem [#allocation2], 864
    %735 = vst [vmem:[%s734] sm:%s15] %v733
    %s736 = scalar_lea.vmem [#allocation0], 214
    %v737 = vld [vmem:[%s736] sm:%s15]
    %s738 = scalar_lea.vmem [#allocation2], 856
    %739 = vst [vmem:[%s738] sm:%s15] %v737
    %s740 = scalar_lea.vmem [#allocation0], 212
    %v741 = vld [vmem:[%s740] sm:%s15]
    %s742 = scalar_lea.vmem [#allocation2], 848
    %743 = vst [vmem:[%s742] sm:%s15] %v741
    %s744 = scalar_lea.vmem [#allocation0], 210
    %v745 = vld [vmem:[%s744] sm:%s15]
    %s746 = scalar_lea.vmem [#allocation2], 840
    %747 = vst [vmem:[%s746] sm:%s15] %v745
    %s748 = scalar_lea.vmem [#allocation0], 208
    %v749 = vld [vmem:[%s748] sm:%s15]
    %s750 = scalar_lea.vmem [#allocation2], 832
    %751 = vst [vmem:[%s750] sm:%s15] %v749
    %s752 = scalar_lea.vmem [#allocation0], 206
    %v753 = vld [vmem:[%s752] sm:%s15]
    %s754 = scalar_lea.vmem [#allocation2], 824
    %755 = vst [vmem:[%s754] sm:%s15] %v753
    %s756 = scalar_lea.vmem [#allocation0], 204
    %v757 = vld [vmem:[%s756] sm:%s15]
    %s758 = scalar_lea.vmem [#allocation2], 816
    %759 = vst [vmem:[%s758] sm:%s15] %v757
    %s760 = scalar_lea.vmem [#allocation0], 202
    %v761 = vld [vmem:[%s760] sm:%s15]
    %s762 = scalar_lea.vmem [#allocation2], 808
    %763 = vst [vmem:[%s762] sm:%s15] %v761
    %s764 = scalar_lea.vmem [#allocation0], 200
    %v765 = vld [vmem:[%s764] sm:%s15]
    %s766 = scalar_lea.vmem [#allocation2], 800
    %767 = vst [vmem:[%s766] sm:%s15] %v765
    %s768 = scalar_lea.vmem [#allocation0], 198
    %v769 = vld [vmem:[%s768] sm:%s15]
    %s770 = scalar_lea.vmem [#allocation2], 792
    %771 = vst [vmem:[%s770] sm:%s15] %v769
    %s772 = scalar_lea.vmem [#allocation0], 196
    %v773 = vld [vmem:[%s772] sm:%s15]
    %s774 = scalar_lea.vmem [#allocation2], 784
    %775 = vst [vmem:[%s774] sm:%s15] %v773
    %s776 = scalar_lea.vmem [#allocation0], 194
    %v777 = vld [vmem:[%s776] sm:%s15]
    %s778 = scalar_lea.vmem [#allocation2], 776
    %779 = vst [vmem:[%s778] sm:%s15] %v777
    %s780 = scalar_lea.vmem [#allocation0], 192
    %v781 = vld [vmem:[%s780] sm:%s15]
    %s782 = scalar_lea.vmem [#allocation2], 768
    %783 = vst [vmem:[%s782] sm:%s15] %v781
    %s784 = scalar_lea.vmem [#allocation0], 190
    %v785 = vld [vmem:[%s784] sm:%s15]
    %s786 = scalar_lea.vmem [#allocation2], 760
    %787 = vst [vmem:[%s786] sm:%s15] %v785
    %s788 = scalar_lea.vmem [#allocation0], 188
    %v789 = vld [vmem:[%s788] sm:%s15]
    %s790 = scalar_lea.vmem [#allocation2], 752
    %791 = vst [vmem:[%s790] sm:%s15] %v789
    %s792 = scalar_lea.vmem [#allocation0], 186
    %v793 = vld [vmem:[%s792] sm:%s15]
    %s794 = scalar_lea.vmem [#allocation2], 744
    %795 = vst [vmem:[%s794] sm:%s15] %v793
    %s796 = scalar_lea.vmem [#allocation0], 184
    %v797 = vld [vmem:[%s796] sm:%s15]
    %s798 = scalar_lea.vmem [#allocation2], 736
    %799 = vst [vmem:[%s798] sm:%s15] %v797
    %s800 = scalar_lea.vmem [#allocation0], 182
    %v801 = vld [vmem:[%s800] sm:%s15]
    %s802 = scalar_lea.vmem [#allocation2], 728
    %803 = vst [vmem:[%s802] sm:%s15] %v801
    %s804 = scalar_lea.vmem [#allocation0], 180
    %v805 = vld [vmem:[%s804] sm:%s15]
    %s806 = scalar_lea.vmem [#allocation2], 720
    %807 = vst [vmem:[%s806] sm:%s15] %v805
    %s808 = scalar_lea.vmem [#allocation0], 178
    %v809 = vld [vmem:[%s808] sm:%s15]
    %s810 = scalar_lea.vmem [#allocation2], 712
    %811 = vst [vmem:[%s810] sm:%s15] %v809
    %s812 = scalar_lea.vmem [#allocation0], 176
    %v813 = vld [vmem:[%s812] sm:%s15]
    %s814 = scalar_lea.vmem [#allocation2], 704
    %815 = vst [vmem:[%s814] sm:%s15] %v813
    %s816 = scalar_lea.vmem [#allocation0], 174
    %v817 = vld [vmem:[%s816] sm:%s15]
    %s818 = scalar_lea.vmem [#allocation2], 696
    %819 = vst [vmem:[%s818] sm:%s15] %v817
    %s820 = scalar_lea.vmem [#allocation0], 172
    %v821 = vld [vmem:[%s820] sm:%s15]
    %s822 = scalar_lea.vmem [#allocation2], 688
    %823 = vst [vmem:[%s822] sm:%s15] %v821
    %s824 = scalar_lea.vmem [#allocation0], 170
    %v825 = vld [vmem:[%s824] sm:%s15]
    %s826 = scalar_lea.vmem [#allocation2], 680
    %827 = vst [vmem:[%s826] sm:%s15] %v825
    %s828 = scalar_lea.vmem [#allocation0], 168
    %v829 = vld [vmem:[%s828] sm:%s15]
    %s830 = scalar_lea.vmem [#allocation2], 672
    %831 = vst [vmem:[%s830] sm:%s15] %v829
    %s832 = scalar_lea.vmem [#allocation0], 166
    %v833 = vld [vmem:[%s832] sm:%s15]
    %s834 = scalar_lea.vmem [#allocation2], 664
    %835 = vst [vmem:[%s834] sm:%s15] %v833
    %s836 = scalar_lea.vmem [#allocation0], 164
    %v837 = vld [vmem:[%s836] sm:%s15]
    %s838 = scalar_lea.vmem [#allocation2], 656
    %839 = vst [vmem:[%s838] sm:%s15] %v837
    %s840 = scalar_lea.vmem [#allocation0], 162
    %v841 = vld [vmem:[%s840] sm:%s15]
    %s842 = scalar_lea.vmem [#allocation2], 648
    %843 = vst [vmem:[%s842] sm:%s15] %v841
    %s844 = scalar_lea.vmem [#allocation0], 160
    %v845 = vld [vmem:[%s844] sm:%s15]
    %s846 = scalar_lea.vmem [#allocation2], 640
    %847 = vst [vmem:[%s846] sm:%s15] %v845
    %s848 = scalar_lea.vmem [#allocation0], 158
    %v849 = vld [vmem:[%s848] sm:%s15]
    %s850 = scalar_lea.vmem [#allocation2], 632
    %851 = vst [vmem:[%s850] sm:%s15] %v849
    %s852 = scalar_lea.vmem [#allocation0], 156
    %v853 = vld [vmem:[%s852] sm:%s15]
    %s854 = scalar_lea.vmem [#allocation2], 624
    %855 = vst [vmem:[%s854] sm:%s15] %v853
    %s856 = scalar_lea.vmem [#allocation0], 154
    %v857 = vld [vmem:[%s856] sm:%s15]
    %s858 = scalar_lea.vmem [#allocation2], 616
    %859 = vst [vmem:[%s858] sm:%s15] %v857
    %s860 = scalar_lea.vmem [#allocation0], 152
    %v861 = vld [vmem:[%s860] sm:%s15]
    %s862 = scalar_lea.vmem [#allocation2], 608
    %863 = vst [vmem:[%s862] sm:%s15] %v861
    %s864 = scalar_lea.vmem [#allocation0], 150
    %v865 = vld [vmem:[%s864] sm:%s15]
    %s866 = scalar_lea.vmem [#allocation2], 600
    %867 = vst [vmem:[%s866] sm:%s15] %v865
    %s868 = scalar_lea.vmem [#allocation0], 148
    %v869 = vld [vmem:[%s868] sm:%s15]
    %s870 = scalar_lea.vmem [#allocation2], 592
    %871 = vst [vmem:[%s870] sm:%s15] %v869
    %s872 = scalar_lea.vmem [#allocation0], 146
    %v873 = vld [vmem:[%s872] sm:%s15]
    %s874 = scalar_lea.vmem [#allocation2], 584
    %875 = vst [vmem:[%s874] sm:%s15] %v873
    %s876 = scalar_lea.vmem [#allocation0], 144
    %v877 = vld [vmem:[%s876] sm:%s15]
    %s878 = scalar_lea.vmem [#allocation2], 576
    %879 = vst [vmem:[%s878] sm:%s15] %v877
    %s880 = scalar_lea.vmem [#allocation0], 142
    %v881 = vld [vmem:[%s880] sm:%s15]
    %s882 = scalar_lea.vmem [#allocation2], 568
    %883 = vst [vmem:[%s882] sm:%s15] %v881
    %s884 = scalar_lea.vmem [#allocation0], 140
    %v885 = vld [vmem:[%s884] sm:%s15]
    %s886 = scalar_lea.vmem [#allocation2], 560
    %887 = vst [vmem:[%s886] sm:%s15] %v885
    %s888 = scalar_lea.vmem [#allocation0], 138
    %v889 = vld [vmem:[%s888] sm:%s15]
    %s890 = scalar_lea.vmem [#allocation2], 552
    %891 = vst [vmem:[%s890] sm:%s15] %v889
    %s892 = scalar_lea.vmem [#allocation0], 136
    %v893 = vld [vmem:[%s892] sm:%s15]
    %s894 = scalar_lea.vmem [#allocation2], 544
    %895 = vst [vmem:[%s894] sm:%s15] %v893
    %s896 = scalar_lea.vmem [#allocation0], 134
    %v897 = vld [vmem:[%s896] sm:%s15]
    %s898 = scalar_lea.vmem [#allocation2], 536
    %899 = vst [vmem:[%s898] sm:%s15] %v897
    %s900 = scalar_lea.vmem [#allocation0], 132
    %v901 = vld [vmem:[%s900] sm:%s15]
    %s902 = scalar_lea.vmem [#allocation2], 528
    %903 = vst [vmem:[%s902] sm:%s15] %v901
    %s904 = scalar_lea.vmem [#allocation0], 130
    %v905 = vld [vmem:[%s904] sm:%s15]
    %s906 = scalar_lea.vmem [#allocation2], 520
    %907 = vst [vmem:[%s906] sm:%s15] %v905
    %s908 = scalar_lea.vmem [#allocation0], 128
    %v909 = vld [vmem:[%s908] sm:%s15]
    %s910 = scalar_lea.vmem [#allocation2], 512
    %911 = vst [vmem:[%s910] sm:%s15] %v909
    %s912 = scalar_lea.vmem [#allocation0], 126
    %v913 = vld [vmem:[%s912] sm:%s15]
    %s914 = scalar_lea.vmem [#allocation2], 504
    %915 = vst [vmem:[%s914] sm:%s15] %v913
    %s916 = scalar_lea.vmem [#allocation0], 124
    %v917 = vld [vmem:[%s916] sm:%s15]
    %s918 = scalar_lea.vmem [#allocation2], 496
    %919 = vst [vmem:[%s918] sm:%s15] %v917
    %s920 = scalar_lea.vmem [#allocation0], 122
    %v921 = vld [vmem:[%s920] sm:%s15]
    %s922 = scalar_lea.vmem [#allocation2], 488
    %923 = vst [vmem:[%s922] sm:%s15] %v921
    %s924 = scalar_lea.vmem [#allocation0], 120
    %v925 = vld [vmem:[%s924] sm:%s15]
    %s926 = scalar_lea.vmem [#allocation2], 480
    %927 = vst [vmem:[%s926] sm:%s15] %v925
    %s928 = scalar_lea.vmem [#allocation0], 118
    %v929 = vld [vmem:[%s928] sm:%s15]
    %s930 = scalar_lea.vmem [#allocation2], 472
    %931 = vst [vmem:[%s930] sm:%s15] %v929
    %s932 = scalar_lea.vmem [#allocation0], 116
    %v933 = vld [vmem:[%s932] sm:%s15]
    %s934 = scalar_lea.vmem [#allocation2], 464
    %935 = vst [vmem:[%s934] sm:%s15] %v933
    %s936 = scalar_lea.vmem [#allocation0], 114
    %v937 = vld [vmem:[%s936] sm:%s15]
    %s938 = scalar_lea.vmem [#allocation2], 456
    %939 = vst [vmem:[%s938] sm:%s15] %v937
    %s940 = scalar_lea.vmem [#allocation0], 112
    %v941 = vld [vmem:[%s940] sm:%s15]
    %s942 = scalar_lea.vmem [#allocation2], 448
    %943 = vst [vmem:[%s942] sm:%s15] %v941
    %s944 = scalar_lea.vmem [#allocation0], 110
    %v945 = vld [vmem:[%s944] sm:%s15]
    %s946 = scalar_lea.vmem [#allocation2], 440
    %947 = vst [vmem:[%s946] sm:%s15] %v945
    %s948 = scalar_lea.vmem [#allocation0], 108
    %v949 = vld [vmem:[%s948] sm:%s15]
    %s950 = scalar_lea.vmem [#allocation2], 432
    %951 = vst [vmem:[%s950] sm:%s15] %v949
    %s952 = scalar_lea.vmem [#allocation0], 106
    %v953 = vld [vmem:[%s952] sm:%s15]
    %s954 = scalar_lea.vmem [#allocation2], 424
    %955 = vst [vmem:[%s954] sm:%s15] %v953
    %s956 = scalar_lea.vmem [#allocation0], 104
    %v957 = vld [vmem:[%s956] sm:%s15]
    %s958 = scalar_lea.vmem [#allocation2], 416
    %959 = vst [vmem:[%s958] sm:%s15] %v957
    %s960 = scalar_lea.vmem [#allocation0], 102
    %v961 = vld [vmem:[%s960] sm:%s15]
    %s962 = scalar_lea.vmem [#allocation2], 408
    %963 = vst [vmem:[%s962] sm:%s15] %v961
    %s964 = scalar_lea.vmem [#allocation0], 100
    %v965 = vld [vmem:[%s964] sm:%s15]
    %s966 = scalar_lea.vmem [#allocation2], 400
    %967 = vst [vmem:[%s966] sm:%s15] %v965
    %s968 = scalar_lea.vmem [#allocation0], 98
    %v969 = vld [vmem:[%s968] sm:%s15]
    %s970 = scalar_lea.vmem [#allocation2], 392
    %971 = vst [vmem:[%s970] sm:%s15] %v969
    %s972 = scalar_lea.vmem [#allocation0], 96
    %v973 = vld [vmem:[%s972] sm:%s15]
    %s974 = scalar_lea.vmem [#allocation2], 384
    %975 = vst [vmem:[%s974] sm:%s15] %v973
    %s976 = scalar_lea.vmem [#allocation0], 94
    %v977 = vld [vmem:[%s976] sm:%s15]
    %s978 = scalar_lea.vmem [#allocation2], 376
    %979 = vst [vmem:[%s978] sm:%s15] %v977
    %s980 = scalar_lea.vmem [#allocation0], 92
    %v981 = vld [vmem:[%s980] sm:%s15]
    %s982 = scalar_lea.vmem [#allocation2], 368
    %983 = vst [vmem:[%s982] sm:%s15] %v981
    %s984 = scalar_lea.vmem [#allocation0], 90
    %v985 = vld [vmem:[%s984] sm:%s15]
    %s986 = scalar_lea.vmem [#allocation2], 360
    %987 = vst [vmem:[%s986] sm:%s15] %v985
    %s988 = scalar_lea.vmem [#allocation0], 88
    %v989 = vld [vmem:[%s988] sm:%s15]
    %s990 = scalar_lea.vmem [#allocation2], 352
    %991 = vst [vmem:[%s990] sm:%s15] %v989
    %s992 = scalar_lea.vmem [#allocation0], 86
    %v993 = vld [vmem:[%s992] sm:%s15]
    %s994 = scalar_lea.vmem [#allocation2], 344
    %995 = vst [vmem:[%s994] sm:%s15] %v993
    %s996 = scalar_lea.vmem [#allocation0], 84
    %v997 = vld [vmem:[%s996] sm:%s15]
    %s998 = scalar_lea.vmem [#allocation2], 336
    %999 = vst [vmem:[%s998] sm:%s15] %v997
    %s1000 = scalar_lea.vmem [#allocation0], 82
    %v1001 = vld [vmem:[%s1000] sm:%s15]
    %s1002 = scalar_lea.vmem [#allocation2], 328
    %1003 = vst [vmem:[%s1002] sm:%s15] %v1001
    %s1004 = scalar_lea.vmem [#allocation0], 80
    %v1005 = vld [vmem:[%s1004] sm:%s15]
    %s1006 = scalar_lea.vmem [#allocation2], 320
    %1007 = vst [vmem:[%s1006] sm:%s15] %v1005
    %s1008 = scalar_lea.vmem [#allocation0], 78
    %v1009 = vld [vmem:[%s1008] sm:%s15]
    %s1010 = scalar_lea.vmem [#allocation2], 312
    %1011 = vst [vmem:[%s1010] sm:%s15] %v1009
    %s1012 = scalar_lea.vmem [#allocation0], 76
    %v1013 = vld [vmem:[%s1012] sm:%s15]
    %s1014 = scalar_lea.vmem [#allocation2], 304
    %1015 = vst [vmem:[%s1014] sm:%s15] %v1013
    %s1016 = scalar_lea.vmem [#allocation0], 74
    %v1017 = vld [vmem:[%s1016] sm:%s15]
    %s1018 = scalar_lea.vmem [#allocation2], 296
    %1019 = vst [vmem:[%s1018] sm:%s15] %v1017
    %s1020 = scalar_lea.vmem [#allocation0], 72
    %v1021 = vld [vmem:[%s1020] sm:%s15]
    %s1022 = scalar_lea.vmem [#allocation2], 288
    %1023 = vst [vmem:[%s1022] sm:%s15] %v1021
    %s1024 = scalar_lea.vmem [#allocation0], 70
    %v1025 = vld [vmem:[%s1024] sm:%s15]
    %s1026 = scalar_lea.vmem [#allocation2], 280
    %1027 = vst [vmem:[%s1026] sm:%s15] %v1025
    %s1028 = scalar_lea.vmem [#allocation0], 68
    %v1029 = vld [vmem:[%s1028] sm:%s15]
    %s1030 = scalar_lea.vmem [#allocation2], 272
    %1031 = vst [vmem:[%s1030] sm:%s15] %v1029
    %s1032 = scalar_lea.vmem [#allocation0], 66
    %v1033 = vld [vmem:[%s1032] sm:%s15]
    %s1034 = scalar_lea.vmem [#allocation2], 264
    %1035 = vst [vmem:[%s1034] sm:%s15] %v1033
    %s1036 = scalar_lea.vmem [#allocation0], 64
    %v1037 = vld [vmem:[%s1036] sm:%s15]
    %s1038 = scalar_lea.vmem [#allocation2], 256
    %1039 = vst [vmem:[%s1038] sm:%s15] %v1037
    %s1040 = scalar_lea.vmem [#allocation0], 62
    %v1041 = vld [vmem:[%s1040] sm:%s15]
    %s1042 = scalar_lea.vmem [#allocation2], 248
    %1043 = vst [vmem:[%s1042] sm:%s15] %v1041
    %s1044 = scalar_lea.vmem [#allocation0], 60
    %v1045 = vld [vmem:[%s1044] sm:%s15]
    %s1046 = scalar_lea.vmem [#allocation2], 240
    %1047 = vst [vmem:[%s1046] sm:%s15] %v1045
    %s1048 = scalar_lea.vmem [#allocation0], 58
    %v1049 = vld [vmem:[%s1048] sm:%s15]
    %s1050 = scalar_lea.vmem [#allocation2], 232
    %1051 = vst [vmem:[%s1050] sm:%s15] %v1049
    %s1052 = scalar_lea.vmem [#allocation0], 56
    %v1053 = vld [vmem:[%s1052] sm:%s15]
    %s1054 = scalar_lea.vmem [#allocation2], 224
    %1055 = vst [vmem:[%s1054] sm:%s15] %v1053
    %s1056 = scalar_lea.vmem [#allocation0], 54
    %v1057 = vld [vmem:[%s1056] sm:%s15]
    %s1058 = scalar_lea.vmem [#allocation2], 216
    %1059 = vst [vmem:[%s1058] sm:%s15] %v1057
    %s1060 = scalar_lea.vmem [#allocation0], 52
    %v1061 = vld [vmem:[%s1060] sm:%s15]
    %s1062 = scalar_lea.vmem [#allocation2], 208
    %1063 = vst [vmem:[%s1062] sm:%s15] %v1061
    %s1064 = scalar_lea.vmem [#allocation0], 50
    %v1065 = vld [vmem:[%s1064] sm:%s15]
    %s1066 = scalar_lea.vmem [#allocation2], 200
    %1067 = vst [vmem:[%s1066] sm:%s15] %v1065
    %s1068 = scalar_lea.vmem [#allocation0], 48
    %v1069 = vld [vmem:[%s1068] sm:%s15]
    %s1070 = scalar_lea.vmem [#allocation2], 192
    %1071 = vst [vmem:[%s1070] sm:%s15] %v1069
    %s1072 = scalar_lea.vmem [#allocation0], 46
    %v1073 = vld [vmem:[%s1072] sm:%s15]
    %s1074 = scalar_lea.vmem [#allocation2], 184
    %1075 = vst [vmem:[%s1074] sm:%s15] %v1073
    %s1076 = scalar_lea.vmem [#allocation0], 44
    %v1077 = vld [vmem:[%s1076] sm:%s15]
    %s1078 = scalar_lea.vmem [#allocation2], 176
    %1079 = vst [vmem:[%s1078] sm:%s15] %v1077
    %s1080 = scalar_lea.vmem [#allocation0], 42
    %v1081 = vld [vmem:[%s1080] sm:%s15]
    %s1082 = scalar_lea.vmem [#allocation2], 168
    %1083 = vst [vmem:[%s1082] sm:%s15] %v1081
    %s1084 = scalar_lea.vmem [#allocation0], 40
    %v1085 = vld [vmem:[%s1084] sm:%s15]
    %s1086 = scalar_lea.vmem [#allocation2], 160
    %1087 = vst [vmem:[%s1086] sm:%s15] %v1085
    %s1088 = scalar_lea.vmem [#allocation0], 38
    %v1089 = vld [vmem:[%s1088] sm:%s15]
    %s1090 = scalar_lea.vmem [#allocation2], 152
    %1091 = vst [vmem:[%s1090] sm:%s15] %v1089
    %s1092 = scalar_lea.vmem [#allocation0], 36
    %v1093 = vld [vmem:[%s1092] sm:%s15]
    %s1094 = scalar_lea.vmem [#allocation2], 144
    %1095 = vst [vmem:[%s1094] sm:%s15] %v1093
    %s1096 = scalar_lea.vmem [#allocation0], 34
    %v1097 = vld [vmem:[%s1096] sm:%s15]
    %s1098 = scalar_lea.vmem [#allocation2], 136
    %1099 = vst [vmem:[%s1098] sm:%s15] %v1097
    %s1100 = scalar_lea.vmem [#allocation0], 32
    %v1101 = vld [vmem:[%s1100] sm:%s15]
    %s1102 = scalar_lea.vmem [#allocation2], 128
    %1103 = vst [vmem:[%s1102] sm:%s15] %v1101
    %s1104 = scalar_lea.vmem [#allocation0], 30
    %v1105 = vld [vmem:[%s1104] sm:%s15]
    %s1106 = scalar_lea.vmem [#allocation2], 120
    %1107 = vst [vmem:[%s1106] sm:%s15] %v1105
    %s1108 = scalar_lea.vmem [#allocation0], 28
    %v1109 = vld [vmem:[%s1108] sm:%s15]
    %s1110 = scalar_lea.vmem [#allocation2], 112
    %1111 = vst [vmem:[%s1110] sm:%s15] %v1109
    %s1112 = scalar_lea.vmem [#allocation0], 26
    %v1113 = vld [vmem:[%s1112] sm:%s15]
    %s1114 = scalar_lea.vmem [#allocation2], 104
    %1115 = vst [vmem:[%s1114] sm:%s15] %v1113
    %s1116 = scalar_lea.vmem [#allocation0], 24
    %v1117 = vld [vmem:[%s1116] sm:%s15]
    %s1118 = scalar_lea.vmem [#allocation2], 96
    %1119 = vst [vmem:[%s1118] sm:%s15] %v1117
    %s1120 = scalar_lea.vmem [#allocation0], 22
    %v1121 = vld [vmem:[%s1120] sm:%s15]
    %s1122 = scalar_lea.vmem [#allocation2], 88
    %1123 = vst [vmem:[%s1122] sm:%s15] %v1121
    %s1124 = scalar_lea.vmem [#allocation0], 20
    %v1125 = vld [vmem:[%s1124] sm:%s15]
    %s1126 = scalar_lea.vmem [#allocation2], 80
    %1127 = vst [vmem:[%s1126] sm:%s15] %v1125
    %s1128 = scalar_lea.vmem [#allocation0], 18
    %v1129 = vld [vmem:[%s1128] sm:%s15]
    %s1130 = scalar_lea.vmem [#allocation2], 72
    %1131 = vst [vmem:[%s1130] sm:%s15] %v1129
    %s1132 = scalar_lea.vmem [#allocation0], 16
    %v1133 = vld [vmem:[%s1132] sm:%s15]
    %s1134 = scalar_lea.vmem [#allocation2], 64
    %1135 = vst [vmem:[%s1134] sm:%s15] %v1133
    %s1136 = scalar_lea.vmem [#allocation0], 14
    %v1137 = vld [vmem:[%s1136] sm:%s15]
    %s1138 = scalar_lea.vmem [#allocation2], 56
    %1139 = vst [vmem:[%s1138] sm:%s15] %v1137
    %s1140 = scalar_lea.vmem [#allocation0], 12
    %v1141 = vld [vmem:[%s1140] sm:%s15]
    %s1142 = scalar_lea.vmem [#allocation2], 48
    %1143 = vst [vmem:[%s1142] sm:%s15] %v1141
    %s1144 = scalar_lea.vmem [#allocation0], 10
    %v1145 = vld [vmem:[%s1144] sm:%s15]
    %s1146 = scalar_lea.vmem [#allocation2], 40
    %1147 = vst [vmem:[%s1146] sm:%s15] %v1145
    %s1148 = scalar_lea.vmem [#allocation0], 8
    %v1149 = vld [vmem:[%s1148] sm:%s15]
    %s1150 = scalar_lea.vmem [#allocation2], 32
    %1151 = vst [vmem:[%s1150] sm:%s15] %v1149
    %s1152 = scalar_lea.vmem [#allocation0], 6
    %v1153 = vld [vmem:[%s1152] sm:%s15]
    %s1154 = scalar_lea.vmem [#allocation2], 24
    %1155 = vst [vmem:[%s1154] sm:%s15] %v1153
    %s1156 = scalar_lea.vmem [#allocation0], 4
    %v1157 = vld [vmem:[%s1156] sm:%s15]
    %s1158 = scalar_lea.vmem [#allocation2], 16
    %1159 = vst [vmem:[%s1158] sm:%s15] %v1157
    %s1160 = scalar_lea.vmem [#allocation0], 2
    %v1161 = vld [vmem:[%s1160] sm:%s15]
    %s1162 = scalar_lea.vmem [#allocation2], 8
    %1163 = vst [vmem:[%s1162] sm:%s15] %v1161
    %v1164 = vld [vmem:[#allocation0] sm:%s15]
    %1165 = vst [vmem:[#allocation2] sm:%s15] %v1164
    %s1166 = scalar_lea.vmem [#allocation2], 8
    %s1167 = smov 3
    %v1168 = vld [vmem:[%s1166] ss:$16 sm:%s1167]
    %s1169 = scalar_lea.vmem [#allocation2], 8
    %s1170 = smov 12
    %v1171 = vld [vmem:[%s1169] ss:$16 sm:%s1170]
    %vm1172 = vcmask 1043458
    %v1173 = vsel %vm1172, %v1171, %v1168
    %s1174 = scalar_lea.vmem [#allocation2], 8
    %s1175 = smov 48
    %v1176 = vld [vmem:[%s1174] ss:$16 sm:%s1175]
    %vm1177 = vcmask 1045508
    %v1178 = vsel %vm1177, %v1176, %v1173
    %s1179 = scalar_lea.vmem [#allocation2], 8
    %s1180 = smov 192
    %v1181 = vld [vmem:[%s1179] ss:$16 sm:%s1180]
    %vm1182 = vcmask 1047558
    %v1183 = vsel %vm1182, %v1181, %v1178
    %vm1184 = vcmask 523264
    %s1185 = scalar_lea.vmem %s1, 8
    %1186 = vst.msk [vmem:[%s1185] sm:$0xff] %vm1184, %v1183
    %s1187 = scalar_lea.vmem [#allocation2], 136
    %s1188 = smov 3
    %v1189 = vld [vmem:[%s1187] ss:$16 sm:%s1188]
    %s1190 = scalar_lea.vmem [#allocation2], 136
    %s1191 = smov 12
    %v1192 = vld [vmem:[%s1190] ss:$16 sm:%s1191]
    %vm1193 = vcmask 1043458
    %v1194 = vsel %vm1193, %v1192, %v1189
    %s1195 = scalar_lea.vmem [#allocation2], 136
    %s1196 = smov 48
    %v1197 = vld [vmem:[%s1195] ss:$16 sm:%s1196]
    %vm1198 = vcmask 1045508
    %v1199 = vsel %vm1198, %v1197, %v1194
    %s1200 = scalar_lea.vmem [#allocation2], 136
    %s1201 = smov 192
    %v1202 = vld [vmem:[%s1200] ss:$16 sm:%s1201]
    %vm1203 = vcmask 1047558
    %v1204 = vsel %vm1203, %v1202, %v1199
    %vm1205 = vcmask 523264
    %s1206 = scalar_lea.vmem %s1, 32
    %1207 = vst.msk [vmem:[%s1206] sm:$0xff] %vm1205, %v1204
    %s1208 = scalar_lea.vmem [#allocation2], 264
    %s1209 = smov 3
    %v1210 = vld [vmem:[%s1208] ss:$16 sm:%s1209]
    %s1211 = scalar_lea.vmem [#allocation2], 264
    %s1212 = smov 12
    %v1213 = vld [vmem:[%s1211] ss:$16 sm:%s1212]
    %vm1214 = vcmask 1043458
    %v1215 = vsel %vm1214, %v1213, %v1210
    %s1216 = scalar_lea.vmem [#allocation2], 264
    %s1217 = smov 48
    %v1218 = vld [vmem:[%s1216] ss:$16 sm:%s1217]
    %vm1219 = vcmask 1045508
    %v1220 = vsel %vm1219, %v1218, %v1215
    %s1221 = scalar_lea.vmem [#allocation2], 264
    %s1222 = smov 192
    %v1223 = vld [vmem:[%s1221] ss:$16 sm:%s1222]
    %vm1224 = vcmask 1047558
    %v1225 = vsel %vm1224, %v1223, %v1220
    %vm1226 = vcmask 523264
    %s1227 = scalar_lea.vmem %s1, 56
    %1228 = vst.msk [vmem:[%s1227] sm:$0xff] %vm1226, %v1225
    %s1229 = scalar_lea.vmem [#allocation2], 392
    %s1230 = smov 3
    %v1231 = vld [vmem:[%s1229] ss:$16 sm:%s1230]
    %s1232 = scalar_lea.vmem [#allocation2], 392
    %s1233 = smov 12
    %v1234 = vld [vmem:[%s1232] ss:$16 sm:%s1233]
    %vm1235 = vcmask 1043458
    %v1236 = vsel %vm1235, %v1234, %v1231
    %s1237 = scalar_lea.vmem [#allocation2], 392
    %s1238 = smov 48
    %v1239 = vld [vmem:[%s1237] ss:$16 sm:%s1238]
    %vm1240 = vcmask 1045508
    %v1241 = vsel %vm1240, %v1239, %v1236
    %s1242 = scalar_lea.vmem [#allocation2], 392
    %s1243 = smov 192
    %v1244 = vld [vmem:[%s1242] ss:$16 sm:%s1243]
    %vm1245 = vcmask 1047558
    %v1246 = vsel %vm1245, %v1244, %v1241
    %vm1247 = vcmask 523264
    %s1248 = scalar_lea.vmem %s1, 80
    %1249 = vst.msk [vmem:[%s1248] sm:$0xff] %vm1247, %v1246
    %s1250 = scalar_lea.vmem [#allocation2], 520
    %s1251 = smov 3
    %v1252 = vld [vmem:[%s1250] ss:$16 sm:%s1251]
    %s1253 = scalar_lea.vmem [#allocation2], 520
    %s1254 = smov 12
    %v1255 = vld [vmem:[%s1253] ss:$16 sm:%s1254]
    %vm1256 = vcmask 1043458
    %v1257 = vsel %vm1256, %v1255, %v1252
    %s1258 = scalar_lea.vmem [#allocation2], 520
    %s1259 = smov 48
    %v1260 = vld [vmem:[%s1258] ss:$16 sm:%s1259]
    %vm1261 = vcmask 1045508
    %v1262 = vsel %vm1261, %v1260, %v1257
    %s1263 = scalar_lea.vmem [#allocation2], 520
    %s1264 = smov 192
    %v1265 = vld [vmem:[%s1263] ss:$16 sm:%s1264]
    %vm1266 = vcmask 1047558
    %v1267 = vsel %vm1266, %v1265, %v1262
    %vm1268 = vcmask 523264
    %s1269 = scalar_lea.vmem %s1, 104
    %1270 = vst.msk [vmem:[%s1269] sm:$0xff] %vm1268, %v1267
    %s1271 = scalar_lea.vmem [#allocation2], 648
    %s1272 = smov 3
    %v1273 = vld [vmem:[%s1271] ss:$16 sm:%s1272]
    %s1274 = scalar_lea.vmem [#allocation2], 648
    %s1275 = smov 12
    %v1276 = vld [vmem:[%s1274] ss:$16 sm:%s1275]
    %vm1277 = vcmask 1043458
    %v1278 = vsel %vm1277, %v1276, %v1273
    %s1279 = scalar_lea.vmem [#allocation2], 648
    %s1280 = smov 48
    %v1281 = vld [vmem:[%s1279] ss:$16 sm:%s1280]
    %vm1282 = vcmask 1045508
    %v1283 = vsel %vm1282, %v1281, %v1278
    %s1284 = scalar_lea.vmem [#allocation2], 648
    %s1285 = smov 192
    %v1286 = vld [vmem:[%s1284] ss:$16 sm:%s1285]
    %vm1287 = vcmask 1047558
    %v1288 = vsel %vm1287, %v1286, %v1283
    %vm1289 = vcmask 523264
    %s1290 = scalar_lea.vmem %s1, 128
    %1291 = vst.msk [vmem:[%s1290] sm:$0xff] %vm1289, %v1288
    %s1292 = scalar_lea.vmem [#allocation2], 776
    %s1293 = smov 3
    %v1294 = vld [vmem:[%s1292] ss:$16 sm:%s1293]
    %s1295 = scalar_lea.vmem [#allocation2], 776
    %s1296 = smov 12
    %v1297 = vld [vmem:[%s1295] ss:$16 sm:%s1296]
    %vm1298 = vcmask 1043458
    %v1299 = vsel %vm1298, %v1297, %v1294
    %s1300 = scalar_lea.vmem [#allocation2], 776
    %s1301 = smov 48
    %v1302 = vld [vmem:[%s1300] ss:$16 sm:%s1301]
    %vm1303 = vcmask 1045508
    %v1304 = vsel %vm1303, %v1302, %v1299
    %s1305 = scalar_lea.vmem [#allocation2], 776
    %s1306 = smov 192
    %v1307 = vld [vmem:[%s1305] ss:$16 sm:%s1306]
    %vm1308 = vcmask 1047558
    %v1309 = vsel %vm1308, %v1307, %v1304
    %vm1310 = vcmask 523264
    %s1311 = scalar_lea.vmem %s1, 152
    %1312 = vst.msk [vmem:[%s1311] sm:$0xff] %vm1310, %v1309
    %s1313 = scalar_lea.vmem [#allocation2], 904
    %s1314 = smov 3
    %v1315 = vld [vmem:[%s1313] ss:$16 sm:%s1314]
    %s1316 = scalar_lea.vmem [#allocation2], 904
    %s1317 = smov 12
    %v1318 = vld [vmem:[%s1316] ss:$16 sm:%s1317]
    %vm1319 = vcmask 1043458
    %v1320 = vsel %vm1319, %v1318, %v1315
    %s1321 = scalar_lea.vmem [#allocation2], 904
    %s1322 = smov 48
    %v1323 = vld [vmem:[%s1321] ss:$16 sm:%s1322]
    %vm1324 = vcmask 1045508
    %v1325 = vsel %vm1324, %v1323, %v1320
    %s1326 = scalar_lea.vmem [#allocation2], 904
    %s1327 = smov 192
    %v1328 = vld [vmem:[%s1326] ss:$16 sm:%s1327]
    %vm1329 = vcmask 1047558
    %v1330 = vsel %vm1329, %v1328, %v1325
    %vm1331 = vcmask 523264
    %s1332 = scalar_lea.vmem %s1, 176
    %1333 = vst.msk [vmem:[%s1332] sm:$0xff] %vm1331, %v1330
    %s1334 = scalar_lea.vmem [#allocation2], 1032
    %s1335 = smov 3
    %v1336 = vld [vmem:[%s1334] ss:$16 sm:%s1335]
    %s1337 = scalar_lea.vmem [#allocation2], 1032
    %s1338 = smov 12
    %v1339 = vld [vmem:[%s1337] ss:$16 sm:%s1338]
    %vm1340 = vcmask 1043458
    %v1341 = vsel %vm1340, %v1339, %v1336
    %s1342 = scalar_lea.vmem [#allocation2], 1032
    %s1343 = smov 48
    %v1344 = vld [vmem:[%s1342] ss:$16 sm:%s1343]
    %vm1345 = vcmask 1045508
    %v1346 = vsel %vm1345, %v1344, %v1341
    %s1347 = scalar_lea.vmem [#allocation2], 1032
    %s1348 = smov 192
    %v1349 = vld [vmem:[%s1347] ss:$16 sm:%s1348]
    %vm1350 = vcmask 1047558
    %v1351 = vsel %vm1350, %v1349, %v1346
    %vm1352 = vcmask 523264
    %s1353 = scalar_lea.vmem %s1, 200
    %1354 = vst.msk [vmem:[%s1353] sm:$0xff] %vm1352, %v1351
    %s1355 = scalar_lea.vmem [#allocation2], 1160
    %s1356 = smov 3
    %v1357 = vld [vmem:[%s1355] ss:$16 sm:%s1356]
    %s1358 = scalar_lea.vmem [#allocation2], 1160
    %s1359 = smov 12
    %v1360 = vld [vmem:[%s1358] ss:$16 sm:%s1359]
    %vm1361 = vcmask 1043458
    %v1362 = vsel %vm1361, %v1360, %v1357
    %s1363 = scalar_lea.vmem [#allocation2], 1160
    %s1364 = smov 48
    %v1365 = vld [vmem:[%s1363] ss:$16 sm:%s1364]
    %vm1366 = vcmask 1045508
    %v1367 = vsel %vm1366, %v1365, %v1362
    %s1368 = scalar_lea.vmem [#allocation2], 1160
    %s1369 = smov 192
    %v1370 = vld [vmem:[%s1368] ss:$16 sm:%s1369]
    %vm1371 = vcmask 1047558
    %v1372 = vsel %vm1371, %v1370, %v1367
    %vm1373 = vcmask 523264
    %s1374 = scalar_lea.vmem %s1, 224
    %1375 = vst.msk [vmem:[%s1374] sm:$0xff] %vm1373, %v1372
    %s1376 = scalar_lea.vmem [#allocation2], 1288
    %s1377 = smov 3
    %v1378 = vld [vmem:[%s1376] ss:$16 sm:%s1377]
    %s1379 = scalar_lea.vmem [#allocation2], 1288
    %s1380 = smov 12
    %v1381 = vld [vmem:[%s1379] ss:$16 sm:%s1380]
    %vm1382 = vcmask 1043458
    %v1383 = vsel %vm1382, %v1381, %v1378
    %s1384 = scalar_lea.vmem [#allocation2], 1288
    %s1385 = smov 48
    %v1386 = vld [vmem:[%s1384] ss:$16 sm:%s1385]
    %vm1387 = vcmask 1045508
    %v1388 = vsel %vm1387, %v1386, %v1383
    %s1389 = scalar_lea.vmem [#allocation2], 1288
    %s1390 = smov 192
    %v1391 = vld [vmem:[%s1389] ss:$16 sm:%s1390]
    %vm1392 = vcmask 1047558
    %v1393 = vsel %vm1392, %v1391, %v1388
    %vm1394 = vcmask 523264
    %s1395 = scalar_lea.vmem %s1, 248
    %1396 = vst.msk [vmem:[%s1395] sm:$0xff] %vm1394, %v1393
    %s1397 = scalar_lea.vmem [#allocation2], 1416
    %s1398 = smov 3
    %v1399 = vld [vmem:[%s1397] ss:$16 sm:%s1398]
    %s1400 = scalar_lea.vmem [#allocation2], 1416
    %s1401 = smov 12
    %v1402 = vld [vmem:[%s1400] ss:$16 sm:%s1401]
    %vm1403 = vcmask 1043458
    %v1404 = vsel %vm1403, %v1402, %v1399
    %s1405 = scalar_lea.vmem [#allocation2], 1416
    %s1406 = smov 48
    %v1407 = vld [vmem:[%s1405] ss:$16 sm:%s1406]
    %vm1408 = vcmask 1045508
    %v1409 = vsel %vm1408, %v1407, %v1404
    %s1410 = scalar_lea.vmem [#allocation2], 1416
    %s1411 = smov 192
    %v1412 = vld [vmem:[%s1410] ss:$16 sm:%s1411]
    %vm1413 = vcmask 1047558
    %v1414 = vsel %vm1413, %v1412, %v1409
    %vm1415 = vcmask 523264
    %s1416 = scalar_lea.vmem %s1, 272
    %1417 = vst.msk [vmem:[%s1416] sm:$0xff] %vm1415, %v1414
    %s1418 = scalar_lea.vmem [#allocation2], 1544
    %s1419 = smov 3
    %v1420 = vld [vmem:[%s1418] ss:$16 sm:%s1419]
    %s1421 = scalar_lea.vmem [#allocation2], 1544
    %s1422 = smov 12
    %v1423 = vld [vmem:[%s1421] ss:$16 sm:%s1422]
    %vm1424 = vcmask 1043458
    %v1425 = vsel %vm1424, %v1423, %v1420
    %s1426 = scalar_lea.vmem [#allocation2], 1544
    %s1427 = smov 48
    %v1428 = vld [vmem:[%s1426] ss:$16 sm:%s1427]
    %vm1429 = vcmask 1045508
    %v1430 = vsel %vm1429, %v1428, %v1425
    %s1431 = scalar_lea.vmem [#allocation2], 1544
    %s1432 = smov 192
    %v1433 = vld [vmem:[%s1431] ss:$16 sm:%s1432]
    %vm1434 = vcmask 1047558
    %v1435 = vsel %vm1434, %v1433, %v1430
    %vm1436 = vcmask 523264
    %s1437 = scalar_lea.vmem %s1, 296
    %1438 = vst.msk [vmem:[%s1437] sm:$0xff] %vm1436, %v1435
    %s1439 = scalar_lea.vmem [#allocation2], 1672
    %s1440 = smov 3
    %v1441 = vld [vmem:[%s1439] ss:$16 sm:%s1440]
    %s1442 = scalar_lea.vmem [#allocation2], 1672
    %s1443 = smov 12
    %v1444 = vld [vmem:[%s1442] ss:$16 sm:%s1443]
    %vm1445 = vcmask 1043458
    %v1446 = vsel %vm1445, %v1444, %v1441
    %s1447 = scalar_lea.vmem [#allocation2], 1672
    %s1448 = smov 48
    %v1449 = vld [vmem:[%s1447] ss:$16 sm:%s1448]
    %vm1450 = vcmask 1045508
    %v1451 = vsel %vm1450, %v1449, %v1446
    %s1452 = scalar_lea.vmem [#allocation2], 1672
    %s1453 = smov 192
    %v1454 = vld [vmem:[%s1452] ss:$16 sm:%s1453]
    %vm1455 = vcmask 1047558
    %v1456 = vsel %vm1455, %v1454, %v1451
    %vm1457 = vcmask 523264
    %s1458 = scalar_lea.vmem %s1, 320
    %1459 = vst.msk [vmem:[%s1458] sm:$0xff] %vm1457, %v1456
    %s1460 = scalar_lea.vmem [#allocation2], 1800
    %s1461 = smov 3
    %v1462 = vld [vmem:[%s1460] ss:$16 sm:%s1461]
    %s1463 = scalar_lea.vmem [#allocation2], 1800
    %s1464 = smov 12
    %v1465 = vld [vmem:[%s1463] ss:$16 sm:%s1464]
    %vm1466 = vcmask 1043458
    %v1467 = vsel %vm1466, %v1465, %v1462
    %s1468 = scalar_lea.vmem [#allocation2], 1800
    %s1469 = smov 48
    %v1470 = vld [vmem:[%s1468] ss:$16 sm:%s1469]
    %vm1471 = vcmask 1045508
    %v1472 = vsel %vm1471, %v1470, %v1467
    %s1473 = scalar_lea.vmem [#allocation2], 1800
    %s1474 = smov 192
    %v1475 = vld [vmem:[%s1473] ss:$16 sm:%s1474]
    %vm1476 = vcmask 1047558
    %v1477 = vsel %vm1476, %v1475, %v1472
    %vm1478 = vcmask 523264
    %s1479 = scalar_lea.vmem %s1, 344
    %1480 = vst.msk [vmem:[%s1479] sm:$0xff] %vm1478, %v1477
    %s1481 = scalar_lea.vmem [#allocation2], 1928
    %s1482 = smov 3
    %v1483 = vld [vmem:[%s1481] ss:$16 sm:%s1482]
    %s1484 = scalar_lea.vmem [#allocation2], 1928
    %s1485 = smov 12
    %v1486 = vld [vmem:[%s1484] ss:$16 sm:%s1485]
    %vm1487 = vcmask 1043458
    %v1488 = vsel %vm1487, %v1486, %v1483
    %s1489 = scalar_lea.vmem [#allocation2], 1928
    %s1490 = smov 48
    %v1491 = vld [vmem:[%s1489] ss:$16 sm:%s1490]
    %vm1492 = vcmask 1045508
    %v1493 = vsel %vm1492, %v1491, %v1488
    %s1494 = scalar_lea.vmem [#allocation2], 1928
    %s1495 = smov 192
    %v1496 = vld [vmem:[%s1494] ss:$16 sm:%s1495]
    %vm1497 = vcmask 1047558
    %v1498 = vsel %vm1497, %v1496, %v1493
    %vm1499 = vcmask 523264
    %s1500 = scalar_lea.vmem %s1, 368
    %1501 = vst.msk [vmem:[%s1500] sm:$0xff] %vm1499, %v1498
    %s1502 = scalar_lea.vmem [#allocation2], 2056
    %s1503 = smov 3
    %v1504 = vld [vmem:[%s1502] ss:$16 sm:%s1503]
    %s1505 = scalar_lea.vmem [#allocation2], 2056
    %s1506 = smov 12
    %v1507 = vld [vmem:[%s1505] ss:$16 sm:%s1506]
    %vm1508 = vcmask 1043458
    %v1509 = vsel %vm1508, %v1507, %v1504
    %s1510 = scalar_lea.vmem [#allocation2], 2056
    %s1511 = smov 48
    %v1512 = vld [vmem:[%s1510] ss:$16 sm:%s1511]
    %vm1513 = vcmask 1045508
    %v1514 = vsel %vm1513, %v1512, %v1509
    %s1515 = scalar_lea.vmem [#allocation2], 2056
    %s1516 = smov 192
    %v1517 = vld [vmem:[%s1515] ss:$16 sm:%s1516]
    %vm1518 = vcmask 1047558
    %v1519 = vsel %vm1518, %v1517, %v1514
    %vm1520 = vcmask 523264
    %s1521 = scalar_lea.vmem %s1, 392
    %1522 = vst.msk [vmem:[%s1521] sm:$0xff] %vm1520, %v1519
    %s1523 = scalar_lea.vmem [#allocation2], 2184
    %s1524 = smov 3
    %v1525 = vld [vmem:[%s1523] ss:$16 sm:%s1524]
    %s1526 = scalar_lea.vmem [#allocation2], 2184
    %s1527 = smov 12
    %v1528 = vld [vmem:[%s1526] ss:$16 sm:%s1527]
    %vm1529 = vcmask 1043458
    %v1530 = vsel %vm1529, %v1528, %v1525
    %s1531 = scalar_lea.vmem [#allocation2], 2184
    %s1532 = smov 48
    %v1533 = vld [vmem:[%s1531] ss:$16 sm:%s1532]
    %vm1534 = vcmask 1045508
    %v1535 = vsel %vm1534, %v1533, %v1530
    %s1536 = scalar_lea.vmem [#allocation2], 2184
    %s1537 = smov 192
    %v1538 = vld [vmem:[%s1536] ss:$16 sm:%s1537]
    %vm1539 = vcmask 1047558
    %v1540 = vsel %vm1539, %v1538, %v1535
    %vm1541 = vcmask 523264
    %s1542 = scalar_lea.vmem %s1, 416
    %1543 = vst.msk [vmem:[%s1542] sm:$0xff] %vm1541, %v1540
    %s1544 = smov 3
    %v1545 = vld [vmem:[#allocation2] ss:$16 sm:%s1544]
    %s1546 = smov 12
    %v1547 = vld [vmem:[#allocation2] ss:$16 sm:%s1546]
    %vm1548 = vcmask 1043458
    %v1549 = vsel %vm1548, %v1547, %v1545
    %s1550 = smov 48
    %v1551 = vld [vmem:[#allocation2] ss:$16 sm:%s1550]
    %vm1552 = vcmask 1045508
    %v1553 = vsel %vm1552, %v1551, %v1549
    %s1554 = smov 192
    %v1555 = vld [vmem:[#allocation2] ss:$16 sm:%s1554]
    %vm1556 = vcmask 1047558
    %v1557 = vsel %vm1556, %v1555, %v1553
    %1558 = vst [vmem:[%s1] sm:$0xff] %v1557
    %s1559 = scalar_lea.vmem [#allocation2], 128
    %s1560 = smov 3
    %v1561 = vld [vmem:[%s1559] ss:$16 sm:%s1560]
    %s1562 = scalar_lea.vmem [#allocation2], 128
    %s1563 = smov 12
    %v1564 = vld [vmem:[%s1562] ss:$16 sm:%s1563]
    %vm1565 = vcmask 1043458
    %v1566 = vsel %vm1565, %v1564, %v1561
    %s1567 = scalar_lea.vmem [#allocation2], 128
    %s1568 = smov 48
    %v1569 = vld [vmem:[%s1567] ss:$16 sm:%s1568]
    %vm1570 = vcmask 1045508
    %v1571 = vsel %vm1570, %v1569, %v1566
    %s1572 = scalar_lea.vmem [#allocation2], 128
    %s1573 = smov 192
    %v1574 = vld [vmem:[%s1572] ss:$16 sm:%s1573]
    %vm1575 = vcmask 1047558
    %v1576 = vsel %vm1575, %v1574, %v1571
    %s1577 = scalar_lea.vmem %s1, 24
    %1578 = vst [vmem:[%s1577] sm:$0xff] %v1576
    %s1579 = scalar_lea.vmem [#allocation2], 256
    %s1580 = smov 3
    %v1581 = vld [vmem:[%s1579] ss:$16 sm:%s1580]
    %s1582 = scalar_lea.vmem [#allocation2], 256
    %s1583 = smov 12
    %v1584 = vld [vmem:[%s1582] ss:$16 sm:%s1583]
    %vm1585 = vcmask 1043458
    %v1586 = vsel %vm1585, %v1584, %v1581
    %s1587 = scalar_lea.vmem [#allocation2], 256
    %s1588 = smov 48
    %v1589 = vld [vmem:[%s1587] ss:$16 sm:%s1588]
    %vm1590 = vcmask 1045508
    %v1591 = vsel %vm1590, %v1589, %v1586
    %s1592 = scalar_lea.vmem [#allocation2], 256
    %s1593 = smov 192
    %v1594 = vld [vmem:[%s1592] ss:$16 sm:%s1593]
    %vm1595 = vcmask 1047558
    %v1596 = vsel %vm1595, %v1594, %v1591
    %s1597 = scalar_lea.vmem %s1, 48
    %1598 = vst [vmem:[%s1597] sm:$0xff] %v1596
    %s1599 = scalar_lea.vmem [#allocation2], 384
    %s1600 = smov 3
    %v1601 = vld [vmem:[%s1599] ss:$16 sm:%s1600]
    %s1602 = scalar_lea.vmem [#allocation2], 384
    %s1603 = smov 12
    %v1604 = vld [vmem:[%s1602] ss:$16 sm:%s1603]
    %vm1605 = vcmask 1043458
    %v1606 = vsel %vm1605, %v1604, %v1601
    %s1607 = scalar_lea.vmem [#allocation2], 384
    %s1608 = smov 48
    %v1609 = vld [vmem:[%s1607] ss:$16 sm:%s1608]
    %vm1610 = vcmask 1045508
    %v1611 = vsel %vm1610, %v1609, %v1606
    %s1612 = scalar_lea.vmem [#allocation2], 384
    %s1613 = smov 192
    %v1614 = vld [vmem:[%s1612] ss:$16 sm:%s1613]
    %vm1615 = vcmask 1047558
    %v1616 = vsel %vm1615, %v1614, %v1611
    %s1617 = scalar_lea.vmem %s1, 72
    %1618 = vst [vmem:[%s1617] sm:$0xff] %v1616
    %s1619 = scalar_lea.vmem [#allocation2], 512
    %s1620 = smov 3
    %v1621 = vld [vmem:[%s1619] ss:$16 sm:%s1620]
    %s1622 = scalar_lea.vmem [#allocation2], 512
    %s1623 = smov 12
    %v1624 = vld [vmem:[%s1622] ss:$16 sm:%s1623]
    %vm1625 = vcmask 1043458
    %v1626 = vsel %vm1625, %v1624, %v1621
    %s1627 = scalar_lea.vmem [#allocation2], 512
    %s1628 = smov 48
    %v1629 = vld [vmem:[%s1627] ss:$16 sm:%s1628]
    %vm1630 = vcmask 1045508
    %v1631 = vsel %vm1630, %v1629, %v1626
    %s1632 = scalar_lea.vmem [#allocation2], 512
    %s1633 = smov 192
    %v1634 = vld [vmem:[%s1632] ss:$16 sm:%s1633]
    %vm1635 = vcmask 1047558
    %v1636 = vsel %vm1635, %v1634, %v1631
    %s1637 = scalar_lea.vmem %s1, 96
    %1638 = vst [vmem:[%s1637] sm:$0xff] %v1636
    %s1639 = scalar_lea.vmem [#allocation2], 640
    %s1640 = smov 3
    %v1641 = vld [vmem:[%s1639] ss:$16 sm:%s1640]
    %s1642 = scalar_lea.vmem [#allocation2], 640
    %s1643 = smov 12
    %v1644 = vld [vmem:[%s1642] ss:$16 sm:%s1643]
    %vm1645 = vcmask 1043458
    %v1646 = vsel %vm1645, %v1644, %v1641
    %s1647 = scalar_lea.vmem [#allocation2], 640
    %s1648 = smov 48
    %v1649 = vld [vmem:[%s1647] ss:$16 sm:%s1648]
    %vm1650 = vcmask 1045508
    %v1651 = vsel %vm1650, %v1649, %v1646
    %s1652 = scalar_lea.vmem [#allocation2], 640
    %s1653 = smov 192
    %v1654 = vld [vmem:[%s1652] ss:$16 sm:%s1653]
    %vm1655 = vcmask 1047558
    %v1656 = vsel %vm1655, %v1654, %v1651
    %s1657 = scalar_lea.vmem %s1, 120
    %1658 = vst [vmem:[%s1657] sm:$0xff] %v1656
    %s1659 = scalar_lea.vmem [#allocation2], 768
    %s1660 = smov 3
    %v1661 = vld [vmem:[%s1659] ss:$16 sm:%s1660]
    %s1662 = scalar_lea.vmem [#allocation2], 768
    %s1663 = smov 12
    %v1664 = vld [vmem:[%s1662] ss:$16 sm:%s1663]
    %vm1665 = vcmask 1043458
    %v1666 = vsel %vm1665, %v1664, %v1661
    %s1667 = scalar_lea.vmem [#allocation2], 768
    %s1668 = smov 48
    %v1669 = vld [vmem:[%s1667] ss:$16 sm:%s1668]
    %vm1670 = vcmask 1045508
    %v1671 = vsel %vm1670, %v1669, %v1666
    %s1672 = scalar_lea.vmem [#allocation2], 768
    %s1673 = smov 192
    %v1674 = vld [vmem:[%s1672] ss:$16 sm:%s1673]
    %vm1675 = vcmask 1047558
    %v1676 = vsel %vm1675, %v1674, %v1671
    %s1677 = scalar_lea.vmem %s1, 144
    %1678 = vst [vmem:[%s1677] sm:$0xff] %v1676
    %s1679 = scalar_lea.vmem [#allocation2], 896
    %s1680 = smov 3
    %v1681 = vld [vmem:[%s1679] ss:$16 sm:%s1680]
    %s1682 = scalar_lea.vmem [#allocation2], 896
    %s1683 = smov 12
    %v1684 = vld [vmem:[%s1682] ss:$16 sm:%s1683]
    %vm1685 = vcmask 1043458
    %v1686 = vsel %vm1685, %v1684, %v1681
    %s1687 = scalar_lea.vmem [#allocation2], 896
    %s1688 = smov 48
    %v1689 = vld [vmem:[%s1687] ss:$16 sm:%s1688]
    %vm1690 = vcmask 1045508
    %v1691 = vsel %vm1690, %v1689, %v1686
    %s1692 = scalar_lea.vmem [#allocation2], 896
    %s1693 = smov 192
    %v1694 = vld [vmem:[%s1692] ss:$16 sm:%s1693]
    %vm1695 = vcmask 1047558
    %v1696 = vsel %vm1695, %v1694, %v1691
    %s1697 = scalar_lea.vmem %s1, 168
    %1698 = vst [vmem:[%s1697] sm:$0xff] %v1696
    %s1699 = scalar_lea.vmem [#allocation2], 1024
    %s1700 = smov 3
    %v1701 = vld [vmem:[%s1699] ss:$16 sm:%s1700]
    %s1702 = scalar_lea.vmem [#allocation2], 1024
    %s1703 = smov 12
    %v1704 = vld [vmem:[%s1702] ss:$16 sm:%s1703]
    %vm1705 = vcmask 1043458
    %v1706 = vsel %vm1705, %v1704, %v1701
    %s1707 = scalar_lea.vmem [#allocation2], 1024
    %s1708 = smov 48
    %v1709 = vld [vmem:[%s1707] ss:$16 sm:%s1708]
    %vm1710 = vcmask 1045508
    %v1711 = vsel %vm1710, %v1709, %v1706
    %s1712 = scalar_lea.vmem [#allocation2], 1024
    %s1713 = smov 192
    %v1714 = vld [vmem:[%s1712] ss:$16 sm:%s1713]
    %vm1715 = vcmask 1047558
    %v1716 = vsel %vm1715, %v1714, %v1711
    %s1717 = scalar_lea.vmem %s1, 192
    %1718 = vst [vmem:[%s1717] sm:$0xff] %v1716
    %s1719 = scalar_lea.vmem [#allocation2], 1152
    %s1720 = smov 3
    %v1721 = vld [vmem:[%s1719] ss:$16 sm:%s1720]
    %s1722 = scalar_lea.vmem [#allocation2], 1152
    %s1723 = smov 12
    %v1724 = vld [vmem:[%s1722] ss:$16 sm:%s1723]
    %vm1725 = vcmask 1043458
    %v1726 = vsel %vm1725, %v1724, %v1721
    %s1727 = scalar_lea.vmem [#allocation2], 1152
    %s1728 = smov 48
    %v1729 = vld [vmem:[%s1727] ss:$16 sm:%s1728]
    %vm1730 = vcmask 1045508
    %v1731 = vsel %vm1730, %v1729, %v1726
    %s1732 = scalar_lea.vmem [#allocation2], 1152
    %s1733 = smov 192
    %v1734 = vld [vmem:[%s1732] ss:$16 sm:%s1733]
    %vm1735 = vcmask 1047558
    %v1736 = vsel %vm1735, %v1734, %v1731
    %s1737 = scalar_lea.vmem %s1, 216
    %1738 = vst [vmem:[%s1737] sm:$0xff] %v1736
    %s1739 = scalar_lea.vmem [#allocation2], 1280
    %s1740 = smov 3
    %v1741 = vld [vmem:[%s1739] ss:$16 sm:%s1740]
    %s1742 = scalar_lea.vmem [#allocation2], 1280
    %s1743 = smov 12
    %v1744 = vld [vmem:[%s1742] ss:$16 sm:%s1743]
    %vm1745 = vcmask 1043458
    %v1746 = vsel %vm1745, %v1744, %v1741
    %s1747 = scalar_lea.vmem [#allocation2], 1280
    %s1748 = smov 48
    %v1749 = vld [vmem:[%s1747] ss:$16 sm:%s1748]
    %vm1750 = vcmask 1045508
    %v1751 = vsel %vm1750, %v1749, %v1746
    %s1752 = scalar_lea.vmem [#allocation2], 1280
    %s1753 = smov 192
    %v1754 = vld [vmem:[%s1752] ss:$16 sm:%s1753]
    %vm1755 = vcmask 1047558
    %v1756 = vsel %vm1755, %v1754, %v1751
    %s1757 = scalar_lea.vmem %s1, 240
    %1758 = vst [vmem:[%s1757] sm:$0xff] %v1756
    %s1759 = scalar_lea.vmem [#allocation2], 1408
    %s1760 = smov 3
    %v1761 = vld [vmem:[%s1759] ss:$16 sm:%s1760]
    %s1762 = scalar_lea.vmem [#allocation2], 1408
    %s1763 = smov 12
    %v1764 = vld [vmem:[%s1762] ss:$16 sm:%s1763]
    %vm1765 = vcmask 1043458
    %v1766 = vsel %vm1765, %v1764, %v1761
    %s1767 = scalar_lea.vmem [#allocation2], 1408
    %s1768 = smov 48
    %v1769 = vld [vmem:[%s1767] ss:$16 sm:%s1768]
    %vm1770 = vcmask 1045508
    %v1771 = vsel %vm1770, %v1769, %v1766
    %s1772 = scalar_lea.vmem [#allocation2], 1408
    %s1773 = smov 192
    %v1774 = vld [vmem:[%s1772] ss:$16 sm:%s1773]
    %vm1775 = vcmask 1047558
    %v1776 = vsel %vm1775, %v1774, %v1771
    %s1777 = scalar_lea.vmem %s1, 264
    %1778 = vst [vmem:[%s1777] sm:$0xff] %v1776
    %s1779 = scalar_lea.vmem [#allocation2], 1536
    %s1780 = smov 3
    %v1781 = vld [vmem:[%s1779] ss:$16 sm:%s1780]
    %s1782 = scalar_lea.vmem [#allocation2], 1536
    %s1783 = smov 12
    %v1784 = vld [vmem:[%s1782] ss:$16 sm:%s1783]
    %vm1785 = vcmask 1043458
    %v1786 = vsel %vm1785, %v1784, %v1781
    %s1787 = scalar_lea.vmem [#allocation2], 1536
    %s1788 = smov 48
    %v1789 = vld [vmem:[%s1787] ss:$16 sm:%s1788]
    %vm1790 = vcmask 1045508
    %v1791 = vsel %vm1790, %v1789, %v1786
    %s1792 = scalar_lea.vmem [#allocation2], 1536
    %s1793 = smov 192
    %v1794 = vld [vmem:[%s1792] ss:$16 sm:%s1793]
    %vm1795 = vcmask 1047558
    %v1796 = vsel %vm1795, %v1794, %v1791
    %s1797 = scalar_lea.vmem %s1, 288
    %1798 = vst [vmem:[%s1797] sm:$0xff] %v1796
    %s1799 = scalar_lea.vmem [#allocation2], 1664
    %s1800 = smov 3
    %v1801 = vld [vmem:[%s1799] ss:$16 sm:%s1800]
    %s1802 = scalar_lea.vmem [#allocation2], 1664
    %s1803 = smov 12
    %v1804 = vld [vmem:[%s1802] ss:$16 sm:%s1803]
    %vm1805 = vcmask 1043458
    %v1806 = vsel %vm1805, %v1804, %v1801
    %s1807 = scalar_lea.vmem [#allocation2], 1664
    %s1808 = smov 48
    %v1809 = vld [vmem:[%s1807] ss:$16 sm:%s1808]
    %vm1810 = vcmask 1045508
    %v1811 = vsel %vm1810, %v1809, %v1806
    %s1812 = scalar_lea.vmem [#allocation2], 1664
    %s1813 = smov 192
    %v1814 = vld [vmem:[%s1812] ss:$16 sm:%s1813]
    %vm1815 = vcmask 1047558
    %v1816 = vsel %vm1815, %v1814, %v1811
    %s1817 = scalar_lea.vmem %s1, 312
    %1818 = vst [vmem:[%s1817] sm:$0xff] %v1816
    %s1819 = scalar_lea.vmem [#allocation2], 1792
    %s1820 = smov 3
    %v1821 = vld [vmem:[%s1819] ss:$16 sm:%s1820]
    %s1822 = scalar_lea.vmem [#allocation2], 1792
    %s1823 = smov 12
    %v1824 = vld [vmem:[%s1822] ss:$16 sm:%s1823]
    %vm1825 = vcmask 1043458
    %v1826 = vsel %vm1825, %v1824, %v1821
    %s1827 = scalar_lea.vmem [#allocation2], 1792
    %s1828 = smov 48
    %v1829 = vld [vmem:[%s1827] ss:$16 sm:%s1828]
    %vm1830 = vcmask 1045508
    %v1831 = vsel %vm1830, %v1829, %v1826
    %s1832 = scalar_lea.vmem [#allocation2], 1792
    %s1833 = smov 192
    %v1834 = vld [vmem:[%s1832] ss:$16 sm:%s1833]
    %vm1835 = vcmask 1047558
    %v1836 = vsel %vm1835, %v1834, %v1831
    %s1837 = scalar_lea.vmem %s1, 336
    %1838 = vst [vmem:[%s1837] sm:$0xff] %v1836
    %s1839 = scalar_lea.vmem [#allocation2], 1920
    %s1840 = smov 3
    %v1841 = vld [vmem:[%s1839] ss:$16 sm:%s1840]
    %s1842 = scalar_lea.vmem [#allocation2], 1920
    %s1843 = smov 12
    %v1844 = vld [vmem:[%s1842] ss:$16 sm:%s1843]
    %vm1845 = vcmask 1043458
    %v1846 = vsel %vm1845, %v1844, %v1841
    %s1847 = scalar_lea.vmem [#allocation2], 1920
    %s1848 = smov 48
    %v1849 = vld [vmem:[%s1847] ss:$16 sm:%s1848]
    %vm1850 = vcmask 1045508
    %v1851 = vsel %vm1850, %v1849, %v1846
    %s1852 = scalar_lea.vmem [#allocation2], 1920
    %s1853 = smov 192
    %v1854 = vld [vmem:[%s1852] ss:$16 sm:%s1853]
    %vm1855 = vcmask 1047558
    %v1856 = vsel %vm1855, %v1854, %v1851
    %s1857 = scalar_lea.vmem %s1, 360
    %1858 = vst [vmem:[%s1857] sm:$0xff] %v1856
    %s1859 = scalar_lea.vmem [#allocation2], 2048
    %s1860 = smov 3
    %v1861 = vld [vmem:[%s1859] ss:$16 sm:%s1860]
    %s1862 = scalar_lea.vmem [#allocation2], 2048
    %s1863 = smov 12
    %v1864 = vld [vmem:[%s1862] ss:$16 sm:%s1863]
    %vm1865 = vcmask 1043458
    %v1866 = vsel %vm1865, %v1864, %v1861
    %s1867 = scalar_lea.vmem [#allocation2], 2048
    %s1868 = smov 48
    %v1869 = vld [vmem:[%s1867] ss:$16 sm:%s1868]
    %vm1870 = vcmask 1045508
    %v1871 = vsel %vm1870, %v1869, %v1866
    %s1872 = scalar_lea.vmem [#allocation2], 2048
    %s1873 = smov 192
    %v1874 = vld [vmem:[%s1872] ss:$16 sm:%s1873]
    %vm1875 = vcmask 1047558
    %v1876 = vsel %vm1875, %v1874, %v1871
    %s1877 = scalar_lea.vmem %s1, 384
    %1878 = vst [vmem:[%s1877] sm:$0xff] %v1876
    %s1879 = scalar_lea.vmem [#allocation2], 2176
    %s1880 = smov 3
    %v1881 = vld [vmem:[%s1879] ss:$16 sm:%s1880]
    %s1882 = scalar_lea.vmem [#allocation2], 2176
    %s1883 = smov 12
    %v1884 = vld [vmem:[%s1882] ss:$16 sm:%s1883]
    %vm1885 = vcmask 1043458
    %v1886 = vsel %vm1885, %v1884, %v1881
    %s1887 = scalar_lea.vmem [#allocation2], 2176
    %s1888 = smov 48
    %v1889 = vld [vmem:[%s1887] ss:$16 sm:%s1888]
    %vm1890 = vcmask 1045508
    %v1891 = vsel %vm1890, %v1889, %v1886
    %s1892 = scalar_lea.vmem [#allocation2], 2176
    %s1893 = smov 192
    %v1894 = vld [vmem:[%s1892] ss:$16 sm:%s1893]
    %vm1895 = vcmask 1047558
    %v1896 = vsel %vm1895, %v1894, %v1891
    %s1897 = scalar_lea.vmem %s1, 408
    %1898 = vst [vmem:[%s1897] sm:$0xff] %v1896
    %s1899 = scalar_lea.vmem [#allocation2], 257
    %s1900 = smov 3
    %v1901 = vld [vmem:[%s1899] ss:$16 sm:%s1900]
    %s1902 = scalar_lea.vmem [#allocation2], 257
    %s1903 = smov 12
    %v1904 = vld [vmem:[%s1902] ss:$16 sm:%s1903]
    %vm1905 = vcmask 1043458
    %v1906 = vsel %vm1905, %v1904, %v1901
    %s1907 = scalar_lea.vmem [#allocation2], 257
    %s1908 = smov 48
    %v1909 = vld [vmem:[%s1907] ss:$16 sm:%s1908]
    %vm1910 = vcmask 1045508
    %v1911 = vsel %vm1910, %v1909, %v1906
    %s1912 = scalar_lea.vmem [#allocation2], 257
    %s1913 = smov 192
    %v1914 = vld [vmem:[%s1912] ss:$16 sm:%s1913]
    %vm1915 = vcmask 1047558
    %v1916 = vsel %vm1915, %v1914, %v1911
    %s1917 = scalar_lea.vmem [#allocation2], 129
    %s1918 = smov 3
    %v1919 = vld [vmem:[%s1917] ss:$16 sm:%s1918]
    %s1920 = scalar_lea.vmem [#allocation2], 129
    %s1921 = smov 12
    %v1922 = vld [vmem:[%s1920] ss:$16 sm:%s1921]
    %vm1923 = vcmask 1043458
    %v1924 = vsel %vm1923, %v1922, %v1919
    %s1925 = scalar_lea.vmem [#allocation2], 129
    %s1926 = smov 48
    %v1927 = vld [vmem:[%s1925] ss:$16 sm:%s1926]
    %vm1928 = vcmask 1045508
    %v1929 = vsel %vm1928, %v1927, %v1924
    %s1930 = scalar_lea.vmem [#allocation2], 129
    %s1931 = smov 192
    %v1932 = vld [vmem:[%s1930] ss:$16 sm:%s1931]
    %vm1933 = vcmask 1047558
    %v1934 = vsel %vm1933, %v1932, %v1929
    %vm1935 = vcmask 523264
    %v1936 = vsel %vm1935, %v1934, %v1916
    %1937 = vrot.lane.b32.xlu0 %v1936, 64
    %v1938 = vpop.permute.xlu0 %1937
    %vm1939 = vcmask 523264
    %s1940 = scalar_lea.vmem %s1, 64
    %1941 = vst.msk [vmem:[%s1940] sm:$0xff] %vm1939, %v1938
    %vm1942 = vcmask 1048064
    %s1943 = scalar_lea.vmem %s1, 32
    %1944 = vst.msk [vmem:[%s1943] sm:$0xff] %vm1942, %v1938
    %s1945 = scalar_lea.vmem [#allocation2], 769
    %s1946 = smov 3
    %v1947 = vld [vmem:[%s1945] ss:$16 sm:%s1946]
    %s1948 = scalar_lea.vmem [#allocation2], 769
    %s1949 = smov 12
    %v1950 = vld [vmem:[%s1948] ss:$16 sm:%s1949]
    %vm1951 = vcmask 1043458
    %v1952 = vsel %vm1951, %v1950, %v1947
    %s1953 = scalar_lea.vmem [#allocation2], 769
    %s1954 = smov 48
    %v1955 = vld [vmem:[%s1953] ss:$16 sm:%s1954]
    %vm1956 = vcmask 1045508
    %v1957 = vsel %vm1956, %v1955, %v1952
    %s1958 = scalar_lea.vmem [#allocation2], 769
    %s1959 = smov 192
    %v1960 = vld [vmem:[%s1958] ss:$16 sm:%s1959]
    %vm1961 = vcmask 1047558
    %v1962 = vsel %vm1961, %v1960, %v1957
    %s1963 = scalar_lea.vmem [#allocation2], 265
    %s1964 = smov 3
    %v1965 = vld [vmem:[%s1963] ss:$16 sm:%s1964]
    %s1966 = scalar_lea.vmem [#allocation2], 265
    %s1967 = smov 12
    %v1968 = vld [vmem:[%s1966] ss:$16 sm:%s1967]
    %vm1969 = vcmask 1043458
    %v1970 = vsel %vm1969, %v1968, %v1965
    %s1971 = scalar_lea.vmem [#allocation2], 265
    %s1972 = smov 48
    %v1973 = vld [vmem:[%s1971] ss:$16 sm:%s1972]
    %vm1974 = vcmask 1045508
    %v1975 = vsel %vm1974, %v1973, %v1970
    %s1976 = scalar_lea.vmem [#allocation2], 265
    %s1977 = smov 192
    %v1978 = vld [vmem:[%s1976] ss:$16 sm:%s1977]
    %vm1979 = vcmask 1047558
    %v1980 = vsel %vm1979, %v1978, %v1975
    %vm1981 = vcmask 523264
    %v1982 = vsel %vm1981, %v1980, %v1962
    %1983 = vrot.lane.b32.xlu0 %v1982, 64
    %v1984 = vpop.permute.xlu0 %1983
    %vm1985 = vcmask 523264
    %s1986 = scalar_lea.vmem %s1, 160
    %1987 = vst.msk [vmem:[%s1986] sm:$0xff] %vm1985, %v1984
    %vm1988 = vcmask 1048064
    %s1989 = scalar_lea.vmem %s1, 64
    %1990 = vst.msk [vmem:[%s1989] sm:$0xff] %vm1988, %v1984
    %s1991 = scalar_lea.vmem [#allocation2], 1281
    %s1992 = smov 3
    %v1993 = vld [vmem:[%s1991] ss:$16 sm:%s1992]
    %s1994 = scalar_lea.vmem [#allocation2], 1281
    %s1995 = smov 12
    %v1996 = vld [vmem:[%s1994] ss:$16 sm:%s1995]
    %vm1997 = vcmask 1043458
    %v1998 = vsel %vm1997, %v1996, %v1993
    %s1999 = scalar_lea.vmem [#allocation2], 1281
    %s2000 = smov 48
    %v2001 = vld [vmem:[%s1999] ss:$16 sm:%s2000]
    %vm2002 = vcmask 1045508
    %v2003 = vsel %vm2002, %v2001, %v1998
    %s2004 = scalar_lea.vmem [#allocation2], 1281
    %s2005 = smov 192
    %v2006 = vld [vmem:[%s2004] ss:$16 sm:%s2005]
    %vm2007 = vcmask 1047558
    %v2008 = vsel %vm2007, %v2006, %v2003
    %s2009 = scalar_lea.vmem [#allocation2], 641
    %s2010 = smov 3
    %v2011 = vld [vmem:[%s2009] ss:$16 sm:%s2010]
    %s2012 = scalar_lea.vmem [#allocation2], 641
    %s2013 = smov 12
    %v2014 = vld [vmem:[%s2012] ss:$16 sm:%s2013]
    %vm2015 = vcmask 1043458
    %v2016 = vsel %vm2015, %v2014, %v2011
    %s2017 = scalar_lea.vmem [#allocation2], 641
    %s2018 = smov 48
    %v2019 = vld [vmem:[%s2017] ss:$16 sm:%s2018]
    %vm2020 = vcmask 1045508
    %v2021 = vsel %vm2020, %v2019, %v2016
    %s2022 = scalar_lea.vmem [#allocation2], 641
    %s2023 = smov 192
    %v2024 = vld [vmem:[%s2022] ss:$16 sm:%s2023]
    %vm2025 = vcmask 1047558
    %v2026 = vsel %vm2025, %v2024, %v2021
    %vm2027 = vcmask 523264
    %v2028 = vsel %vm2027, %v2026, %v2008
    %2029 = vrot.lane.b32.xlu0 %v2028, 64
    %v2030 = vpop.permute.xlu0 %2029
    %vm2031 = vcmask 523264
    %s2032 = scalar_lea.vmem %s1, 256
    %2033 = vst.msk [vmem:[%s2032] sm:$0xff] %vm2031, %v2030
    %vm2034 = vcmask 1048064
    %s2035 = scalar_lea.vmem %s1, 128
    %2036 = vst.msk [vmem:[%s2035] sm:$0xff] %vm2034, %v2030
    %s2037 = scalar_lea.vmem [#allocation2], 1793
    %s2038 = smov 3
    %v2039 = vld [vmem:[%s2037] ss:$16 sm:%s2038]
    %s2040 = scalar_lea.vmem [#allocation2], 1793
    %s2041 = smov 12
    %v2042 = vld [vmem:[%s2040] ss:$16 sm:%s2041]
    %vm2043 = vcmask 1043458
    %v2044 = vsel %vm2043, %v2042, %v2039
    %s2045 = scalar_lea.vmem [#allocation2], 1793
    %s2046 = smov 48
    %v2047 = vld [vmem:[%s2045] ss:$16 sm:%s2046]
    %vm2048 = vcmask 1045508
    %v2049 = vsel %vm2048, %v2047, %v2044
    %s2050 = scalar_lea.vmem [#allocation2], 1793
    %s2051 = smov 192
    %v2052 = vld [vmem:[%s2050] ss:$16 sm:%s2051]
    %vm2053 = vcmask 1047558
    %v2054 = vsel %vm2053, %v2052, %v2049
    %s2055 = scalar_lea.vmem [#allocation2], 777
    %s2056 = smov 3
    %v2057 = vld [vmem:[%s2055] ss:$16 sm:%s2056]
    %s2058 = scalar_lea.vmem [#allocation2], 777
    %s2059 = smov 12
    %v2060 = vld [vmem:[%s2058] ss:$16 sm:%s2059]
    %vm2061 = vcmask 1043458
    %v2062 = vsel %vm2061, %v2060, %v2057
    %s2063 = scalar_lea.vmem [#allocation2], 777
    %s2064 = smov 48
    %v2065 = vld [vmem:[%s2063] ss:$16 sm:%s2064]
    %vm2066 = vcmask 1045508
    %v2067 = vsel %vm2066, %v2065, %v2062
    %s2068 = scalar_lea.vmem [#allocation2], 777
    %s2069 = smov 192
    %v2070 = vld [vmem:[%s2068] ss:$16 sm:%s2069]
    %vm2071 = vcmask 1047558
    %v2072 = vsel %vm2071, %v2070, %v2067
    %vm2073 = vcmask 523264
    %v2074 = vsel %vm2073, %v2072, %v2054
    %2075 = vrot.lane.b32.xlu0 %v2074, 64
    %v2076 = vpop.permute.xlu0 %2075
    %vm2077 = vcmask 523264
    %s2078 = scalar_lea.vmem %s1, 352
    %2079 = vst.msk [vmem:[%s2078] sm:$0xff] %vm2077, %v2076
    %vm2080 = vcmask 1048064
    %s2081 = scalar_lea.vmem %s1, 160
    %2082 = vst.msk [vmem:[%s2081] sm:$0xff] %vm2080, %v2076
    %s2083 = scalar_lea.vmem [#allocation2], 129
    %s2084 = smov 3
    %v2085 = vld [vmem:[%s2083] ss:$16 sm:%s2084]
    %s2086 = scalar_lea.vmem [#allocation2], 129
    %s2087 = smov 12
    %v2088 = vld [vmem:[%s2086] ss:$16 sm:%s2087]
    %vm2089 = vcmask 1043458
    %v2090 = vsel %vm2089, %v2088, %v2085
    %s2091 = scalar_lea.vmem [#allocation2], 129
    %s2092 = smov 48
    %v2093 = vld [vmem:[%s2091] ss:$16 sm:%s2092]
    %vm2094 = vcmask 1045508
    %v2095 = vsel %vm2094, %v2093, %v2090
    %s2096 = scalar_lea.vmem [#allocation2], 129
    %s2097 = smov 192
    %v2098 = vld [vmem:[%s2096] ss:$16 sm:%s2097]
    %vm2099 = vcmask 1047558
    %v2100 = vsel %vm2099, %v2098, %v2095
    %s2101 = scalar_lea.vmem [#allocation2], 1153
    %s2102 = smov 3
    %v2103 = vld [vmem:[%s2101] ss:$16 sm:%s2102]
    %s2104 = scalar_lea.vmem [#allocation2], 1153
    %s2105 = smov 12
    %v2106 = vld [vmem:[%s2104] ss:$16 sm:%s2105]
    %vm2107 = vcmask 1043458
    %v2108 = vsel %vm2107, %v2106, %v2103
    %s2109 = scalar_lea.vmem [#allocation2], 1153
    %s2110 = smov 48
    %v2111 = vld [vmem:[%s2109] ss:$16 sm:%s2110]
    %vm2112 = vcmask 1045508
    %v2113 = vsel %vm2112, %v2111, %v2108
    %s2114 = scalar_lea.vmem [#allocation2], 1153
    %s2115 = smov 192
    %v2116 = vld [vmem:[%s2114] ss:$16 sm:%s2115]
    %vm2117 = vcmask 1047558
    %v2118 = vsel %vm2117, %v2116, %v2113
    %vm2119 = vcmask 523264
    %v2120 = vsel %vm2119, %v2118, %v2100
    %2121 = vrot.lane.b32.xlu0 %v2120, 64
    %v2122 = vpop.permute.xlu0 %2121
    %vm2123 = vcmask 523264
    %s2124 = scalar_lea.vmem %s1, 40
    %2125 = vst.msk [vmem:[%s2124] sm:$0xff] %vm2123, %v2122
    %vm2126 = vcmask 1048064
    %s2127 = scalar_lea.vmem %s1, 224
    %2128 = vst.msk [vmem:[%s2127] sm:$0xff] %vm2126, %v2122
    %s2129 = scalar_lea.vmem [#allocation2], 641
    %s2130 = smov 3
    %v2131 = vld [vmem:[%s2129] ss:$16 sm:%s2130]
    %s2132 = scalar_lea.vmem [#allocation2], 641
    %s2133 = smov 12
    %v2134 = vld [vmem:[%s2132] ss:$16 sm:%s2133]
    %vm2135 = vcmask 1043458
    %v2136 = vsel %vm2135, %v2134, %v2131
    %s2137 = scalar_lea.vmem [#allocation2], 641
    %s2138 = smov 48
    %v2139 = vld [vmem:[%s2137] ss:$16 sm:%s2138]
    %vm2140 = vcmask 1045508
    %v2141 = vsel %vm2140, %v2139, %v2136
    %s2142 = scalar_lea.vmem [#allocation2], 641
    %s2143 = smov 192
    %v2144 = vld [vmem:[%s2142] ss:$16 sm:%s2143]
    %vm2145 = vcmask 1047558
    %v2146 = vsel %vm2145, %v2144, %v2141
    %s2147 = scalar_lea.vmem [#allocation2], 1289
    %s2148 = smov 3
    %v2149 = vld [vmem:[%s2147] ss:$16 sm:%s2148]
    %s2150 = scalar_lea.vmem [#allocation2], 1289
    %s2151 = smov 12
    %v2152 = vld [vmem:[%s2150] ss:$16 sm:%s2151]
    %vm2153 = vcmask 1043458
    %v2154 = vsel %vm2153, %v2152, %v2149
    %s2155 = scalar_lea.vmem [#allocation2], 1289
    %s2156 = smov 48
    %v2157 = vld [vmem:[%s2155] ss:$16 sm:%s2156]
    %vm2158 = vcmask 1045508
    %v2159 = vsel %vm2158, %v2157, %v2154
    %s2160 = scalar_lea.vmem [#allocation2], 1289
    %s2161 = smov 192
    %v2162 = vld [vmem:[%s2160] ss:$16 sm:%s2161]
    %vm2163 = vcmask 1047558
    %v2164 = vsel %vm2163, %v2162, %v2159
    %vm2165 = vcmask 523264
    %v2166 = vsel %vm2165, %v2164, %v2146
    %2167 = vrot.lane.b32.xlu0 %v2166, 64
    %v2168 = vpop.permute.xlu0 %2167
    %vm2169 = vcmask 523264
    %s2170 = scalar_lea.vmem %s1, 136
    %2171 = vst.msk [vmem:[%s2170] sm:$0xff] %vm2169, %v2168
    %vm2172 = vcmask 1048064
    %s2173 = scalar_lea.vmem %s1, 256
    %2174 = vst.msk [vmem:[%s2173] sm:$0xff] %vm2172, %v2168
    %s2175 = scalar_lea.vmem [#allocation2], 1153
    %s2176 = smov 3
    %v2177 = vld [vmem:[%s2175] ss:$16 sm:%s2176]
    %s2178 = scalar_lea.vmem [#allocation2], 1153
    %s2179 = smov 12
    %v2180 = vld [vmem:[%s2178] ss:$16 sm:%s2179]
    %vm2181 = vcmask 1043458
    %v2182 = vsel %vm2181, %v2180, %v2177
    %s2183 = scalar_lea.vmem [#allocation2], 1153
    %s2184 = smov 48
    %v2185 = vld [vmem:[%s2183] ss:$16 sm:%s2184]
    %vm2186 = vcmask 1045508
    %v2187 = vsel %vm2186, %v2185, %v2182
    %s2188 = scalar_lea.vmem [#allocation2], 1153
    %s2189 = smov 192
    %v2190 = vld [vmem:[%s2188] ss:$16 sm:%s2189]
    %vm2191 = vcmask 1047558
    %v2192 = vsel %vm2191, %v2190, %v2187
    %s2193 = scalar_lea.vmem [#allocation2], 1665
    %s2194 = smov 3
    %v2195 = vld [vmem:[%s2193] ss:$16 sm:%s2194]
    %s2196 = scalar_lea.vmem [#allocation2], 1665
    %s2197 = smov 12
    %v2198 = vld [vmem:[%s2196] ss:$16 sm:%s2197]
    %vm2199 = vcmask 1043458
    %v2200 = vsel %vm2199, %v2198, %v2195
    %s2201 = scalar_lea.vmem [#allocation2], 1665
    %s2202 = smov 48
    %v2203 = vld [vmem:[%s2201] ss:$16 sm:%s2202]
    %vm2204 = vcmask 1045508
    %v2205 = vsel %vm2204, %v2203, %v2200
    %s2206 = scalar_lea.vmem [#allocation2], 1665
    %s2207 = smov 192
    %v2208 = vld [vmem:[%s2206] ss:$16 sm:%s2207]
    %vm2209 = vcmask 1047558
    %v2210 = vsel %vm2209, %v2208, %v2205
    %vm2211 = vcmask 523264
    %v2212 = vsel %vm2211, %v2210, %v2192
    %2213 = vrot.lane.b32.xlu0 %v2212, 64
    %v2214 = vpop.permute.xlu0 %2213
    %vm2215 = vcmask 523264
    %s2216 = scalar_lea.vmem %s1, 232
    %2217 = vst.msk [vmem:[%s2216] sm:$0xff] %vm2215, %v2214
    %vm2218 = vcmask 1048064
    %s2219 = scalar_lea.vmem %s1, 320
    %2220 = vst.msk [vmem:[%s2219] sm:$0xff] %vm2218, %v2214
    %s2221 = scalar_lea.vmem [#allocation2], 1665
    %s2222 = smov 3
    %v2223 = vld [vmem:[%s2221] ss:$16 sm:%s2222]
    %s2224 = scalar_lea.vmem [#allocation2], 1665
    %s2225 = smov 12
    %v2226 = vld [vmem:[%s2224] ss:$16 sm:%s2225]
    %vm2227 = vcmask 1043458
    %v2228 = vsel %vm2227, %v2226, %v2223
    %s2229 = scalar_lea.vmem [#allocation2], 1665
    %s2230 = smov 48
    %v2231 = vld [vmem:[%s2229] ss:$16 sm:%s2230]
    %vm2232 = vcmask 1045508
    %v2233 = vsel %vm2232, %v2231, %v2228
    %s2234 = scalar_lea.vmem [#allocation2], 1665
    %s2235 = smov 192
    %v2236 = vld [vmem:[%s2234] ss:$16 sm:%s2235]
    %vm2237 = vcmask 1047558
    %v2238 = vsel %vm2237, %v2236, %v2233
    %s2239 = scalar_lea.vmem [#allocation2], 1801
    %s2240 = smov 3
    %v2241 = vld [vmem:[%s2239] ss:$16 sm:%s2240]
    %s2242 = scalar_lea.vmem [#allocation2], 1801
    %s2243 = smov 12
    %v2244 = vld [vmem:[%s2242] ss:$16 sm:%s2243]
    %vm2245 = vcmask 1043458
    %v2246 = vsel %vm2245, %v2244, %v2241
    %s2247 = scalar_lea.vmem [#allocation2], 1801
    %s2248 = smov 48
    %v2249 = vld [vmem:[%s2247] ss:$16 sm:%s2248]
    %vm2250 = vcmask 1045508
    %v2251 = vsel %vm2250, %v2249, %v2246
    %s2252 = scalar_lea.vmem [#allocation2], 1801
    %s2253 = smov 192
    %v2254 = vld [vmem:[%s2252] ss:$16 sm:%s2253]
    %vm2255 = vcmask 1047558
    %v2256 = vsel %vm2255, %v2254, %v2251
    %vm2257 = vcmask 523264
    %v2258 = vsel %vm2257, %v2256, %v2238
    %2259 = vrot.lane.b32.xlu0 %v2258, 64
    %v2260 = vpop.permute.xlu0 %2259
    %vm2261 = vcmask 523264
    %s2262 = scalar_lea.vmem %s1, 328
    %2263 = vst.msk [vmem:[%s2262] sm:$0xff] %vm2261, %v2260
    %vm2264 = vcmask 1048064
    %s2265 = scalar_lea.vmem %s1, 352
    %2266 = vst.msk [vmem:[%s2265] sm:$0xff] %vm2264, %v2260
    %s2267 = scalar_lea.vmem [#allocation2], 2177
    %s2268 = smov 3
    %v2269 = vld [vmem:[%s2267] ss:$16 sm:%s2268]
    %s2270 = scalar_lea.vmem [#allocation2], 2177
    %s2271 = smov 12
    %v2272 = vld [vmem:[%s2270] ss:$16 sm:%s2271]
    %vm2273 = vcmask 1043458
    %v2274 = vsel %vm2273, %v2272, %v2269
    %s2275 = scalar_lea.vmem [#allocation2], 2177
    %s2276 = smov 48
    %v2277 = vld [vmem:[%s2275] ss:$16 sm:%s2276]
    %vm2278 = vcmask 1045508
    %v2279 = vsel %vm2278, %v2277, %v2274
    %s2280 = scalar_lea.vmem [#allocation2], 2177
    %s2281 = smov 192
    %v2282 = vld [vmem:[%s2280] ss:$16 sm:%s2281]
    %vm2283 = vcmask 1047558
    %v2284 = vsel %vm2283, %v2282, %v2279
    %s2285 = scalar_lea.vmem [#allocation2], 2177
    %s2286 = smov 3
    %v2287 = vld [vmem:[%s2285] ss:$16 sm:%s2286]
    %s2288 = scalar_lea.vmem [#allocation2], 2177
    %s2289 = smov 12
    %v2290 = vld [vmem:[%s2288] ss:$16 sm:%s2289]
    %vm2291 = vcmask 1043458
    %v2292 = vsel %vm2291, %v2290, %v2287
    %s2293 = scalar_lea.vmem [#allocation2], 2177
    %s2294 = smov 48
    %v2295 = vld [vmem:[%s2293] ss:$16 sm:%s2294]
    %vm2296 = vcmask 1045508
    %v2297 = vsel %vm2296, %v2295, %v2292
    %s2298 = scalar_lea.vmem [#allocation2], 2177
    %s2299 = smov 192
    %v2300 = vld [vmem:[%s2298] ss:$16 sm:%s2299]
    %vm2301 = vcmask 1047558
    %v2302 = vsel %vm2301, %v2300, %v2297
    %vm2303 = vcmask 523264
    %v2304 = vsel %vm2303, %v2302, %v2284
    %2305 = vrot.lane.b32.xlu0 %v2304, 64
    %v2306 = vpop.permute.xlu0 %2305
    %vm2307 = vcmask 523264
    %s2308 = scalar_lea.vmem %s1, 424
    %2309 = vst.msk [vmem:[%s2308] sm:$0xff] %vm2307, %v2306
    %vm2310 = vcmask 1048064
    %s2311 = scalar_lea.vmem %s1, 416
    %2312 = vst.msk [vmem:[%s2311] sm:$0xff] %vm2310, %v2306
    %s2313 = scalar_lea.vmem [#allocation2], 1
    %s2314 = smov 3
    %v2315 = vld [vmem:[%s2313] ss:$16 sm:%s2314]
    %s2316 = scalar_lea.vmem [#allocation2], 1
    %s2317 = smov 12
    %v2318 = vld [vmem:[%s2316] ss:$16 sm:%s2317]
    %vm2319 = vcmask 1043458
    %v2320 = vsel %vm2319, %v2318, %v2315
    %s2321 = scalar_lea.vmem [#allocation2], 1
    %s2322 = smov 48
    %v2323 = vld [vmem:[%s2321] ss:$16 sm:%s2322]
    %vm2324 = vcmask 1045508
    %v2325 = vsel %vm2324, %v2323, %v2320
    %s2326 = scalar_lea.vmem [#allocation2], 1
    %s2327 = smov 192
    %v2328 = vld [vmem:[%s2326] ss:$16 sm:%s2327]
    %vm2329 = vcmask 1047558
    %v2330 = vsel %vm2329, %v2328, %v2325
    %s2331 = scalar_lea.vmem [#allocation2], 1
    %s2332 = smov 3
    %v2333 = vld [vmem:[%s2331] ss:$16 sm:%s2332]
    %s2334 = scalar_lea.vmem [#allocation2], 1
    %s2335 = smov 12
    %v2336 = vld [vmem:[%s2334] ss:$16 sm:%s2335]
    %vm2337 = vcmask 1043458
    %v2338 = vsel %vm2337, %v2336, %v2333
    %s2339 = scalar_lea.vmem [#allocation2], 1
    %s2340 = smov 48
    %v2341 = vld [vmem:[%s2339] ss:$16 sm:%s2340]
    %vm2342 = vcmask 1045508
    %v2343 = vsel %vm2342, %v2341, %v2338
    %s2344 = scalar_lea.vmem [#allocation2], 1
    %s2345 = smov 192
    %v2346 = vld [vmem:[%s2344] ss:$16 sm:%s2345]
    %vm2347 = vcmask 1047558
    %v2348 = vsel %vm2347, %v2346, %v2343
    %vm2349 = vcmask 523264
    %v2350 = vsel %vm2349, %v2348, %v2330
    %2351 = vrot.lane.b32.xlu0 %v2350, 64
    %v2352 = vpop.permute.xlu0 %2351
    %vm2353 = vcmask 523264
    %s2354 = scalar_lea.vmem %s1, 16
    %2355 = vst.msk [vmem:[%s2354] sm:$0xff] %vm2353, %v2352
    %vm2356 = vcmask 1048064
    %s2357 = scalar_lea.vmem %s1, 8
    %2358 = vst.msk [vmem:[%s2357] sm:$0xff] %vm2356, %v2352
    %s2359 = scalar_lea.vmem [#allocation2], 513
    %s2360 = smov 3
    %v2361 = vld [vmem:[%s2359] ss:$16 sm:%s2360]
    %s2362 = scalar_lea.vmem [#allocation2], 513
    %s2363 = smov 12
    %v2364 = vld [vmem:[%s2362] ss:$16 sm:%s2363]
    %vm2365 = vcmask 1043458
    %v2366 = vsel %vm2365, %v2364, %v2361
    %s2367 = scalar_lea.vmem [#allocation2], 513
    %s2368 = smov 48
    %v2369 = vld [vmem:[%s2367] ss:$16 sm:%s2368]
    %vm2370 = vcmask 1045508
    %v2371 = vsel %vm2370, %v2369, %v2366
    %s2372 = scalar_lea.vmem [#allocation2], 513
    %s2373 = smov 192
    %v2374 = vld [vmem:[%s2372] ss:$16 sm:%s2373]
    %vm2375 = vcmask 1047558
    %v2376 = vsel %vm2375, %v2374, %v2371
    %s2377 = scalar_lea.vmem [#allocation2], 137
    %s2378 = smov 3
    %v2379 = vld [vmem:[%s2377] ss:$16 sm:%s2378]
    %s2380 = scalar_lea.vmem [#allocation2], 137
    %s2381 = smov 12
    %v2382 = vld [vmem:[%s2380] ss:$16 sm:%s2381]
    %vm2383 = vcmask 1043458
    %v2384 = vsel %vm2383, %v2382, %v2379
    %s2385 = scalar_lea.vmem [#allocation2], 137
    %s2386 = smov 48
    %v2387 = vld [vmem:[%s2385] ss:$16 sm:%s2386]
    %vm2388 = vcmask 1045508
    %v2389 = vsel %vm2388, %v2387, %v2384
    %s2390 = scalar_lea.vmem [#allocation2], 137
    %s2391 = smov 192
    %v2392 = vld [vmem:[%s2390] ss:$16 sm:%s2391]
    %vm2393 = vcmask 1047558
    %v2394 = vsel %vm2393, %v2392, %v2389
    %vm2395 = vcmask 523264
    %v2396 = vsel %vm2395, %v2394, %v2376
    %2397 = vrot.lane.b32.xlu0 %v2396, 64
    %v2398 = vpop.permute.xlu0 %2397
    %vm2399 = vcmask 523264
    %s2400 = scalar_lea.vmem %s1, 112
    %2401 = vst.msk [vmem:[%s2400] sm:$0xff] %vm2399, %v2398
    %vm2402 = vcmask 1048064
    %s2403 = scalar_lea.vmem %s1, 40
    %2404 = vst.msk [vmem:[%s2403] sm:$0xff] %vm2402, %v2398
    %s2405 = scalar_lea.vmem [#allocation2], 1025
    %s2406 = smov 3
    %v2407 = vld [vmem:[%s2405] ss:$16 sm:%s2406]
    %s2408 = scalar_lea.vmem [#allocation2], 1025
    %s2409 = smov 12
    %v2410 = vld [vmem:[%s2408] ss:$16 sm:%s2409]
    %vm2411 = vcmask 1043458
    %v2412 = vsel %vm2411, %v2410, %v2407
    %s2413 = scalar_lea.vmem [#allocation2], 1025
    %s2414 = smov 48
    %v2415 = vld [vmem:[%s2413] ss:$16 sm:%s2414]
    %vm2416 = vcmask 1045508
    %v2417 = vsel %vm2416, %v2415, %v2412
    %s2418 = scalar_lea.vmem [#allocation2], 1025
    %s2419 = smov 192
    %v2420 = vld [vmem:[%s2418] ss:$16 sm:%s2419]
    %vm2421 = vcmask 1047558
    %v2422 = vsel %vm2421, %v2420, %v2417
    %s2423 = scalar_lea.vmem [#allocation2], 513
    %s2424 = smov 3
    %v2425 = vld [vmem:[%s2423] ss:$16 sm:%s2424]
    %s2426 = scalar_lea.vmem [#allocation2], 513
    %s2427 = smov 12
    %v2428 = vld [vmem:[%s2426] ss:$16 sm:%s2427]
    %vm2429 = vcmask 1043458
    %v2430 = vsel %vm2429, %v2428, %v2425
    %s2431 = scalar_lea.vmem [#allocation2], 513
    %s2432 = smov 48
    %v2433 = vld [vmem:[%s2431] ss:$16 sm:%s2432]
    %vm2434 = vcmask 1045508
    %v2435 = vsel %vm2434, %v2433, %v2430
    %s2436 = scalar_lea.vmem [#allocation2], 513
    %s2437 = smov 192
    %v2438 = vld [vmem:[%s2436] ss:$16 sm:%s2437]
    %vm2439 = vcmask 1047558
    %v2440 = vsel %vm2439, %v2438, %v2435
    %vm2441 = vcmask 523264
    %v2442 = vsel %vm2441, %v2440, %v2422
    %2443 = vrot.lane.b32.xlu0 %v2442, 64
    %v2444 = vpop.permute.xlu0 %2443
    %vm2445 = vcmask 523264
    %s2446 = scalar_lea.vmem %s1, 208
    %2447 = vst.msk [vmem:[%s2446] sm:$0xff] %vm2445, %v2444
    %vm2448 = vcmask 1048064
    %s2449 = scalar_lea.vmem %s1, 104
    %2450 = vst.msk [vmem:[%s2449] sm:$0xff] %vm2448, %v2444
    %s2451 = scalar_lea.vmem [#allocation2], 1537
    %s2452 = smov 3
    %v2453 = vld [vmem:[%s2451] ss:$16 sm:%s2452]
    %s2454 = scalar_lea.vmem [#allocation2], 1537
    %s2455 = smov 12
    %v2456 = vld [vmem:[%s2454] ss:$16 sm:%s2455]
    %vm2457 = vcmask 1043458
    %v2458 = vsel %vm2457, %v2456, %v2453
    %s2459 = scalar_lea.vmem [#allocation2], 1537
    %s2460 = smov 48
    %v2461 = vld [vmem:[%s2459] ss:$16 sm:%s2460]
    %vm2462 = vcmask 1045508
    %v2463 = vsel %vm2462, %v2461, %v2458
    %s2464 = scalar_lea.vmem [#allocation2], 1537
    %s2465 = smov 192
    %v2466 = vld [vmem:[%s2464] ss:$16 sm:%s2465]
    %vm2467 = vcmask 1047558
    %v2468 = vsel %vm2467, %v2466, %v2463
    %s2469 = scalar_lea.vmem [#allocation2], 649
    %s2470 = smov 3
    %v2471 = vld [vmem:[%s2469] ss:$16 sm:%s2470]
    %s2472 = scalar_lea.vmem [#allocation2], 649
    %s2473 = smov 12
    %v2474 = vld [vmem:[%s2472] ss:$16 sm:%s2473]
    %vm2475 = vcmask 1043458
    %v2476 = vsel %vm2475, %v2474, %v2471
    %s2477 = scalar_lea.vmem [#allocation2], 649
    %s2478 = smov 48
    %v2479 = vld [vmem:[%s2477] ss:$16 sm:%s2478]
    %vm2480 = vcmask 1045508
    %v2481 = vsel %vm2480, %v2479, %v2476
    %s2482 = scalar_lea.vmem [#allocation2], 649
    %s2483 = smov 192
    %v2484 = vld [vmem:[%s2482] ss:$16 sm:%s2483]
    %vm2485 = vcmask 1047558
    %v2486 = vsel %vm2485, %v2484, %v2481
    %vm2487 = vcmask 523264
    %v2488 = vsel %vm2487, %v2486, %v2468
    %2489 = vrot.lane.b32.xlu0 %v2488, 64
    %v2490 = vpop.permute.xlu0 %2489
    %vm2491 = vcmask 523264
    %s2492 = scalar_lea.vmem %s1, 304
    %2493 = vst.msk [vmem:[%s2492] sm:$0xff] %vm2491, %v2490
    %vm2494 = vcmask 1048064
    %s2495 = scalar_lea.vmem %s1, 136
    %2496 = vst.msk [vmem:[%s2495] sm:$0xff] %vm2494, %v2490
    %s2497 = scalar_lea.vmem [#allocation2], 2049
    %s2498 = smov 3
    %v2499 = vld [vmem:[%s2497] ss:$16 sm:%s2498]
    %s2500 = scalar_lea.vmem [#allocation2], 2049
    %s2501 = smov 12
    %v2502 = vld [vmem:[%s2500] ss:$16 sm:%s2501]
    %vm2503 = vcmask 1043458
    %v2504 = vsel %vm2503, %v2502, %v2499
    %s2505 = scalar_lea.vmem [#allocation2], 2049
    %s2506 = smov 48
    %v2507 = vld [vmem:[%s2505] ss:$16 sm:%s2506]
    %vm2508 = vcmask 1045508
    %v2509 = vsel %vm2508, %v2507, %v2504
    %s2510 = scalar_lea.vmem [#allocation2], 2049
    %s2511 = smov 192
    %v2512 = vld [vmem:[%s2510] ss:$16 sm:%s2511]
    %vm2513 = vcmask 1047558
    %v2514 = vsel %vm2513, %v2512, %v2509
    %s2515 = scalar_lea.vmem [#allocation2], 1025
    %s2516 = smov 3
    %v2517 = vld [vmem:[%s2515] ss:$16 sm:%s2516]
    %s2518 = scalar_lea.vmem [#allocation2], 1025
    %s2519 = smov 12
    %v2520 = vld [vmem:[%s2518] ss:$16 sm:%s2519]
    %vm2521 = vcmask 1043458
    %v2522 = vsel %vm2521, %v2520, %v2517
    %s2523 = scalar_lea.vmem [#allocation2], 1025
    %s2524 = smov 48
    %v2525 = vld [vmem:[%s2523] ss:$16 sm:%s2524]
    %vm2526 = vcmask 1045508
    %v2527 = vsel %vm2526, %v2525, %v2522
    %s2528 = scalar_lea.vmem [#allocation2], 1025
    %s2529 = smov 192
    %v2530 = vld [vmem:[%s2528] ss:$16 sm:%s2529]
    %vm2531 = vcmask 1047558
    %v2532 = vsel %vm2531, %v2530, %v2527
    %vm2533 = vcmask 523264
    %v2534 = vsel %vm2533, %v2532, %v2514
    %2535 = vrot.lane.b32.xlu0 %v2534, 64
    %v2536 = vpop.permute.xlu0 %2535
    %vm2537 = vcmask 523264
    %s2538 = scalar_lea.vmem %s1, 400
    %2539 = vst.msk [vmem:[%s2538] sm:$0xff] %vm2537, %v2536
    %vm2540 = vcmask 1048064
    %s2541 = scalar_lea.vmem %s1, 200
    %2542 = vst.msk [vmem:[%s2541] sm:$0xff] %vm2540, %v2536
    %s2543 = scalar_lea.vmem [#allocation2], 385
    %s2544 = smov 3
    %v2545 = vld [vmem:[%s2543] ss:$16 sm:%s2544]
    %s2546 = scalar_lea.vmem [#allocation2], 385
    %s2547 = smov 12
    %v2548 = vld [vmem:[%s2546] ss:$16 sm:%s2547]
    %vm2549 = vcmask 1043458
    %v2550 = vsel %vm2549, %v2548, %v2545
    %s2551 = scalar_lea.vmem [#allocation2], 385
    %s2552 = smov 48
    %v2553 = vld [vmem:[%s2551] ss:$16 sm:%s2552]
    %vm2554 = vcmask 1045508
    %v2555 = vsel %vm2554, %v2553, %v2550
    %s2556 = scalar_lea.vmem [#allocation2], 385
    %s2557 = smov 192
    %v2558 = vld [vmem:[%s2556] ss:$16 sm:%s2557]
    %vm2559 = vcmask 1047558
    %v2560 = vsel %vm2559, %v2558, %v2555
    %s2561 = scalar_lea.vmem [#allocation2], 1161
    %s2562 = smov 3
    %v2563 = vld [vmem:[%s2561] ss:$16 sm:%s2562]
    %s2564 = scalar_lea.vmem [#allocation2], 1161
    %s2565 = smov 12
    %v2566 = vld [vmem:[%s2564] ss:$16 sm:%s2565]
    %vm2567 = vcmask 1043458
    %v2568 = vsel %vm2567, %v2566, %v2563
    %s2569 = scalar_lea.vmem [#allocation2], 1161
    %s2570 = smov 48
    %v2571 = vld [vmem:[%s2569] ss:$16 sm:%s2570]
    %vm2572 = vcmask 1045508
    %v2573 = vsel %vm2572, %v2571, %v2568
    %s2574 = scalar_lea.vmem [#allocation2], 1161
    %s2575 = smov 192
    %v2576 = vld [vmem:[%s2574] ss:$16 sm:%s2575]
    %vm2577 = vcmask 1047558
    %v2578 = vsel %vm2577, %v2576, %v2573
    %vm2579 = vcmask 523264
    %v2580 = vsel %vm2579, %v2578, %v2560
    %2581 = vrot.lane.b32.xlu0 %v2580, 64
    %v2582 = vpop.permute.xlu0 %2581
    %vm2583 = vcmask 523264
    %s2584 = scalar_lea.vmem %s1, 88
    %2585 = vst.msk [vmem:[%s2584] sm:$0xff] %vm2583, %v2582
    %vm2586 = vcmask 1048064
    %s2587 = scalar_lea.vmem %s1, 232
    %2588 = vst.msk [vmem:[%s2587] sm:$0xff] %vm2586, %v2582
    %s2589 = scalar_lea.vmem [#allocation2], 897
    %s2590 = smov 3
    %v2591 = vld [vmem:[%s2589] ss:$16 sm:%s2590]
    %s2592 = scalar_lea.vmem [#allocation2], 897
    %s2593 = smov 12
    %v2594 = vld [vmem:[%s2592] ss:$16 sm:%s2593]
    %vm2595 = vcmask 1043458
    %v2596 = vsel %vm2595, %v2594, %v2591
    %s2597 = scalar_lea.vmem [#allocation2], 897
    %s2598 = smov 48
    %v2599 = vld [vmem:[%s2597] ss:$16 sm:%s2598]
    %vm2600 = vcmask 1045508
    %v2601 = vsel %vm2600, %v2599, %v2596
    %s2602 = scalar_lea.vmem [#allocation2], 897
    %s2603 = smov 192
    %v2604 = vld [vmem:[%s2602] ss:$16 sm:%s2603]
    %vm2605 = vcmask 1047558
    %v2606 = vsel %vm2605, %v2604, %v2601
    %s2607 = scalar_lea.vmem [#allocation2], 1537
    %s2608 = smov 3
    %v2609 = vld [vmem:[%s2607] ss:$16 sm:%s2608]
    %s2610 = scalar_lea.vmem [#allocation2], 1537
    %s2611 = smov 12
    %v2612 = vld [vmem:[%s2610] ss:$16 sm:%s2611]
    %vm2613 = vcmask 1043458
    %v2614 = vsel %vm2613, %v2612, %v2609
    %s2615 = scalar_lea.vmem [#allocation2], 1537
    %s2616 = smov 48
    %v2617 = vld [vmem:[%s2615] ss:$16 sm:%s2616]
    %vm2618 = vcmask 1045508
    %v2619 = vsel %vm2618, %v2617, %v2614
    %s2620 = scalar_lea.vmem [#allocation2], 1537
    %s2621 = smov 192
    %v2622 = vld [vmem:[%s2620] ss:$16 sm:%s2621]
    %vm2623 = vcmask 1047558
    %v2624 = vsel %vm2623, %v2622, %v2619
    %vm2625 = vcmask 523264
    %v2626 = vsel %vm2625, %v2624, %v2606
    %2627 = vrot.lane.b32.xlu0 %v2626, 64
    %v2628 = vpop.permute.xlu0 %2627
    %vm2629 = vcmask 523264
    %s2630 = scalar_lea.vmem %s1, 184
    %2631 = vst.msk [vmem:[%s2630] sm:$0xff] %vm2629, %v2628
    %vm2632 = vcmask 1048064
    %s2633 = scalar_lea.vmem %s1, 296
    %2634 = vst.msk [vmem:[%s2633] sm:$0xff] %vm2632, %v2628
    %s2635 = scalar_lea.vmem [#allocation2], 1409
    %s2636 = smov 3
    %v2637 = vld [vmem:[%s2635] ss:$16 sm:%s2636]
    %s2638 = scalar_lea.vmem [#allocation2], 1409
    %s2639 = smov 12
    %v2640 = vld [vmem:[%s2638] ss:$16 sm:%s2639]
    %vm2641 = vcmask 1043458
    %v2642 = vsel %vm2641, %v2640, %v2637
    %s2643 = scalar_lea.vmem [#allocation2], 1409
    %s2644 = smov 48
    %v2645 = vld [vmem:[%s2643] ss:$16 sm:%s2644]
    %vm2646 = vcmask 1045508
    %v2647 = vsel %vm2646, %v2645, %v2642
    %s2648 = scalar_lea.vmem [#allocation2], 1409
    %s2649 = smov 192
    %v2650 = vld [vmem:[%s2648] ss:$16 sm:%s2649]
    %vm2651 = vcmask 1047558
    %v2652 = vsel %vm2651, %v2650, %v2647
    %s2653 = scalar_lea.vmem [#allocation2], 1673
    %s2654 = smov 3
    %v2655 = vld [vmem:[%s2653] ss:$16 sm:%s2654]
    %s2656 = scalar_lea.vmem [#allocation2], 1673
    %s2657 = smov 12
    %v2658 = vld [vmem:[%s2656] ss:$16 sm:%s2657]
    %vm2659 = vcmask 1043458
    %v2660 = vsel %vm2659, %v2658, %v2655
    %s2661 = scalar_lea.vmem [#allocation2], 1673
    %s2662 = smov 48
    %v2663 = vld [vmem:[%s2661] ss:$16 sm:%s2662]
    %vm2664 = vcmask 1045508
    %v2665 = vsel %vm2664, %v2663, %v2660
    %s2666 = scalar_lea.vmem [#allocation2], 1673
    %s2667 = smov 192
    %v2668 = vld [vmem:[%s2666] ss:$16 sm:%s2667]
    %vm2669 = vcmask 1047558
    %v2670 = vsel %vm2669, %v2668, %v2665
    %vm2671 = vcmask 523264
    %v2672 = vsel %vm2671, %v2670, %v2652
    %2673 = vrot.lane.b32.xlu0 %v2672, 64
    %v2674 = vpop.permute.xlu0 %2673
    %vm2675 = vcmask 523264
    %s2676 = scalar_lea.vmem %s1, 280
    %2677 = vst.msk [vmem:[%s2676] sm:$0xff] %vm2675, %v2674
    %vm2678 = vcmask 1048064
    %s2679 = scalar_lea.vmem %s1, 328
    %2680 = vst.msk [vmem:[%s2679] sm:$0xff] %vm2678, %v2674
    %s2681 = scalar_lea.vmem [#allocation2], 1921
    %s2682 = smov 3
    %v2683 = vld [vmem:[%s2681] ss:$16 sm:%s2682]
    %s2684 = scalar_lea.vmem [#allocation2], 1921
    %s2685 = smov 12
    %v2686 = vld [vmem:[%s2684] ss:$16 sm:%s2685]
    %vm2687 = vcmask 1043458
    %v2688 = vsel %vm2687, %v2686, %v2683
    %s2689 = scalar_lea.vmem [#allocation2], 1921
    %s2690 = smov 48
    %v2691 = vld [vmem:[%s2689] ss:$16 sm:%s2690]
    %vm2692 = vcmask 1045508
    %v2693 = vsel %vm2692, %v2691, %v2688
    %s2694 = scalar_lea.vmem [#allocation2], 1921
    %s2695 = smov 192
    %v2696 = vld [vmem:[%s2694] ss:$16 sm:%s2695]
    %vm2697 = vcmask 1047558
    %v2698 = vsel %vm2697, %v2696, %v2693
    %s2699 = scalar_lea.vmem [#allocation2], 2049
    %s2700 = smov 3
    %v2701 = vld [vmem:[%s2699] ss:$16 sm:%s2700]
    %s2702 = scalar_lea.vmem [#allocation2], 2049
    %s2703 = smov 12
    %v2704 = vld [vmem:[%s2702] ss:$16 sm:%s2703]
    %vm2705 = vcmask 1043458
    %v2706 = vsel %vm2705, %v2704, %v2701
    %s2707 = scalar_lea.vmem [#allocation2], 2049
    %s2708 = smov 48
    %v2709 = vld [vmem:[%s2707] ss:$16 sm:%s2708]
    %vm2710 = vcmask 1045508
    %v2711 = vsel %vm2710, %v2709, %v2706
    %s2712 = scalar_lea.vmem [#allocation2], 2049
    %s2713 = smov 192
    %v2714 = vld [vmem:[%s2712] ss:$16 sm:%s2713]
    %vm2715 = vcmask 1047558
    %v2716 = vsel %vm2715, %v2714, %v2711
    %vm2717 = vcmask 523264
    %v2718 = vsel %vm2717, %v2716, %v2698
    %2719 = vrot.lane.b32.xlu0 %v2718, 64
    %v2720 = vpop.permute.xlu0 %2719
    %vm2721 = vcmask 523264
    %s2722 = scalar_lea.vmem %s1, 376
    %2723 = vst.msk [vmem:[%s2722] sm:$0xff] %vm2721, %v2720
    %vm2724 = vcmask 1048064
    %s2725 = scalar_lea.vmem %s1, 392
    %2726 = vst.msk [vmem:[%s2725] sm:$0xff] %vm2724, %v2720
    %s2727 = scalar_lea.vmem [#allocation2], 2185
    %s2728 = smov 3
    %v2729 = vld [vmem:[%s2727] ss:$16 sm:%s2728]
    %s2730 = scalar_lea.vmem [#allocation2], 2185
    %s2731 = smov 12
    %v2732 = vld [vmem:[%s2730] ss:$16 sm:%s2731]
    %vm2733 = vcmask 1043458
    %v2734 = vsel %vm2733, %v2732, %v2729
    %s2735 = scalar_lea.vmem [#allocation2], 2185
    %s2736 = smov 48
    %v2737 = vld [vmem:[%s2735] ss:$16 sm:%s2736]
    %vm2738 = vcmask 1045508
    %v2739 = vsel %vm2738, %v2737, %v2734
    %s2740 = scalar_lea.vmem [#allocation2], 2185
    %s2741 = smov 192
    %v2742 = vld [vmem:[%s2740] ss:$16 sm:%s2741]
    %vm2743 = vcmask 1047558
    %v2744 = vsel %vm2743, %v2742, %v2739
    %2745 = vrot.lane.b32.xlu0 %v2744, 64
    %v2746 = vpop.permute.xlu0 %2745
    %vm2747 = vcmask 1048064
    %s2748 = scalar_lea.vmem %s1, 424
    %2749 = vst.msk [vmem:[%s2748] sm:$0xff] %vm2747, %v2746
    %s2750 = scalar_lea.vmem [#allocation2], 9
    %s2751 = smov 3
    %v2752 = vld [vmem:[%s2750] ss:$16 sm:%s2751]
    %s2753 = scalar_lea.vmem [#allocation2], 9
    %s2754 = smov 12
    %v2755 = vld [vmem:[%s2753] ss:$16 sm:%s2754]
    %vm2756 = vcmask 1043458
    %v2757 = vsel %vm2756, %v2755, %v2752
    %s2758 = scalar_lea.vmem [#allocation2], 9
    %s2759 = smov 48
    %v2760 = vld [vmem:[%s2758] ss:$16 sm:%s2759]
    %vm2761 = vcmask 1045508
    %v2762 = vsel %vm2761, %v2760, %v2757
    %s2763 = scalar_lea.vmem [#allocation2], 9
    %s2764 = smov 192
    %v2765 = vld [vmem:[%s2763] ss:$16 sm:%s2764]
    %vm2766 = vcmask 1047558
    %v2767 = vsel %vm2766, %v2765, %v2762
    %2768 = vrot.lane.b32.xlu0 %v2767, 64
    %v2769 = vpop.permute.xlu0 %2768
    %vm2770 = vcmask 1048064
    %s2771 = scalar_lea.vmem %s1, 16
    %2772 = vst.msk [vmem:[%s2771] sm:$0xff] %vm2770, %v2769
    %s2773 = scalar_lea.vmem [#allocation2], 385
    %s2774 = smov 3
    %v2775 = vld [vmem:[%s2773] ss:$16 sm:%s2774]
    %s2776 = scalar_lea.vmem [#allocation2], 385
    %s2777 = smov 12
    %v2778 = vld [vmem:[%s2776] ss:$16 sm:%s2777]
    %vm2779 = vcmask 1043458
    %v2780 = vsel %vm2779, %v2778, %v2775
    %s2781 = scalar_lea.vmem [#allocation2], 385
    %s2782 = smov 48
    %v2783 = vld [vmem:[%s2781] ss:$16 sm:%s2782]
    %vm2784 = vcmask 1045508
    %v2785 = vsel %vm2784, %v2783, %v2780
    %s2786 = scalar_lea.vmem [#allocation2], 385
    %s2787 = smov 192
    %v2788 = vld [vmem:[%s2786] ss:$16 sm:%s2787]
    %vm2789 = vcmask 1047558
    %v2790 = vsel %vm2789, %v2788, %v2785
    %2791 = vrot.lane.b32.xlu0 %v2790, 64
    %v2792 = vpop.permute.xlu0 %2791
    %vm2793 = vcmask 1048064
    %s2794 = scalar_lea.vmem %s1, 80
    %2795 = vst.msk [vmem:[%s2794] sm:$0xff] %vm2793, %v2792
    %s2796 = scalar_lea.vmem [#allocation2], 521
    %s2797 = smov 3
    %v2798 = vld [vmem:[%s2796] ss:$16 sm:%s2797]
    %s2799 = scalar_lea.vmem [#allocation2], 521
    %s2800 = smov 12
    %v2801 = vld [vmem:[%s2799] ss:$16 sm:%s2800]
    %vm2802 = vcmask 1043458
    %v2803 = vsel %vm2802, %v2801, %v2798
    %s2804 = scalar_lea.vmem [#allocation2], 521
    %s2805 = smov 48
    %v2806 = vld [vmem:[%s2804] ss:$16 sm:%s2805]
    %vm2807 = vcmask 1045508
    %v2808 = vsel %vm2807, %v2806, %v2803
    %s2809 = scalar_lea.vmem [#allocation2], 521
    %s2810 = smov 192
    %v2811 = vld [vmem:[%s2809] ss:$16 sm:%s2810]
    %vm2812 = vcmask 1047558
    %v2813 = vsel %vm2812, %v2811, %v2808
    %2814 = vrot.lane.b32.xlu0 %v2813, 64
    %v2815 = vpop.permute.xlu0 %2814
    %vm2816 = vcmask 1048064
    %s2817 = scalar_lea.vmem %s1, 112
    %2818 = vst.msk [vmem:[%s2817] sm:$0xff] %vm2816, %v2815
    %s2819 = scalar_lea.vmem [#allocation2], 897
    %s2820 = smov 3
    %v2821 = vld [vmem:[%s2819] ss:$16 sm:%s2820]
    %s2822 = scalar_lea.vmem [#allocation2], 897
    %s2823 = smov 12
    %v2824 = vld [vmem:[%s2822] ss:$16 sm:%s2823]
    %vm2825 = vcmask 1043458
    %v2826 = vsel %vm2825, %v2824, %v2821
    %s2827 = scalar_lea.vmem [#allocation2], 897
    %s2828 = smov 48
    %v2829 = vld [vmem:[%s2827] ss:$16 sm:%s2828]
    %vm2830 = vcmask 1045508
    %v2831 = vsel %vm2830, %v2829, %v2826
    %s2832 = scalar_lea.vmem [#allocation2], 897
    %s2833 = smov 192
    %v2834 = vld [vmem:[%s2832] ss:$16 sm:%s2833]
    %vm2835 = vcmask 1047558
    %v2836 = vsel %vm2835, %v2834, %v2831
    %2837 = vrot.lane.b32.xlu0 %v2836, 64
    %v2838 = vpop.permute.xlu0 %2837
    %vm2839 = vcmask 1048064
    %s2840 = scalar_lea.vmem %s1, 176
    %2841 = vst.msk [vmem:[%s2840] sm:$0xff] %vm2839, %v2838
    %s2842 = scalar_lea.vmem [#allocation2], 1033
    %s2843 = smov 3
    %v2844 = vld [vmem:[%s2842] ss:$16 sm:%s2843]
    %s2845 = scalar_lea.vmem [#allocation2], 1033
    %s2846 = smov 12
    %v2847 = vld [vmem:[%s2845] ss:$16 sm:%s2846]
    %vm2848 = vcmask 1043458
    %v2849 = vsel %vm2848, %v2847, %v2844
    %s2850 = scalar_lea.vmem [#allocation2], 1033
    %s2851 = smov 48
    %v2852 = vld [vmem:[%s2850] ss:$16 sm:%s2851]
    %vm2853 = vcmask 1045508
    %v2854 = vsel %vm2853, %v2852, %v2849
    %s2855 = scalar_lea.vmem [#allocation2], 1033
    %s2856 = smov 192
    %v2857 = vld [vmem:[%s2855] ss:$16 sm:%s2856]
    %vm2858 = vcmask 1047558
    %v2859 = vsel %vm2858, %v2857, %v2854
    %2860 = vrot.lane.b32.xlu0 %v2859, 64
    %v2861 = vpop.permute.xlu0 %2860
    %vm2862 = vcmask 1048064
    %s2863 = scalar_lea.vmem %s1, 208
    %2864 = vst.msk [vmem:[%s2863] sm:$0xff] %vm2862, %v2861
    %s2865 = scalar_lea.vmem [#allocation2], 1409
    %s2866 = smov 3
    %v2867 = vld [vmem:[%s2865] ss:$16 sm:%s2866]
    %s2868 = scalar_lea.vmem [#allocation2], 1409
    %s2869 = smov 12
    %v2870 = vld [vmem:[%s2868] ss:$16 sm:%s2869]
    %vm2871 = vcmask 1043458
    %v2872 = vsel %vm2871, %v2870, %v2867
    %s2873 = scalar_lea.vmem [#allocation2], 1409
    %s2874 = smov 48
    %v2875 = vld [vmem:[%s2873] ss:$16 sm:%s2874]
    %vm2876 = vcmask 1045508
    %v2877 = vsel %vm2876, %v2875, %v2872
    %s2878 = scalar_lea.vmem [#allocation2], 1409
    %s2879 = smov 192
    %v2880 = vld [vmem:[%s2878] ss:$16 sm:%s2879]
    %vm2881 = vcmask 1047558
    %v2882 = vsel %vm2881, %v2880, %v2877
    %2883 = vrot.lane.b32.xlu0 %v2882, 64
    %v2884 = vpop.permute.xlu0 %2883
    %vm2885 = vcmask 1048064
    %s2886 = scalar_lea.vmem %s1, 272
    %2887 = vst.msk [vmem:[%s2886] sm:$0xff] %vm2885, %v2884
    %s2888 = scalar_lea.vmem [#allocation2], 1545
    %s2889 = smov 3
    %v2890 = vld [vmem:[%s2888] ss:$16 sm:%s2889]
    %s2891 = scalar_lea.vmem [#allocation2], 1545
    %s2892 = smov 12
    %v2893 = vld [vmem:[%s2891] ss:$16 sm:%s2892]
    %vm2894 = vcmask 1043458
    %v2895 = vsel %vm2894, %v2893, %v2890
    %s2896 = scalar_lea.vmem [#allocation2], 1545
    %s2897 = smov 48
    %v2898 = vld [vmem:[%s2896] ss:$16 sm:%s2897]
    %vm2899 = vcmask 1045508
    %v2900 = vsel %vm2899, %v2898, %v2895
    %s2901 = scalar_lea.vmem [#allocation2], 1545
    %s2902 = smov 192
    %v2903 = vld [vmem:[%s2901] ss:$16 sm:%s2902]
    %vm2904 = vcmask 1047558
    %v2905 = vsel %vm2904, %v2903, %v2900
    %2906 = vrot.lane.b32.xlu0 %v2905, 64
    %v2907 = vpop.permute.xlu0 %2906
    %vm2908 = vcmask 1048064
    %s2909 = scalar_lea.vmem %s1, 304
    %2910 = vst.msk [vmem:[%s2909] sm:$0xff] %vm2908, %v2907
    %s2911 = scalar_lea.vmem [#allocation2], 1921
    %s2912 = smov 3
    %v2913 = vld [vmem:[%s2911] ss:$16 sm:%s2912]
    %s2914 = scalar_lea.vmem [#allocation2], 1921
    %s2915 = smov 12
    %v2916 = vld [vmem:[%s2914] ss:$16 sm:%s2915]
    %vm2917 = vcmask 1043458
    %v2918 = vsel %vm2917, %v2916, %v2913
    %s2919 = scalar_lea.vmem [#allocation2], 1921
    %s2920 = smov 48
    %v2921 = vld [vmem:[%s2919] ss:$16 sm:%s2920]
    %vm2922 = vcmask 1045508
    %v2923 = vsel %vm2922, %v2921, %v2918
    %s2924 = scalar_lea.vmem [#allocation2], 1921
    %s2925 = smov 192
    %v2926 = vld [vmem:[%s2924] ss:$16 sm:%s2925]
    %vm2927 = vcmask 1047558
    %v2928 = vsel %vm2927, %v2926, %v2923
    %2929 = vrot.lane.b32.xlu0 %v2928, 64
    %v2930 = vpop.permute.xlu0 %2929
    %vm2931 = vcmask 1048064
    %s2932 = scalar_lea.vmem %s1, 368
    %2933 = vst.msk [vmem:[%s2932] sm:$0xff] %vm2931, %v2930
    %s2934 = scalar_lea.vmem [#allocation2], 2057
    %s2935 = smov 3
    %v2936 = vld [vmem:[%s2934] ss:$16 sm:%s2935]
    %s2937 = scalar_lea.vmem [#allocation2], 2057
    %s2938 = smov 12
    %v2939 = vld [vmem:[%s2937] ss:$16 sm:%s2938]
    %vm2940 = vcmask 1043458
    %v2941 = vsel %vm2940, %v2939, %v2936
    %s2942 = scalar_lea.vmem [#allocation2], 2057
    %s2943 = smov 48
    %v2944 = vld [vmem:[%s2942] ss:$16 sm:%s2943]
    %vm2945 = vcmask 1045508
    %v2946 = vsel %vm2945, %v2944, %v2941
    %s2947 = scalar_lea.vmem [#allocation2], 2057
    %s2948 = smov 192
    %v2949 = vld [vmem:[%s2947] ss:$16 sm:%s2948]
    %vm2950 = vcmask 1047558
    %v2951 = vsel %vm2950, %v2949, %v2946
    %2952 = vrot.lane.b32.xlu0 %v2951, 64
    %v2953 = vpop.permute.xlu0 %2952
    %vm2954 = vcmask 1048064
    %s2955 = scalar_lea.vmem %s1, 400
    %2956 = vst.msk [vmem:[%s2955] sm:$0xff] %vm2954, %v2953
    %s2957 = scalar_lea.vmem [#allocation2], 257
    %s2958 = smov 3
    %v2959 = vld [vmem:[%s2957] ss:$16 sm:%s2958]
    %s2960 = scalar_lea.vmem [#allocation2], 257
    %s2961 = smov 12
    %v2962 = vld [vmem:[%s2960] ss:$16 sm:%s2961]
    %vm2963 = vcmask 1043458
    %v2964 = vsel %vm2963, %v2962, %v2959
    %s2965 = scalar_lea.vmem [#allocation2], 257
    %s2966 = smov 48
    %v2967 = vld [vmem:[%s2965] ss:$16 sm:%s2966]
    %vm2968 = vcmask 1045508
    %v2969 = vsel %vm2968, %v2967, %v2964
    %s2970 = scalar_lea.vmem [#allocation2], 257
    %s2971 = smov 192
    %v2972 = vld [vmem:[%s2970] ss:$16 sm:%s2971]
    %vm2973 = vcmask 1047558
    %v2974 = vsel %vm2973, %v2972, %v2969
    %2975 = vrot.lane.b32.xlu0 %v2974, 64
    %v2976 = vpop.permute.xlu0 %2975
    %vm2977 = vcmask 1048064
    %s2978 = scalar_lea.vmem %s1, 56
    %2979 = vst.msk [vmem:[%s2978] sm:$0xff] %vm2977, %v2976
    %s2980 = scalar_lea.vmem [#allocation2], 393
    %s2981 = smov 3
    %v2982 = vld [vmem:[%s2980] ss:$16 sm:%s2981]
    %s2983 = scalar_lea.vmem [#allocation2], 393
    %s2984 = smov 12
    %v2985 = vld [vmem:[%s2983] ss:$16 sm:%s2984]
    %vm2986 = vcmask 1043458
    %v2987 = vsel %vm2986, %v2985, %v2982
    %s2988 = scalar_lea.vmem [#allocation2], 393
    %s2989 = smov 48
    %v2990 = vld [vmem:[%s2988] ss:$16 sm:%s2989]
    %vm2991 = vcmask 1045508
    %v2992 = vsel %vm2991, %v2990, %v2987
    %s2993 = scalar_lea.vmem [#allocation2], 393
    %s2994 = smov 192
    %v2995 = vld [vmem:[%s2993] ss:$16 sm:%s2994]
    %vm2996 = vcmask 1047558
    %v2997 = vsel %vm2996, %v2995, %v2992
    %2998 = vrot.lane.b32.xlu0 %v2997, 64
    %v2999 = vpop.permute.xlu0 %2998
    %vm3000 = vcmask 1048064
    %s3001 = scalar_lea.vmem %s1, 88
    %3002 = vst.msk [vmem:[%s3001] sm:$0xff] %vm3000, %v2999
    %s3003 = scalar_lea.vmem [#allocation2], 769
    %s3004 = smov 3
    %v3005 = vld [vmem:[%s3003] ss:$16 sm:%s3004]
    %s3006 = scalar_lea.vmem [#allocation2], 769
    %s3007 = smov 12
    %v3008 = vld [vmem:[%s3006] ss:$16 sm:%s3007]
    %vm3009 = vcmask 1043458
    %v3010 = vsel %vm3009, %v3008, %v3005
    %s3011 = scalar_lea.vmem [#allocation2], 769
    %s3012 = smov 48
    %v3013 = vld [vmem:[%s3011] ss:$16 sm:%s3012]
    %vm3014 = vcmask 1045508
    %v3015 = vsel %vm3014, %v3013, %v3010
    %s3016 = scalar_lea.vmem [#allocation2], 769
    %s3017 = smov 192
    %v3018 = vld [vmem:[%s3016] ss:$16 sm:%s3017]
    %vm3019 = vcmask 1047558
    %v3020 = vsel %vm3019, %v3018, %v3015
    %3021 = vrot.lane.b32.xlu0 %v3020, 64
    %v3022 = vpop.permute.xlu0 %3021
    %vm3023 = vcmask 1048064
    %s3024 = scalar_lea.vmem %s1, 152
    %3025 = vst.msk [vmem:[%s3024] sm:$0xff] %vm3023, %v3022
    %s3026 = scalar_lea.vmem [#allocation2], 905
    %s3027 = smov 3
    %v3028 = vld [vmem:[%s3026] ss:$16 sm:%s3027]
    %s3029 = scalar_lea.vmem [#allocation2], 905
    %s3030 = smov 12
    %v3031 = vld [vmem:[%s3029] ss:$16 sm:%s3030]
    %vm3032 = vcmask 1043458
    %v3033 = vsel %vm3032, %v3031, %v3028
    %s3034 = scalar_lea.vmem [#allocation2], 905
    %s3035 = smov 48
    %v3036 = vld [vmem:[%s3034] ss:$16 sm:%s3035]
    %vm3037 = vcmask 1045508
    %v3038 = vsel %vm3037, %v3036, %v3033
    %s3039 = scalar_lea.vmem [#allocation2], 905
    %s3040 = smov 192
    %v3041 = vld [vmem:[%s3039] ss:$16 sm:%s3040]
    %vm3042 = vcmask 1047558
    %v3043 = vsel %vm3042, %v3041, %v3038
    %3044 = vrot.lane.b32.xlu0 %v3043, 64
    %v3045 = vpop.permute.xlu0 %3044
    %vm3046 = vcmask 1048064
    %s3047 = scalar_lea.vmem %s1, 184
    %3048 = vst.msk [vmem:[%s3047] sm:$0xff] %vm3046, %v3045
    %s3049 = scalar_lea.vmem [#allocation2], 1281
    %s3050 = smov 3
    %v3051 = vld [vmem:[%s3049] ss:$16 sm:%s3050]
    %s3052 = scalar_lea.vmem [#allocation2], 1281
    %s3053 = smov 12
    %v3054 = vld [vmem:[%s3052] ss:$16 sm:%s3053]
    %vm3055 = vcmask 1043458
    %v3056 = vsel %vm3055, %v3054, %v3051
    %s3057 = scalar_lea.vmem [#allocation2], 1281
    %s3058 = smov 48
    %v3059 = vld [vmem:[%s3057] ss:$16 sm:%s3058]
    %vm3060 = vcmask 1045508
    %v3061 = vsel %vm3060, %v3059, %v3056
    %s3062 = scalar_lea.vmem [#allocation2], 1281
    %s3063 = smov 192
    %v3064 = vld [vmem:[%s3062] ss:$16 sm:%s3063]
    %vm3065 = vcmask 1047558
    %v3066 = vsel %vm3065, %v3064, %v3061
    %3067 = vrot.lane.b32.xlu0 %v3066, 64
    %v3068 = vpop.permute.xlu0 %3067
    %vm3069 = vcmask 1048064
    %s3070 = scalar_lea.vmem %s1, 248
    %3071 = vst.msk [vmem:[%s3070] sm:$0xff] %vm3069, %v3068
    %s3072 = scalar_lea.vmem [#allocation2], 1417
    %s3073 = smov 3
    %v3074 = vld [vmem:[%s3072] ss:$16 sm:%s3073]
    %s3075 = scalar_lea.vmem [#allocation2], 1417
    %s3076 = smov 12
    %v3077 = vld [vmem:[%s3075] ss:$16 sm:%s3076]
    %vm3078 = vcmask 1043458
    %v3079 = vsel %vm3078, %v3077, %v3074
    %s3080 = scalar_lea.vmem [#allocation2], 1417
    %s3081 = smov 48
    %v3082 = vld [vmem:[%s3080] ss:$16 sm:%s3081]
    %vm3083 = vcmask 1045508
    %v3084 = vsel %vm3083, %v3082, %v3079
    %s3085 = scalar_lea.vmem [#allocation2], 1417
    %s3086 = smov 192
    %v3087 = vld [vmem:[%s3085] ss:$16 sm:%s3086]
    %vm3088 = vcmask 1047558
    %v3089 = vsel %vm3088, %v3087, %v3084
    %3090 = vrot.lane.b32.xlu0 %v3089, 64
    %v3091 = vpop.permute.xlu0 %3090
    %vm3092 = vcmask 1048064
    %s3093 = scalar_lea.vmem %s1, 280
    %3094 = vst.msk [vmem:[%s3093] sm:$0xff] %vm3092, %v3091
    %s3095 = scalar_lea.vmem [#allocation2], 1793
    %s3096 = smov 3
    %v3097 = vld [vmem:[%s3095] ss:$16 sm:%s3096]
    %s3098 = scalar_lea.vmem [#allocation2], 1793
    %s3099 = smov 12
    %v3100 = vld [vmem:[%s3098] ss:$16 sm:%s3099]
    %vm3101 = vcmask 1043458
    %v3102 = vsel %vm3101, %v3100, %v3097
    %s3103 = scalar_lea.vmem [#allocation2], 1793
    %s3104 = smov 48
    %v3105 = vld [vmem:[%s3103] ss:$16 sm:%s3104]
    %vm3106 = vcmask 1045508
    %v3107 = vsel %vm3106, %v3105, %v3102
    %s3108 = scalar_lea.vmem [#allocation2], 1793
    %s3109 = smov 192
    %v3110 = vld [vmem:[%s3108] ss:$16 sm:%s3109]
    %vm3111 = vcmask 1047558
    %v3112 = vsel %vm3111, %v3110, %v3107
    %3113 = vrot.lane.b32.xlu0 %v3112, 64
    %v3114 = vpop.permute.xlu0 %3113
    %vm3115 = vcmask 1048064
    %s3116 = scalar_lea.vmem %s1, 344
    %3117 = vst.msk [vmem:[%s3116] sm:$0xff] %vm3115, %v3114
    %s3118 = scalar_lea.vmem [#allocation2], 1929
    %s3119 = smov 3
    %v3120 = vld [vmem:[%s3118] ss:$16 sm:%s3119]
    %s3121 = scalar_lea.vmem [#allocation2], 1929
    %s3122 = smov 12
    %v3123 = vld [vmem:[%s3121] ss:$16 sm:%s3122]
    %vm3124 = vcmask 1043458
    %v3125 = vsel %vm3124, %v3123, %v3120
    %s3126 = scalar_lea.vmem [#allocation2], 1929
    %s3127 = smov 48
    %v3128 = vld [vmem:[%s3126] ss:$16 sm:%s3127]
    %vm3129 = vcmask 1045508
    %v3130 = vsel %vm3129, %v3128, %v3125
    %s3131 = scalar_lea.vmem [#allocation2], 1929
    %s3132 = smov 192
    %v3133 = vld [vmem:[%s3131] ss:$16 sm:%s3132]
    %vm3134 = vcmask 1047558
    %v3135 = vsel %vm3134, %v3133, %v3130
    %3136 = vrot.lane.b32.xlu0 %v3135, 64
    %v3137 = vpop.permute.xlu0 %3136
    %vm3138 = vcmask 1048064
    %s3139 = scalar_lea.vmem %s1, 376
    %3140 = vst.msk [vmem:[%s3139] sm:$0xff] %vm3138, %v3137
    %3141 = vsyncpa [#allocation1], 1

// kernel: mul.32
$region0: #{mul.32}
  %s0 = inlined_call_operand.vmem [shape: f32[2,96,48], index: 0, kind: input, shape index: {}]
  %s1 = inlined_call_operand.vmem [shape: f32[192,48], index: 1, kind: output, shape index: {}]
  $region1: #{mul.32} parent=0
    #allocation0 [shape = 'u8[196608]{0}', space=vmem, size = 0x30000, scoped, tag = 'scoped mem for input reshape']
    %s3 = ssub.s32 4, 1
    %s4 = scalar_lea.vmem %s0, 94
    %v5 = vld [vmem:[%s4] sm:%s3]
    %s6 = scalar_lea.vmem [#allocation0], 376
    %7 = vst [vmem:[%s6] sm:%s3] %v5
    %s8 = scalar_lea.vmem %s0, 92
    %v9 = vld [vmem:[%s8] sm:%s3]
    %s10 = scalar_lea.vmem [#allocation0], 368
    %11 = vst [vmem:[%s10] sm:%s3] %v9
    %s12 = scalar_lea.vmem %s0, 90
    %v13 = vld [vmem:[%s12] sm:%s3]
    %s14 = scalar_lea.vmem [#allocation0], 360
    %15 = vst [vmem:[%s14] sm:%s3] %v13
    %s16 = scalar_lea.vmem %s0, 88
    %v17 = vld [vmem:[%s16] sm:%s3]
    %s18 = scalar_lea.vmem [#allocation0], 352
    %19 = vst [vmem:[%s18] sm:%s3] %v17
    %s20 = scalar_lea.vmem %s0, 86
    %v21 = vld [vmem:[%s20] sm:%s3]
    %s22 = scalar_lea.vmem [#allocation0], 344
    %23 = vst [vmem:[%s22] sm:%s3] %v21
    %s24 = scalar_lea.vmem %s0, 84
    %v25 = vld [vmem:[%s24] sm:%s3]
    %s26 = scalar_lea.vmem [#allocation0], 336
    %27 = vst [vmem:[%s26] sm:%s3] %v25
    %s28 = scalar_lea.vmem %s0, 82
    %v29 = vld [vmem:[%s28] sm:%s3]
    %s30 = scalar_lea.vmem [#allocation0], 328
    %31 = vst [vmem:[%s30] sm:%s3] %v29
    %s32 = scalar_lea.vmem %s0, 80
    %v33 = vld [vmem:[%s32] sm:%s3]
    %s34 = scalar_lea.vmem [#allocation0], 320
    %35 = vst [vmem:[%s34] sm:%s3] %v33
    %s36 = scalar_lea.vmem %s0, 78
    %v37 = vld [vmem:[%s36] sm:%s3]
    %s38 = scalar_lea.vmem [#allocation0], 312
    %39 = vst [vmem:[%s38] sm:%s3] %v37
    %s40 = scalar_lea.vmem %s0, 76
    %v41 = vld [vmem:[%s40] sm:%s3]
    %s42 = scalar_lea.vmem [#allocation0], 304
    %43 = vst [vmem:[%s42] sm:%s3] %v41
    %s44 = scalar_lea.vmem %s0, 74
    %v45 = vld [vmem:[%s44] sm:%s3]
    %s46 = scalar_lea.vmem [#allocation0], 296
    %47 = vst [vmem:[%s46] sm:%s3] %v45
    %s48 = scalar_lea.vmem %s0, 72
    %v49 = vld [vmem:[%s48] sm:%s3]
    %s50 = scalar_lea.vmem [#allocation0], 288
    %51 = vst [vmem:[%s50] sm:%s3] %v49
    %s52 = scalar_lea.vmem %s0, 70
    %v53 = vld [vmem:[%s52] sm:%s3]
    %s54 = scalar_lea.vmem [#allocation0], 280
    %55 = vst [vmem:[%s54] sm:%s3] %v53
    %s56 = scalar_lea.vmem %s0, 68
    %v57 = vld [vmem:[%s56] sm:%s3]
    %s58 = scalar_lea.vmem [#allocation0], 272
    %59 = vst [vmem:[%s58] sm:%s3] %v57
    %s60 = scalar_lea.vmem %s0, 66
    %v61 = vld [vmem:[%s60] sm:%s3]
    %s62 = scalar_lea.vmem [#allocation0], 264
    %63 = vst [vmem:[%s62] sm:%s3] %v61
    %s64 = scalar_lea.vmem %s0, 64
    %v65 = vld [vmem:[%s64] sm:%s3]
    %s66 = scalar_lea.vmem [#allocation0], 256
    %67 = vst [vmem:[%s66] sm:%s3] %v65
    %s68 = scalar_lea.vmem %s0, 62
    %v69 = vld [vmem:[%s68] sm:%s3]
    %s70 = scalar_lea.vmem [#allocation0], 248
    %71 = vst [vmem:[%s70] sm:%s3] %v69
    %s72 = scalar_lea.vmem %s0, 60
    %v73 = vld [vmem:[%s72] sm:%s3]
    %s74 = scalar_lea.vmem [#allocation0], 240
    %75 = vst [vmem:[%s74] sm:%s3] %v73
    %s76 = scalar_lea.vmem %s0, 58
    %v77 = vld [vmem:[%s76] sm:%s3]
    %s78 = scalar_lea.vmem [#allocation0], 232
    %79 = vst [vmem:[%s78] sm:%s3] %v77
    %s80 = scalar_lea.vmem %s0, 56
    %v81 = vld [vmem:[%s80] sm:%s3]
    %s82 = scalar_lea.vmem [#allocation0], 224
    %83 = vst [vmem:[%s82] sm:%s3] %v81
    %s84 = scalar_lea.vmem %s0, 54
    %v85 = vld [vmem:[%s84] sm:%s3]
    %s86 = scalar_lea.vmem [#allocation0], 216
    %87 = vst [vmem:[%s86] sm:%s3] %v85
    %s88 = scalar_lea.vmem %s0, 52
    %v89 = vld [vmem:[%s88] sm:%s3]
    %s90 = scalar_lea.vmem [#allocation0], 208
    %91 = vst [vmem:[%s90] sm:%s3] %v89
    %s92 = scalar_lea.vmem %s0, 50
    %v93 = vld [vmem:[%s92] sm:%s3]
    %s94 = scalar_lea.vmem [#allocation0], 200
    %95 = vst [vmem:[%s94] sm:%s3] %v93
    %s96 = scalar_lea.vmem %s0, 48
    %v97 = vld [vmem:[%s96] sm:%s3]
    %s98 = scalar_lea.vmem [#allocation0], 192
    %99 = vst [vmem:[%s98] sm:%s3] %v97
    %s100 = scalar_lea.vmem %s0, 46
    %v101 = vld [vmem:[%s100] sm:%s3]
    %s102 = scalar_lea.vmem [#allocation0], 184
    %103 = vst [vmem:[%s102] sm:%s3] %v101
    %s104 = scalar_lea.vmem %s0, 44
    %v105 = vld [vmem:[%s104] sm:%s3]
    %s106 = scalar_lea.vmem [#allocation0], 176
    %107 = vst [vmem:[%s106] sm:%s3] %v105
    %s108 = scalar_lea.vmem %s0, 42
    %v109 = vld [vmem:[%s108] sm:%s3]
    %s110 = scalar_lea.vmem [#allocation0], 168
    %111 = vst [vmem:[%s110] sm:%s3] %v109
    %s112 = scalar_lea.vmem %s0, 40
    %v113 = vld [vmem:[%s112] sm:%s3]
    %s114 = scalar_lea.vmem [#allocation0], 160
    %115 = vst [vmem:[%s114] sm:%s3] %v113
    %s116 = scalar_lea.vmem %s0, 38
    %v117 = vld [vmem:[%s116] sm:%s3]
    %s118 = scalar_lea.vmem [#allocation0], 152
    %119 = vst [vmem:[%s118] sm:%s3] %v117
    %s120 = scalar_lea.vmem %s0, 36
    %v121 = vld [vmem:[%s120] sm:%s3]
    %s122 = scalar_lea.vmem [#allocation0], 144
    %123 = vst [vmem:[%s122] sm:%s3] %v121
    %s124 = scalar_lea.vmem %s0, 34
    %v125 = vld [vmem:[%s124] sm:%s3]
    %s126 = scalar_lea.vmem [#allocation0], 136
    %127 = vst [vmem:[%s126] sm:%s3] %v125
    %s128 = scalar_lea.vmem %s0, 32
    %v129 = vld [vmem:[%s128] sm:%s3]
    %s130 = scalar_lea.vmem [#allocation0], 128
    %131 = vst [vmem:[%s130] sm:%s3] %v129
    %s132 = scalar_lea.vmem %s0, 30
    %v133 = vld [vmem:[%s132] sm:%s3]
    %s134 = scalar_lea.vmem [#allocation0], 120
    %135 = vst [vmem:[%s134] sm:%s3] %v133
    %s136 = scalar_lea.vmem %s0, 28
    %v137 = vld [vmem:[%s136] sm:%s3]
    %s138 = scalar_lea.vmem [#allocation0], 112
    %139 = vst [vmem:[%s138] sm:%s3] %v137
    %s140 = scalar_lea.vmem %s0, 26
    %v141 = vld [vmem:[%s140] sm:%s3]
    %s142 = scalar_lea.vmem [#allocation0], 104
    %143 = vst [vmem:[%s142] sm:%s3] %v141
    %s144 = scalar_lea.vmem %s0, 24
    %v145 = vld [vmem:[%s144] sm:%s3]
    %s146 = scalar_lea.vmem [#allocation0], 96
    %147 = vst [vmem:[%s146] sm:%s3] %v145
    %s148 = scalar_lea.vmem %s0, 22
    %v149 = vld [vmem:[%s148] sm:%s3]
    %s150 = scalar_lea.vmem [#allocation0], 88
    %151 = vst [vmem:[%s150] sm:%s3] %v149
    %s152 = scalar_lea.vmem %s0, 20
    %v153 = vld [vmem:[%s152] sm:%s3]
    %s154 = scalar_lea.vmem [#allocation0], 80
    %155 = vst [vmem:[%s154] sm:%s3] %v153
    %s156 = scalar_lea.vmem %s0, 18
    %v157 = vld [vmem:[%s156] sm:%s3]
    %s158 = scalar_lea.vmem [#allocation0], 72
    %159 = vst [vmem:[%s158] sm:%s3] %v157
    %s160 = scalar_lea.vmem %s0, 16
    %v161 = vld [vmem:[%s160] sm:%s3]
    %s162 = scalar_lea.vmem [#allocation0], 64
    %163 = vst [vmem:[%s162] sm:%s3] %v161
    %s164 = scalar_lea.vmem %s0, 14
    %v165 = vld [vmem:[%s164] sm:%s3]
    %s166 = scalar_lea.vmem [#allocation0], 56
    %167 = vst [vmem:[%s166] sm:%s3] %v165
    %s168 = scalar_lea.vmem %s0, 12
    %v169 = vld [vmem:[%s168] sm:%s3]
    %s170 = scalar_lea.vmem [#allocation0], 48
    %171 = vst [vmem:[%s170] sm:%s3] %v169
    %s172 = scalar_lea.vmem %s0, 10
    %v173 = vld [vmem:[%s172] sm:%s3]
    %s174 = scalar_lea.vmem [#allocation0], 40
    %175 = vst [vmem:[%s174] sm:%s3] %v173
    %s176 = scalar_lea.vmem %s0, 8
    %v177 = vld [vmem:[%s176] sm:%s3]
    %s178 = scalar_lea.vmem [#allocation0], 32
    %179 = vst [vmem:[%s178] sm:%s3] %v177
    %s180 = scalar_lea.vmem %s0, 6
    %v181 = vld [vmem:[%s180] sm:%s3]
    %s182 = scalar_lea.vmem [#allocation0], 24
    %183 = vst [vmem:[%s182] sm:%s3] %v181
    %s184 = scalar_lea.vmem %s0, 4
    %v185 = vld [vmem:[%s184] sm:%s3]
    %s186 = scalar_lea.vmem [#allocation0], 16
    %187 = vst [vmem:[%s186] sm:%s3] %v185
    %s188 = scalar_lea.vmem %s0, 2
    %v189 = vld [vmem:[%s188] sm:%s3]
    %s190 = scalar_lea.vmem [#allocation0], 8
    %191 = vst [vmem:[%s190] sm:%s3] %v189
    %v192 = vld [vmem:[%s0] sm:%s3]
    %193 = vst [vmem:[#allocation0] sm:%s3] %v192
    %v194 = vld [vmem:[#allocation0] ss:$8 sm:$0xf]
    %v195 = vld [vmem:[#allocation0] ss:$8 sm:$0xf0]
    %vm196 = vcmask 1047556
    %v197 = vsel %vm196, %v195, %v194
    %vm198 = vcmask 785408
    %199 = vst.msk [vmem:[%s1] sm:$0xff] %vm198, %v197
    %s200 = scalar_lea.vmem [#allocation0], 64
    %v201 = vld [vmem:[%s200] ss:$8 sm:$0xf]
    %s202 = scalar_lea.vmem [#allocation0], 64
    %v203 = vld [vmem:[%s202] ss:$8 sm:$0xf0]
    %vm204 = vcmask 1047556
    %v205 = vsel %vm204, %v203, %v201
    %vm206 = vcmask 785408
    %s207 = scalar_lea.vmem %s1, 16
    %208 = vst.msk [vmem:[%s207] sm:$0xff] %vm206, %v205
    %s209 = scalar_lea.vmem [#allocation0], 128
    %v210 = vld [vmem:[%s209] ss:$8 sm:$0xf]
    %s211 = scalar_lea.vmem [#allocation0], 128
    %v212 = vld [vmem:[%s211] ss:$8 sm:$0xf0]
    %vm213 = vcmask 1047556
    %v214 = vsel %vm213, %v212, %v210
    %vm215 = vcmask 785408
    %s216 = scalar_lea.vmem %s1, 32
    %217 = vst.msk [vmem:[%s216] sm:$0xff] %vm215, %v214
    %s218 = scalar_lea.vmem [#allocation0], 192
    %v219 = vld [vmem:[%s218] ss:$8 sm:$0xf]
    %s220 = scalar_lea.vmem [#allocation0], 192
    %v221 = vld [vmem:[%s220] ss:$8 sm:$0xf0]
    %vm222 = vcmask 1047556
    %v223 = vsel %vm222, %v221, %v219
    %vm224 = vcmask 785408
    %s225 = scalar_lea.vmem %s1, 48
    %226 = vst.msk [vmem:[%s225] sm:$0xff] %vm224, %v223
    %s227 = scalar_lea.vmem [#allocation0], 256
    %v228 = vld [vmem:[%s227] ss:$8 sm:$0xf]
    %s229 = scalar_lea.vmem [#allocation0], 256
    %v230 = vld [vmem:[%s229] ss:$8 sm:$0xf0]
    %vm231 = vcmask 1047556
    %v232 = vsel %vm231, %v230, %v228
    %vm233 = vcmask 785408
    %s234 = scalar_lea.vmem %s1, 64
    %235 = vst.msk [vmem:[%s234] sm:$0xff] %vm233, %v232
    %s236 = scalar_lea.vmem [#allocation0], 320
    %v237 = vld [vmem:[%s236] ss:$8 sm:$0xf]
    %s238 = scalar_lea.vmem [#allocation0], 320
    %v239 = vld [vmem:[%s238] ss:$8 sm:$0xf0]
    %vm240 = vcmask 1047556
    %v241 = vsel %vm240, %v239, %v237
    %vm242 = vcmask 785408
    %s243 = scalar_lea.vmem %s1, 80
    %244 = vst.msk [vmem:[%s243] sm:$0xff] %vm242, %v241
    %s245 = scalar_lea.vmem [#allocation0], 1
    %v246 = vld [vmem:[%s245] ss:$8 sm:$0xf]
    %s247 = scalar_lea.vmem [#allocation0], 1
    %v248 = vld [vmem:[%s247] ss:$8 sm:$0xf0]
    %vm249 = vcmask 1047556
    %v250 = vsel %vm249, %v248, %v246
    %s251 = scalar_lea.vmem [#allocation0], 1
    %v252 = vld [vmem:[%s251] ss:$8 sm:$0xf]
    %s253 = scalar_lea.vmem [#allocation0], 1
    %v254 = vld [vmem:[%s253] ss:$8 sm:$0xf0]
    %vm255 = vcmask 1047556
    %v256 = vsel %vm255, %v254, %v252
    %vm257 = vcmask 261120
    %v258 = vsel %vm257, %v256, %v250
    %259 = vrot.lane.b32.xlu0 %v258, 96
    %v260 = vpop.permute.xlu0 %259
    %vm261 = vcmask 523264
    %s262 = scalar_lea.vmem %s1, 8
    %263 = vst.msk [vmem:[%s262] sm:$0xff] %vm261, %v260
    %vm264 = vcmask 1048320
    %265 = vst.msk [vmem:[%s1] sm:$0xff] %vm264, %v260
    %s266 = scalar_lea.vmem [#allocation0], 129
    %v267 = vld [vmem:[%s266] ss:$8 sm:$0xf]
    %s268 = scalar_lea.vmem [#allocation0], 129
    %v269 = vld [vmem:[%s268] ss:$8 sm:$0xf0]
    %vm270 = vcmask 1047556
    %v271 = vsel %vm270, %v269, %v267
    %s272 = scalar_lea.vmem [#allocation0], 129
    %v273 = vld [vmem:[%s272] ss:$8 sm:$0xf]
    %s274 = scalar_lea.vmem [#allocation0], 129
    %v275 = vld [vmem:[%s274] ss:$8 sm:$0xf0]
    %vm276 = vcmask 1047556
    %v277 = vsel %vm276, %v275, %v273
    %vm278 = vcmask 261120
    %v279 = vsel %vm278, %v277, %v271
    %280 = vrot.lane.b32.xlu0 %v279, 96
    %v281 = vpop.permute.xlu0 %280
    %vm282 = vcmask 523264
    %s283 = scalar_lea.vmem %s1, 40
    %284 = vst.msk [vmem:[%s283] sm:$0xff] %vm282, %v281
    %vm285 = vcmask 1048320
    %s286 = scalar_lea.vmem %s1, 32
    %287 = vst.msk [vmem:[%s286] sm:$0xff] %vm285, %v281
    %s288 = scalar_lea.vmem [#allocation0], 257
    %v289 = vld [vmem:[%s288] ss:$8 sm:$0xf]
    %s290 = scalar_lea.vmem [#allocation0], 257
    %v291 = vld [vmem:[%s290] ss:$8 sm:$0xf0]
    %vm292 = vcmask 1047556
    %v293 = vsel %vm292, %v291, %v289
    %s294 = scalar_lea.vmem [#allocation0], 257
    %v295 = vld [vmem:[%s294] ss:$8 sm:$0xf]
    %s296 = scalar_lea.vmem [#allocation0], 257
    %v297 = vld [vmem:[%s296] ss:$8 sm:$0xf0]
    %vm298 = vcmask 1047556
    %v299 = vsel %vm298, %v297, %v295
    %vm300 = vcmask 261120
    %v301 = vsel %vm300, %v299, %v293
    %302 = vrot.lane.b32.xlu0 %v301, 96
    %v303 = vpop.permute.xlu0 %302
    %vm304 = vcmask 523264
    %s305 = scalar_lea.vmem %s1, 72
    %306 = vst.msk [vmem:[%s305] sm:$0xff] %vm304, %v303
    %vm307 = vcmask 1048320
    %s308 = scalar_lea.vmem %s1, 64
    %309 = vst.msk [vmem:[%s308] sm:$0xff] %vm307, %v303
    %s310 = scalar_lea.vmem [#allocation0], 65
    %v311 = vld [vmem:[%s310] ss:$8 sm:$0xf]
    %s312 = scalar_lea.vmem [#allocation0], 65
    %v313 = vld [vmem:[%s312] ss:$8 sm:$0xf0]
    %vm314 = vcmask 1047556
    %v315 = vsel %vm314, %v313, %v311
    %s316 = scalar_lea.vmem [#allocation0], 65
    %v317 = vld [vmem:[%s316] ss:$8 sm:$0xf]
    %s318 = scalar_lea.vmem [#allocation0], 65
    %v319 = vld [vmem:[%s318] ss:$8 sm:$0xf0]
    %vm320 = vcmask 1047556
    %v321 = vsel %vm320, %v319, %v317
    %vm322 = vcmask 261120
    %v323 = vsel %vm322, %v321, %v315
    %324 = vrot.lane.b32.xlu0 %v323, 96
    %v325 = vpop.permute.xlu0 %324
    %vm326 = vcmask 523264
    %s327 = scalar_lea.vmem %s1, 24
    %328 = vst.msk [vmem:[%s327] sm:$0xff] %vm326, %v325
    %vm329 = vcmask 1048320
    %s330 = scalar_lea.vmem %s1, 16
    %331 = vst.msk [vmem:[%s330] sm:$0xff] %vm329, %v325
    %s332 = scalar_lea.vmem [#allocation0], 193
    %v333 = vld [vmem:[%s332] ss:$8 sm:$0xf]
    %s334 = scalar_lea.vmem [#allocation0], 193
    %v335 = vld [vmem:[%s334] ss:$8 sm:$0xf0]
    %vm336 = vcmask 1047556
    %v337 = vsel %vm336, %v335, %v333
    %s338 = scalar_lea.vmem [#allocation0], 193
    %v339 = vld [vmem:[%s338] ss:$8 sm:$0xf]
    %s340 = scalar_lea.vmem [#allocation0], 193
    %v341 = vld [vmem:[%s340] ss:$8 sm:$0xf0]
    %vm342 = vcmask 1047556
    %v343 = vsel %vm342, %v341, %v339
    %vm344 = vcmask 261120
    %v345 = vsel %vm344, %v343, %v337
    %346 = vrot.lane.b32.xlu0 %v345, 96
    %v347 = vpop.permute.xlu0 %346
    %vm348 = vcmask 523264
    %s349 = scalar_lea.vmem %s1, 56
    %350 = vst.msk [vmem:[%s349] sm:$0xff] %vm348, %v347
    %vm351 = vcmask 1048320
    %s352 = scalar_lea.vmem %s1, 48
    %353 = vst.msk [vmem:[%s352] sm:$0xff] %vm351, %v347
    %s354 = scalar_lea.vmem [#allocation0], 321
    %v355 = vld [vmem:[%s354] ss:$8 sm:$0xf]
    %s356 = scalar_lea.vmem [#allocation0], 321
    %v357 = vld [vmem:[%s356] ss:$8 sm:$0xf0]
    %vm358 = vcmask 1047556
    %v359 = vsel %vm358, %v357, %v355
    %s360 = scalar_lea.vmem [#allocation0], 321
    %v361 = vld [vmem:[%s360] ss:$8 sm:$0xf]
    %s362 = scalar_lea.vmem [#allocation0], 321
    %v363 = vld [vmem:[%s362] ss:$8 sm:$0xf0]
    %vm364 = vcmask 1047556
    %v365 = vsel %vm364, %v363, %v361
    %vm366 = vcmask 261120
    %v367 = vsel %vm366, %v365, %v359
    %368 = vrot.lane.b32.xlu0 %v367, 96
    %v369 = vpop.permute.xlu0 %368
    %vm370 = vcmask 523264
    %s371 = scalar_lea.vmem %s1, 88
    %372 = vst.msk [vmem:[%s371] sm:$0xff] %vm370, %v369
    %vm373 = vcmask 1048320
    %s374 = scalar_lea.vmem %s1, 80
    %375 = vst.msk [vmem:[%s374] sm:$0xff] %vm373, %v369

// kernel: tile.18
$region0: #{tile.18}
  #allocation0 [shape = 's32[1]{0}', space=sflag, size = 0x4, scoped, tag = 'scoped memory for tile.18']
  %s0 = inlined_call_operand.vmem [shape: f32[144], index: 0, kind: input, shape index: {}]
  %s1 = inlined_call_operand.vmem [shape: f32[8,144], index: 1, kind: output, shape index: {}]
  // Predicated region
  $region2: #{tile.18} parent=0 // pred_check
    _
  $region3: #{tile.18} parent=0 // pred_check_branch
    %3 = sbr.rel (0) target = $region5
  $region4: #{tile.18} parent=0 // pred_region
    _
  $region5: #{tile.18} parent=0 // pred_fallthru
    _
  %v4 = vld [vmem:[%s0] ss:$0 sm:$0xff]
  %5 = vst [vmem:[%s1] sm:$0xff] %v4
  %s6 = scalar_lea.vmem %s0, 1
  %v7 = vld [vmem:[%s6] ss:$0 sm:$0xff]
  %s8 = scalar_lea.vmem %s1, 8
  %9 = vst [vmem:[%s8] sm:$0xff] %v7

// kernel: tile.19
$region0: #{tile.19}
  %s0 = inlined_call_operand.vmem [shape: f32[8,144], index: 0, kind: input, shape index: {}]
  %s1 = inlined_call_operand.vmem [shape: f32[1152], index: 1, kind: output, shape index: {}]
  %s2 = scalar_lea.vmem %s0, 8
  %v3 = vld [vmem:[%s2] sm:$0x1]
  %vm4 = vcmask 130048
  %s5 = scalar_lea.vmem %s1, 1
  %6 = vst.msk [vmem:[%s5] sm:$0x1] %vm4, %v3
  %v7 = vld [vmem:[%s0] sm:$0x1]
  %8 = vst [vmem:[%s1] sm:$0x1] %v7
  %s9 = scalar_lea.vmem %s0, 7
  %v10 = vld [vmem:[%s9] sm:$0x1]
  %s11 = scalar_lea.vmem %s0, 7
  %s12 = smov 3
  %v13 = vld [vmem:[%s11] ss:$8 sm:%s12]
  %vm14 = vcmask 130048
  %v15 = vsel %vm14, %v13, %v10
  %16 = vrot.lane.b32.xlu0 %v15, 112
  %v17 = vpop.permute.xlu0 %16
  %vm18 = vcmask 916480
  %s19 = scalar_lea.vmem %s1, 8
  %20 = vst.msk [vmem:[%s19] sm:$0x1] %vm18, %v17
  %vm21 = vcmask 1048448
  %s22 = scalar_lea.vmem %s1, 7
  %23 = vst.msk [vmem:[%s22] sm:$0x3] %vm21, %v17
  %s24 = scalar_lea.vmem %s0, 6
  %v25 = vld [vmem:[%s24] sm:$0x1]
  %s26 = scalar_lea.vmem %s0, 14
  %v27 = vld [vmem:[%s26] sm:$0x1]
  %vm28 = vcmask 261120
  %v29 = vsel %vm28, %v27, %v25
  %30 = vrot.lane.b32.xlu0 %v29, 96
  %v31 = vpop.permute.xlu0 %30
  %vm32 = vcmask 785408
  %s33 = scalar_lea.vmem %s1, 7
  %34 = vst.msk [vmem:[%s33] sm:$0x1] %vm32, %v31
  %vm35 = vcmask 917248
  %s36 = scalar_lea.vmem %s1, 7
  %37 = vst.msk [vmem:[%s36] sm:$0x1] %vm35, %v31
  %s38 = scalar_lea.vmem %s0, 6
  %v39 = vld [vmem:[%s38] sm:$0x1]
  %40 = vrot.lane.b32.xlu0 %v39, 96
  %v41 = vpop.permute.xlu0 %40
  %vm42 = vcmask 1048320
  %s43 = scalar_lea.vmem %s1, 6
  %44 = vst.msk [vmem:[%s43] sm:$0x1] %vm42, %v41
  %s45 = scalar_lea.vmem %s0, 5
  %v46 = vld [vmem:[%s45] sm:$0x1]
  %s47 = scalar_lea.vmem %s0, 13
  %v48 = vld [vmem:[%s47] sm:$0x1]
  %vm49 = vcmask 392192
  %v50 = vsel %vm49, %v48, %v46
  %51 = vrot.lane.b32.xlu0 %v50, 80
  %v52 = vpop.permute.xlu0 %51
  %vm53 = vcmask 654336
  %s54 = scalar_lea.vmem %s1, 6
  %55 = vst.msk [vmem:[%s54] sm:$0x1] %vm53, %v52
  %vm56 = vcmask 786048
  %s57 = scalar_lea.vmem %s1, 6
  %58 = vst.msk [vmem:[%s57] sm:$0x1] %vm56, %v52
  %s59 = scalar_lea.vmem %s0, 5
  %v60 = vld [vmem:[%s59] sm:$0x1]
  %61 = vrot.lane.b32.xlu0 %v60, 80
  %v62 = vpop.permute.xlu0 %61
  %vm63 = vcmask 1048192
  %s64 = scalar_lea.vmem %s1, 5
  %65 = vst.msk [vmem:[%s64] sm:$0x1] %vm63, %v62
  %s66 = scalar_lea.vmem %s0, 4
  %v67 = vld [vmem:[%s66] sm:$0x1]
  %s68 = scalar_lea.vmem %s0, 12
  %v69 = vld [vmem:[%s68] sm:$0x1]
  %vm70 = vcmask 523264
  %v71 = vsel %vm70, %v69, %v67
  %72 = vrot.lane.b32.xlu0 %v71, 64
  %v73 = vpop.permute.xlu0 %72
  %vm74 = vcmask 523264
  %s75 = scalar_lea.vmem %s1, 5
  %76 = vst.msk [vmem:[%s75] sm:$0x1] %vm74, %v73
  %vm77 = vcmask 654848
  %s78 = scalar_lea.vmem %s1, 5
  %79 = vst.msk [vmem:[%s78] sm:$0x1] %vm77, %v73
  %s80 = scalar_lea.vmem %s0, 4
  %v81 = vld [vmem:[%s80] sm:$0x1]
  %82 = vrot.lane.b32.xlu0 %v81, 64
  %v83 = vpop.permute.xlu0 %82
  %vm84 = vcmask 1048064
  %s85 = scalar_lea.vmem %s1, 4
  %86 = vst.msk [vmem:[%s85] sm:$0x1] %vm84, %v83
  %s87 = scalar_lea.vmem %s0, 3
  %v88 = vld [vmem:[%s87] sm:$0x1]
  %s89 = scalar_lea.vmem %s0, 11
  %v90 = vld [vmem:[%s89] sm:$0x1]
  %vm91 = vcmask 654336
  %v92 = vsel %vm91, %v90, %v88
  %93 = vrot.lane.b32.xlu0 %v92, 48
  %v94 = vpop.permute.xlu0 %93
  %vm95 = vcmask 392192
  %s96 = scalar_lea.vmem %s1, 4
  %97 = vst.msk [vmem:[%s96] sm:$0x1] %vm95, %v94
  %vm98 = vcmask 523648
  %s99 = scalar_lea.vmem %s1, 4
  %100 = vst.msk [vmem:[%s99] sm:$0x1] %vm98, %v94
  %s101 = scalar_lea.vmem %s0, 3
  %v102 = vld [vmem:[%s101] sm:$0x1]
  %103 = vrot.lane.b32.xlu0 %v102, 48
  %v104 = vpop.permute.xlu0 %103
  %vm105 = vcmask 1047936
  %s106 = scalar_lea.vmem %s1, 3
  %107 = vst.msk [vmem:[%s106] sm:$0x1] %vm105, %v104
  %s108 = scalar_lea.vmem %s0, 2
  %v109 = vld [vmem:[%s108] sm:$0x1]
  %s110 = scalar_lea.vmem %s0, 10
  %v111 = vld [vmem:[%s110] sm:$0x1]
  %vm112 = vcmask 785408
  %v113 = vsel %vm112, %v111, %v109
  %114 = vrot.lane.b32.xlu0 %v113, 32
  %v115 = vpop.permute.xlu0 %114
  %vm116 = vcmask 261120
  %s117 = scalar_lea.vmem %s1, 3
  %118 = vst.msk [vmem:[%s117] sm:$0x1] %vm116, %v115
  %vm119 = vcmask 392448
  %s120 = scalar_lea.vmem %s1, 3
  %121 = vst.msk [vmem:[%s120] sm:$0x1] %vm119, %v115
  %s122 = scalar_lea.vmem %s0, 2
  %v123 = vld [vmem:[%s122] sm:$0x1]
  %124 = vrot.lane.b32.xlu0 %v123, 32
  %v125 = vpop.permute.xlu0 %124
  %vm126 = vcmask 1047808
  %s127 = scalar_lea.vmem %s1, 2
  %128 = vst.msk [vmem:[%s127] sm:$0x1] %vm126, %v125
  %s129 = scalar_lea.vmem %s0, 1
  %v130 = vld [vmem:[%s129] sm:$0x1]
  %s131 = scalar_lea.vmem %s0, 9
  %v132 = vld [vmem:[%s131] sm:$0x1]
  %vm133 = vcmask 916480
  %v134 = vsel %vm133, %v132, %v130
  %135 = vrot.lane.b32.xlu0 %v134, 16
  %v136 = vpop.permute.xlu0 %135
  %vm137 = vcmask 130048
  %s138 = scalar_lea.vmem %s1, 2
  %139 = vst.msk [vmem:[%s138] sm:$0x1] %vm137, %v136
  %vm140 = vcmask 261248
  %s141 = scalar_lea.vmem %s1, 2
  %142 = vst.msk [vmem:[%s141] sm:$0x1] %vm140, %v136
  %s143 = scalar_lea.vmem %s0, 1
  %v144 = vld [vmem:[%s143] sm:$0x1]
  %145 = vrot.lane.b32.xlu0 %v144, 16
  %v146 = vpop.permute.xlu0 %145
  %vm147 = vcmask 1047680
  %s148 = scalar_lea.vmem %s1, 1
  %149 = vst.msk [vmem:[%s148] sm:$0x1] %vm147, %v146

// kernel: tile.23
$region0: #{tile.23}
  #allocation0 [shape = 's32[1]{0}', space=sflag, size = 0x4, scoped, tag = 'scoped memory for tile.23']
  %s0 = inlined_call_operand.vmem [shape: f32[96], index: 0, kind: input, shape index: {}]
  %s1 = inlined_call_operand.vmem [shape: f32[4,96], index: 1, kind: output, shape index: {}]
  // Predicated region
  $region2: #{tile.23} parent=0 // pred_check
    _
  $region3: #{tile.23} parent=0 // pred_check_branch
    %3 = sbr.rel (0) target = $region5
  $region4: #{tile.23} parent=0 // pred_region
    _
  $region5: #{tile.23} parent=0 // pred_fallthru
    _
  %v4 = vld [vmem:[%s0] ss:$0 sm:$0xff]
  %5 = vst [vmem:[%s1] sm:$0xf] %v4

// kernel: tile.24
$region0: #{tile.24}
  %s0 = inlined_call_operand.vmem [shape: f32[4,96], index: 0, kind: input, shape index: {}]
  %s1 = inlined_call_operand.vmem [shape: f32[384], index: 1, kind: output, shape index: {}]
  $region1: #{tile.24} parent=0
    #allocation0 [shape = 'u8[4096]{0}', space=vmem, size = 0x1000, scoped, tag = 'scoped mem for output reshape']
    #allocation1 [shape = 'u8[4096]{0}', space=vmem, size = 0x1000, scoped, tag = 'scoped mem for input reshape']
    %s3 = ssub.s32 16, 1
    %v4 = vld [vmem:[%s0] sm:%s3]
    %5 = vst [vmem:[#allocation1] sm:%s3] %v4
    %v6 = vld [vmem:[#allocation1] sm:$0x1]
    %vm7 = vcmask 785408
    %8 = vst.msk [vmem:[#allocation0] sm:$0x1] %vm7, %v6
    %s9 = scalar_lea.vmem [#allocation1], 1
    %v10 = vld [vmem:[%s9] sm:$0x1]
    %s11 = scalar_lea.vmem [#allocation1], 1
    %v12 = vld [vmem:[%s11] sm:$0x1]
    %vm13 = vcmask 261120
    %v14 = vsel %vm13, %v12, %v10
    %15 = vrot.lane.b32.xlu0 %v14, 96
    %v16 = vpop.permute.xlu0 %15
    %vm17 = vcmask 523264
    %s18 = scalar_lea.vmem [#allocation0], 1
    %19 = vst.msk [vmem:[%s18] sm:$0x1] %vm17, %v16
    %vm20 = vcmask 1048320
    %21 = vst.msk [vmem:[#allocation0] sm:$0x1] %vm20, %v16
    %s22 = scalar_lea.vmem [#allocation1], 2
    %v23 = vld [vmem:[%s22] sm:$0x1]
    %s24 = scalar_lea.vmem [#allocation1], 2
    %v25 = vld [vmem:[%s24] sm:$0x1]
    %vm26 = vcmask 523264
    %v27 = vsel %vm26, %v25, %v23
    %28 = vrot.lane.b32.xlu0 %v27, 64
    %v29 = vpop.permute.xlu0 %28
    %vm30 = vcmask 261120
    %s31 = scalar_lea.vmem [#allocation0], 2
    %32 = vst.msk [vmem:[%s31] sm:$0x1] %vm30, %v29
    %vm33 = vcmask 1048064
    %s34 = scalar_lea.vmem [#allocation0], 1
    %35 = vst.msk [vmem:[%s34] sm:$0x1] %vm33, %v29
    %s36 = scalar_lea.vmem [#allocation1], 3
    %v37 = vld [vmem:[%s36] sm:$0x1]
    %38 = vrot.lane.b32.xlu0 %v37, 32
    %v39 = vpop.permute.xlu0 %38
    %vm40 = vcmask 1047808
    %s41 = scalar_lea.vmem [#allocation0], 2
    %42 = vst.msk [vmem:[%s41] sm:$0x1] %vm40, %v39
    %s44 = ssub.s32 16, 1
    %v45 = vld [vmem:[#allocation0] sm:%s44]
    %s47 = ssub.s32 16, 1
    %48 = vst [vmem:[%s1] sm:%s47] %v45

// kernel: tile.28
$region0: #{tile.28}
  #allocation0 [shape = 's32[1]{0}', space=sflag, size = 0x4, scoped, tag = 'scoped memory for tile.28']
  %s0 = inlined_call_operand.vmem [shape: f32[48], index: 0, kind: input, shape index: {}]
  %s1 = inlined_call_operand.vmem [shape: f32[2,48], index: 1, kind: output, shape index: {}]
  // Predicated region
  $region2: #{tile.28} parent=0 // pred_check
    _
  $region3: #{tile.28} parent=0 // pred_check_branch
    %3 = sbr.rel (0) target = $region5
  $region4: #{tile.28} parent=0 // pred_region
    _
  $region5: #{tile.28} parent=0 // pred_fallthru
    _
  %v4 = vld [vmem:[%s0] ss:$0 sm:$0xff]
  %5 = vst [vmem:[%s1] sm:$0x3] %v4

// kernel: tile.29
$region0: #{tile.29}
  %s0 = inlined_call_operand.vmem [shape: f32[2,48], index: 0, kind: input, shape index: {}]
  %s1 = inlined_call_operand.vmem [shape: f32[96], index: 1, kind: output, shape index: {}]
  $region1: #{tile.29} parent=0
    #allocation0 [shape = 'u8[4096]{0}', space=vmem, size = 0x1000, scoped, tag = 'scoped mem for output reshape']
    #allocation1 [shape = 'u8[4096]{0}', space=vmem, size = 0x1000, scoped, tag = 'scoped mem for input reshape']
    %s3 = ssub.s32 4, 1
    %v4 = vld [vmem:[%s0] sm:%s3]
    %5 = vst [vmem:[#allocation1] sm:%s3] %v4
    %v6 = vld [vmem:[#allocation1] sm:$0x1]
    %vm7 = vcmask 392192
    %8 = vst.msk [vmem:[#allocation0] sm:$0x1] %vm7, %v6
    %s9 = scalar_lea.vmem [#allocation1], 1
    %v10 = vld [vmem:[%s9] sm:$0x1]
    %11 = vrot.lane.b32.xlu0 %v10, 48
    %v12 = vpop.permute.xlu0 %11
    %vm13 = vcmask 785792
    %14 = vst.msk [vmem:[#allocation0] sm:$0x1] %vm13, %v12
    %s16 = ssub.s32 2, 1
    %v17 = vld [vmem:[#allocation0] sm:%s16]
    %s19 = ssub.s32 2, 1
    %20 = vst [vmem:[%s1] sm:%s19] %v17

// kernel: grad_encoder_forward.1
$region0: #{grad_encoder_forward.1}
  #allocation0 [shape = 'u32[]', space=smem, size = 0x4, offset = 0x4, fixed_abs, tag = 'smem constant byte address 0x4 - core index']
  #allocation1 [shape = 'u32[72,128]{1,0:T(1,128)}', space=vmem, size = 0x9000, scoped, tag = 'internal scratch']
  %s0 = inlined_call_operand.vmem [shape: bf16[16,3072], index: 0, kind: input, shape index: {}]
  %s1 = inlined_call_operand.vmem [shape: bf16[3072,128], index: 1, kind: input, shape index: {}]
  %s2 = inlined_call_operand.vmem [shape: f32[1,128], index: 2, kind: input, shape index: {}]
  %s3 = inlined_call_operand.vmem [shape: f32[16,128], index: 3, kind: output, shape index: {}]
  %s4 = sld [smem:[#allocation0]]
  $region22: #{grad_encoder_forward.1} parent=0
    _
  %s6 = ssub.s32 1, %s4
  %s7 = scalar_select 0, %s6, %s4
  // Predicated region
  $region2: #{grad_encoder_forward.1} parent=0 // pred_check
    _
  $region3: #{grad_encoder_forward.1} parent=0 // pred_check_branch
    %9 = sbr.rel (0) target = $region5
  $region4: #{grad_encoder_forward.1} parent=0 // pred_region
    _
  $region5: #{grad_encoder_forward.1} parent=0 // pred_fallthru
    _
  // Predicated region
  $region6: #{grad_encoder_forward.1} parent=0 // pred_check
    _
  $region7: #{grad_encoder_forward.1} parent=0 // pred_check_branch
    %11 = sbr.rel (0) target = $region9
  $region8: #{grad_encoder_forward.1} parent=0 // pred_region
    _
  $region9: #{grad_encoder_forward.1} parent=0 // pred_fallthru
    _
  // Predicated region
  $region10: #{grad_encoder_forward.1} parent=0 // pred_check
    _
  $region11: #{grad_encoder_forward.1} parent=0 // pred_check_branch
    %13 = sbr.rel (0) target = $region13
  $region12: #{grad_encoder_forward.1} parent=0 // pred_region
    _
  $region13: #{grad_encoder_forward.1} parent=0 // pred_fallthru
    _
  %v14 = vld [vmem:[%s0] sm:$0xff]
  %v15 = vld [vmem:[%s0 + $0x8] sm:$0xff]
  %v16 = vld [vmem:[%s0 + $0x10] sm:$0xff]
  %v17 = vld [vmem:[%s0 + $0x18] sm:$0xff]
  %v18 = vld [vmem:[%s0 + $0x20] sm:$0xff]
  %v19 = vld [vmem:[%s0 + $0x28] sm:$0xff]
  %v20 = vld [vmem:[%s0 + $0x30] sm:$0xff]
  %v21 = vld [vmem:[%s0 + $0x38] sm:$0xff]
  %v22 = vld [vmem:[%s0 + $0x40] sm:$0xff]
  %v23 = vld [vmem:[%s0 + $0x48] sm:$0xff]
  %v24 = vld [vmem:[%s0 + $0x50] sm:$0xff]
  %v25 = vld [vmem:[%s0 + $0x58] sm:$0xff]
  %v26 = vld [vmem:[%s0 + $0x60] sm:$0xff]
  %v27 = vld [vmem:[%s0 + $0x68] sm:$0xff]
  %v28 = vld [vmem:[%s0 + $0x70] sm:$0xff]
  %v29 = vld [vmem:[%s0 + $0x78] sm:$0xff]
  %v30 = vld [vmem:[%s0 + $0x80] sm:$0xff]
  %v31 = vld [vmem:[%s0 + $0x88] sm:$0xff]
  %v32 = vld [vmem:[%s0 + $0x90] sm:$0xff]
  %v33 = vld [vmem:[%s0 + $0x98] sm:$0xff]
  %v34 = vld [vmem:[%s0 + $0xa0] sm:$0xff]
  %v35 = vld [vmem:[%s0 + $0xa8] sm:$0xff]
  %v36 = vld [vmem:[%s0 + $0xb0] sm:$0xff]
  %v37 = vld [vmem:[%s0 + $0xb8] sm:$0xff]
  %v38 = vld [vmem:[%s1] sm:$0xf]
  %v39 = vld [vmem:[%s1 + $0x4] sm:$0xf]
  %v40 = vld [vmem:[%s1 + $0x8] sm:$0xf]
  %v41 = vld [vmem:[%s1 + $0xc] sm:$0xf]
  %v42 = vld [vmem:[%s1 + $0x10] sm:$0xf]
  %v43 = vld [vmem:[%s1 + $0x14] sm:$0xf]
  %v44 = vld [vmem:[%s1 + $0x18] sm:$0xf]
  %v45 = vld [vmem:[%s1 + $0x1c] sm:$0xf]
  %v46 = vld [vmem:[%s1 + $0x20] sm:$0xf]
  %v47 = vld [vmem:[%s1 + $0x24] sm:$0xf]
  %v48 = vld [vmem:[%s1 + $0x28] sm:$0xf]
  %v49 = vld [vmem:[%s1 + $0x2c] sm:$0xf]
  %v50 = vld [vmem:[%s1 + $0x30] sm:$0xf]
  %v51 = vld [vmem:[%s1 + $0x34] sm:$0xf]
  %v52 = vld [vmem:[%s1 + $0x38] sm:$0xf]
  %v53 = vld [vmem:[%s1 + $0x3c] sm:$0xf]
  %v54 = vld [vmem:[%s1 + $0x40] sm:$0xf]
  %v55 = vld [vmem:[%s1 + $0x44] sm:$0xf]
  %v56 = vld [vmem:[%s1 + $0x48] sm:$0xf]
  %v57 = vld [vmem:[%s1 + $0x4c] sm:$0xf]
  %v58 = vld [vmem:[%s1 + $0x50] sm:$0xf]
  %v59 = vld [vmem:[%s1 + $0x54] sm:$0xf]
  %v60 = vld [vmem:[%s1 + $0x58] sm:$0xf]
  %v61 = vld [vmem:[%s1 + $0x5c] sm:$0xf]
  %v62 = vld [vmem:[%s1 + $0x60] sm:$0xf]
  %v63 = vld [vmem:[%s1 + $0x64] sm:$0xf]
  %v64 = vld [vmem:[%s1 + $0x68] sm:$0xf]
  %v65 = vld [vmem:[%s1 + $0x6c] sm:$0xf]
  %v66 = vld [vmem:[%s1 + $0x70] sm:$0xf]
  %v67 = vld [vmem:[%s1 + $0x74] sm:$0xf]
  %v68 = vld [vmem:[%s1 + $0x78] sm:$0xf]
  %v69 = vld [vmem:[%s1 + $0x7c] sm:$0xf]
  %v70 = vld [vmem:[%s1 + $0x80] sm:$0xf]
  %v71 = vld [vmem:[%s1 + $0x84] sm:$0xf]
  %v72 = vld [vmem:[%s1 + $0x88] sm:$0xf]
  %v73 = vld [vmem:[%s1 + $0x8c] sm:$0xf]
  %v74 = vld [vmem:[%s1 + $0x90] sm:$0xf]
  %v75 = vld [vmem:[%s1 + $0x94] sm:$0xf]
  %v76 = vld [vmem:[%s1 + $0x98] sm:$0xf]
  %v77 = vld [vmem:[%s1 + $0x9c] sm:$0xf]
  %v78 = vld [vmem:[%s1 + $0xa0] sm:$0xf]
  %v79 = vld [vmem:[%s1 + $0xa4] sm:$0xf]
  %v80 = vld [vmem:[%s1 + $0xa8] sm:$0xf]
  %v81 = vld [vmem:[%s1 + $0xac] sm:$0xf]
  %v82 = vld [vmem:[%s1 + $0xb0] sm:$0xf]
  %v83 = vld [vmem:[%s1 + $0xb4] sm:$0xf]
  %v84 = vld [vmem:[%s1 + $0xb8] sm:$0xf]
  %v85 = vld [vmem:[%s1 + $0xbc] sm:$0xf]
  %v86 = vld [vmem:[%s1 + $0xc0] sm:$0xf]
  %v87 = vld [vmem:[%s1 + $0xc4] sm:$0xf]
  %v88 = vld [vmem:[%s1 + $0xc8] sm:$0xf]
  %v89 = vld [vmem:[%s1 + $0xcc] sm:$0xf]
  %v90 = vld [vmem:[%s1 + $0xd0] sm:$0xf]
  %v91 = vld [vmem:[%s1 + $0xd4] sm:$0xf]
  %v92 = vld [vmem:[%s1 + $0xd8] sm:$0xf]
  %v93 = vld [vmem:[%s1 + $0xdc] sm:$0xf]
  %v94 = vld [vmem:[%s1 + $0xe0] sm:$0xf]
  %v95 = vld [vmem:[%s1 + $0xe4] sm:$0xf]
  %v96 = vld [vmem:[%s1 + $0xe8] sm:$0xf]
  %v97 = vld [vmem:[%s1 + $0xec] sm:$0xf]
  %v98 = vld [vmem:[%s1 + $0xf0] sm:$0xf]
  %v99 = vld [vmem:[%s1 + $0xf4] sm:$0xf]
  %v100 = vld [vmem:[%s1 + $0xf8] sm:$0xf]
  %v101 = vld [vmem:[%s1 + $0xfc] sm:$0xf]
  %v102 = vld [vmem:[%s1 + $0x100] sm:$0xf]
  %v103 = vld [vmem:[%s1 + $0x104] sm:$0xf]
  %v104 = vld [vmem:[%s1 + $0x108] sm:$0xf]
  %v105 = vld [vmem:[%s1 + $0x10c] sm:$0xf]
  %v106 = vld [vmem:[%s1 + $0x110] sm:$0xf]
  %v107 = vld [vmem:[%s1 + $0x114] sm:$0xf]
  %v108 = vld [vmem:[%s1 + $0x118] sm:$0xf]
  %v109 = vld [vmem:[%s1 + $0x11c] sm:$0xf]
  %v110 = vld [vmem:[%s1 + $0x120] sm:$0xf]
  %v111 = vld [vmem:[%s1 + $0x124] sm:$0xf]
  %v112 = vld [vmem:[%s1 + $0x128] sm:$0xf]
  %v113 = vld [vmem:[%s1 + $0x12c] sm:$0xf]
  %v114 = vld [vmem:[%s1 + $0x130] sm:$0xf]
  %v115 = vld [vmem:[%s1 + $0x134] sm:$0xf]
  %v116 = vld [vmem:[%s1 + $0x138] sm:$0xf]
  %v117 = vld [vmem:[%s1 + $0x13c] sm:$0xf]
  %v118 = vld [vmem:[%s1 + $0x140] sm:$0xf]
  %v119 = vld [vmem:[%s1 + $0x144] sm:$0xf]
  %v120 = vld [vmem:[%s1 + $0x148] sm:$0xf]
  %v121 = vld [vmem:[%s1 + $0x14c] sm:$0xf]
  %v122 = vld [vmem:[%s1 + $0x150] sm:$0xf]
  %v123 = vld [vmem:[%s1 + $0x154] sm:$0xf]
  %v124 = vld [vmem:[%s1 + $0x158] sm:$0xf]
  %v125 = vld [vmem:[%s1 + $0x15c] sm:$0xf]
  %v126 = vld [vmem:[%s1 + $0x160] sm:$0xf]
  %v127 = vld [vmem:[%s1 + $0x164] sm:$0xf]
  %v128 = vld [vmem:[%s1 + $0x168] sm:$0xf]
  %v129 = vld [vmem:[%s1 + $0x16c] sm:$0xf]
  %v130 = vld [vmem:[%s1 + $0x170] sm:$0xf]
  %v131 = vld [vmem:[%s1 + $0x174] sm:$0xf]
  %v132 = vld [vmem:[%s1 + $0x178] sm:$0xf]
  %v133 = vld [vmem:[%s1 + $0x17c] sm:$0xf]
  %v134 = vld [vmem:[%s1 + $0x180] sm:$0xf]
  %v135 = vld [vmem:[%s1 + $0x184] sm:$0xf]
  %v136 = vld [vmem:[%s1 + $0x188] sm:$0xf]
  %v137 = vld [vmem:[%s1 + $0x18c] sm:$0xf]
  %v138 = vld [vmem:[%s1 + $0x190] sm:$0xf]
  %v139 = vld [vmem:[%s1 + $0x194] sm:$0xf]
  %v140 = vld [vmem:[%s1 + $0x198] sm:$0xf]
  %v141 = vld [vmem:[%s1 + $0x19c] sm:$0xf]
  %v142 = vld [vmem:[%s1 + $0x1a0] sm:$0xf]
  %v143 = vld [vmem:[%s1 + $0x1a4] sm:$0xf]
  %v144 = vld [vmem:[%s1 + $0x1a8] sm:$0xf]
  %v145 = vld [vmem:[%s1 + $0x1ac] sm:$0xf]
  %v146 = vld [vmem:[%s1 + $0x1b0] sm:$0xf]
  %v147 = vld [vmem:[%s1 + $0x1b4] sm:$0xf]
  %v148 = vld [vmem:[%s1 + $0x1b8] sm:$0xf]
  %v149 = vld [vmem:[%s1 + $0x1bc] sm:$0xf]
  %v150 = vld [vmem:[%s1 + $0x1c0] sm:$0xf]
  %v151 = vld [vmem:[%s1 + $0x1c4] sm:$0xf]
  %v152 = vld [vmem:[%s1 + $0x1c8] sm:$0xf]
  %v153 = vld [vmem:[%s1 + $0x1cc] sm:$0xf]
  %v154 = vld [vmem:[%s1 + $0x1d0] sm:$0xf]
  %v155 = vld [vmem:[%s1 + $0x1d4] sm:$0xf]
  %v156 = vld [vmem:[%s1 + $0x1d8] sm:$0xf]
  %v157 = vld [vmem:[%s1 + $0x1dc] sm:$0xf]
  %v158 = vld [vmem:[%s1 + $0x1e0] sm:$0xf]
  %v159 = vld [vmem:[%s1 + $0x1e4] sm:$0xf]
  %v160 = vld [vmem:[%s1 + $0x1e8] sm:$0xf]
  %v161 = vld [vmem:[%s1 + $0x1ec] sm:$0xf]
  %v162 = vld [vmem:[%s1 + $0x1f0] sm:$0xf]
  %v163 = vld [vmem:[%s1 + $0x1f4] sm:$0xf]
  %v164 = vld [vmem:[%s1 + $0x1f8] sm:$0xf]
  %v165 = vld [vmem:[%s1 + $0x1fc] sm:$0xf]
  %v166 = vld [vmem:[%s1 + $0x200] sm:$0xf]
  %v167 = vld [vmem:[%s1 + $0x204] sm:$0xf]
  %v168 = vld [vmem:[%s1 + $0x208] sm:$0xf]
  %v169 = vld [vmem:[%s1 + $0x20c] sm:$0xf]
  %v170 = vld [vmem:[%s1 + $0x210] sm:$0xf]
  %v171 = vld [vmem:[%s1 + $0x214] sm:$0xf]
  %v172 = vld [vmem:[%s1 + $0x218] sm:$0xf]
  %v173 = vld [vmem:[%s1 + $0x21c] sm:$0xf]
  %v174 = vld [vmem:[%s1 + $0x220] sm:$0xf]
  %v175 = vld [vmem:[%s1 + $0x224] sm:$0xf]
  %v176 = vld [vmem:[%s1 + $0x228] sm:$0xf]
  %v177 = vld [vmem:[%s1 + $0x22c] sm:$0xf]
  %v178 = vld [vmem:[%s1 + $0x230] sm:$0xf]
  %v179 = vld [vmem:[%s1 + $0x234] sm:$0xf]
  %v180 = vld [vmem:[%s1 + $0x238] sm:$0xf]
  %v181 = vld [vmem:[%s1 + $0x23c] sm:$0xf]
  %v182 = vld [vmem:[%s1 + $0x240] sm:$0xf]
  %v183 = vld [vmem:[%s1 + $0x244] sm:$0xf]
  %v184 = vld [vmem:[%s1 + $0x248] sm:$0xf]
  %v185 = vld [vmem:[%s1 + $0x24c] sm:$0xf]
  %v186 = vld [vmem:[%s1 + $0x250] sm:$0xf]
  %v187 = vld [vmem:[%s1 + $0x254] sm:$0xf]
  %v188 = vld [vmem:[%s1 + $0x258] sm:$0xf]
  %v189 = vld [vmem:[%s1 + $0x25c] sm:$0xf]
  %v190 = vld [vmem:[%s1 + $0x260] sm:$0xf]
  %v191 = vld [vmem:[%s1 + $0x264] sm:$0xf]
  %v192 = vld [vmem:[%s1 + $0x268] sm:$0xf]
  %v193 = vld [vmem:[%s1 + $0x26c] sm:$0xf]
  %v194 = vld [vmem:[%s1 + $0x270] sm:$0xf]
  %v195 = vld [vmem:[%s1 + $0x274] sm:$0xf]
  %v196 = vld [vmem:[%s1 + $0x278] sm:$0xf]
  %v197 = vld [vmem:[%s1 + $0x27c] sm:$0xf]
  %v198 = vld [vmem:[%s1 + $0x280] sm:$0xf]
  %v199 = vld [vmem:[%s1 + $0x284] sm:$0xf]
  %v200 = vld [vmem:[%s1 + $0x288] sm:$0xf]
  %v201 = vld [vmem:[%s1 + $0x28c] sm:$0xf]
  %v202 = vld [vmem:[%s1 + $0x290] sm:$0xf]
  %v203 = vld [vmem:[%s1 + $0x294] sm:$0xf]
  %v204 = vld [vmem:[%s1 + $0x298] sm:$0xf]
  %v205 = vld [vmem:[%s1 + $0x29c] sm:$0xf]
  %v206 = vld [vmem:[%s1 + $0x2a0] sm:$0xf]
  %v207 = vld [vmem:[%s1 + $0x2a4] sm:$0xf]
  %v208 = vld [vmem:[%s1 + $0x2a8] sm:$0xf]
  %v209 = vld [vmem:[%s1 + $0x2ac] sm:$0xf]
  %v210 = vld [vmem:[%s1 + $0x2b0] sm:$0xf]
  %v211 = vld [vmem:[%s1 + $0x2b4] sm:$0xf]
  %v212 = vld [vmem:[%s1 + $0x2b8] sm:$0xf]
  %v213 = vld [vmem:[%s1 + $0x2bc] sm:$0xf]
  %v214 = vld [vmem:[%s1 + $0x2c0] sm:$0xf]
  %v215 = vld [vmem:[%s1 + $0x2c4] sm:$0xf]
  %v216 = vld [vmem:[%s1 + $0x2c8] sm:$0xf]
  %v217 = vld [vmem:[%s1 + $0x2cc] sm:$0xf]
  %v218 = vld [vmem:[%s1 + $0x2d0] sm:$0xf]
  %v219 = vld [vmem:[%s1 + $0x2d4] sm:$0xf]
  %v220 = vld [vmem:[%s1 + $0x2d8] sm:$0xf]
  %v221 = vld [vmem:[%s1 + $0x2dc] sm:$0xf]
  %v222 = vld [vmem:[%s1 + $0x2e0] sm:$0xf]
  %v223 = vld [vmem:[%s1 + $0x2e4] sm:$0xf]
  %v224 = vld [vmem:[%s1 + $0x2e8] sm:$0xf]
  %v225 = vld [vmem:[%s1 + $0x2ec] sm:$0xf]
  %v226 = vld [vmem:[%s1 + $0x2f0] sm:$0xf]
  %v227 = vld [vmem:[%s1 + $0x2f4] sm:$0xf]
  %v228 = vld [vmem:[%s1 + $0x2f8] sm:$0xf]
  %v229 = vld [vmem:[%s1 + $0x2fc] sm:$0xf]
  %v230 = vld [vmem:[%s1 + $0x300] sm:$0xf]
  %v231 = vld [vmem:[%s1 + $0x304] sm:$0xf]
  %v232 = vld [vmem:[%s1 + $0x308] sm:$0xf]
  %v233 = vld [vmem:[%s1 + $0x30c] sm:$0xf]
  %v234 = vld [vmem:[%s1 + $0x310] sm:$0xf]
  %v235 = vld [vmem:[%s1 + $0x314] sm:$0xf]
  %v236 = vld [vmem:[%s1 + $0x318] sm:$0xf]
  %v237 = vld [vmem:[%s1 + $0x31c] sm:$0xf]
  %v238 = vld [vmem:[%s1 + $0x320] sm:$0xf]
  %v239 = vld [vmem:[%s1 + $0x324] sm:$0xf]
  %v240 = vld [vmem:[%s1 + $0x328] sm:$0xf]
  %v241 = vld [vmem:[%s1 + $0x32c] sm:$0xf]
  %v242 = vld [vmem:[%s1 + $0x330] sm:$0xf]
  %v243 = vld [vmem:[%s1 + $0x334] sm:$0xf]
  %v244 = vld [vmem:[%s1 + $0x338] sm:$0xf]
  %v245 = vld [vmem:[%s1 + $0x33c] sm:$0xf]
  %v246 = vld [vmem:[%s1 + $0x340] sm:$0xf]
  %v247 = vld [vmem:[%s1 + $0x344] sm:$0xf]
  %v248 = vld [vmem:[%s1 + $0x348] sm:$0xf]
  %v249 = vld [vmem:[%s1 + $0x34c] sm:$0xf]
  %v250 = vld [vmem:[%s1 + $0x350] sm:$0xf]
  %v251 = vld [vmem:[%s1 + $0x354] sm:$0xf]
  %v252 = vld [vmem:[%s1 + $0x358] sm:$0xf]
  %v253 = vld [vmem:[%s1 + $0x35c] sm:$0xf]
  %v254 = vld [vmem:[%s1 + $0x360] sm:$0xf]
  %v255 = vld [vmem:[%s1 + $0x364] sm:$0xf]
  %v256 = vld [vmem:[%s1 + $0x368] sm:$0xf]
  %v257 = vld [vmem:[%s1 + $0x36c] sm:$0xf]
  %v258 = vld [vmem:[%s1 + $0x370] sm:$0xf]
  %v259 = vld [vmem:[%s1 + $0x374] sm:$0xf]
  %v260 = vld [vmem:[%s1 + $0x378] sm:$0xf]
  %v261 = vld [vmem:[%s1 + $0x37c] sm:$0xf]
  %v262 = vld [vmem:[%s1 + $0x380] sm:$0xf]
  %v263 = vld [vmem:[%s1 + $0x384] sm:$0xf]
  %v264 = vld [vmem:[%s1 + $0x388] sm:$0xf]
  %v265 = vld [vmem:[%s1 + $0x38c] sm:$0xf]
  %v266 = vld [vmem:[%s1 + $0x390] sm:$0xf]
  %v267 = vld [vmem:[%s1 + $0x394] sm:$0xf]
  %v268 = vld [vmem:[%s1 + $0x398] sm:$0xf]
  %v269 = vld [vmem:[%s1 + $0x39c] sm:$0xf]
  %v270 = vld [vmem:[%s1 + $0x3a0] sm:$0xf]
  %v271 = vld [vmem:[%s1 + $0x3a4] sm:$0xf]
  %v272 = vld [vmem:[%s1 + $0x3a8] sm:$0xf]
  %v273 = vld [vmem:[%s1 + $0x3ac] sm:$0xf]
  %v274 = vld [vmem:[%s1 + $0x3b0] sm:$0xf]
  %v275 = vld [vmem:[%s1 + $0x3b4] sm:$0xf]
  %v276 = vld [vmem:[%s1 + $0x3b8] sm:$0xf]
  %v277 = vld [vmem:[%s1 + $0x3bc] sm:$0xf]
  %v278 = vld [vmem:[%s1 + $0x3c0] sm:$0xf]
  %v279 = vld [vmem:[%s1 + $0x3c4] sm:$0xf]
  %v280 = vld [vmem:[%s1 + $0x3c8] sm:$0xf]
  %v281 = vld [vmem:[%s1 + $0x3cc] sm:$0xf]
  %v282 = vld [vmem:[%s1 + $0x3d0] sm:$0xf]
  %v283 = vld [vmem:[%s1 + $0x3d4] sm:$0xf]
  %v284 = vld [vmem:[%s1 + $0x3d8] sm:$0xf]
  %v285 = vld [vmem:[%s1 + $0x3dc] sm:$0xf]
  %v286 = vld [vmem:[%s1 + $0x3e0] sm:$0xf]
  %v287 = vld [vmem:[%s1 + $0x3e4] sm:$0xf]
  %v288 = vld [vmem:[%s1 + $0x3e8] sm:$0xf]
  %v289 = vld [vmem:[%s1 + $0x3ec] sm:$0xf]
  %v290 = vld [vmem:[%s1 + $0x3f0] sm:$0xf]
  %v291 = vld [vmem:[%s1 + $0x3f4] sm:$0xf]
  %v292 = vld [vmem:[%s1 + $0x3f8] sm:$0xf]
  %v293 = vld [vmem:[%s1 + $0x3fc] sm:$0xf]
  %v294 = vld [vmem:[%s1 + $0x400] sm:$0xf]
  %v295 = vld [vmem:[%s1 + $0x404] sm:$0xf]
  %v296 = vld [vmem:[%s1 + $0x408] sm:$0xf]
  %v297 = vld [vmem:[%s1 + $0x40c] sm:$0xf]
  %v298 = vld [vmem:[%s1 + $0x410] sm:$0xf]
  %v299 = vld [vmem:[%s1 + $0x414] sm:$0xf]
  %v300 = vld [vmem:[%s1 + $0x418] sm:$0xf]
  %v301 = vld [vmem:[%s1 + $0x41c] sm:$0xf]
  %v302 = vld [vmem:[%s1 + $0x420] sm:$0xf]
  %v303 = vld [vmem:[%s1 + $0x424] sm:$0xf]
  %v304 = vld [vmem:[%s1 + $0x428] sm:$0xf]
  %v305 = vld [vmem:[%s1 + $0x42c] sm:$0xf]
  %v306 = vld [vmem:[%s1 + $0x430] sm:$0xf]
  %v307 = vld [vmem:[%s1 + $0x434] sm:$0xf]
  %v308 = vld [vmem:[%s1 + $0x438] sm:$0xf]
  %v309 = vld [vmem:[%s1 + $0x43c] sm:$0xf]
  %v310 = vld [vmem:[%s1 + $0x440] sm:$0xf]
  %v311 = vld [vmem:[%s1 + $0x444] sm:$0xf]
  %v312 = vld [vmem:[%s1 + $0x448] sm:$0xf]
  %v313 = vld [vmem:[%s1 + $0x44c] sm:$0xf]
  %v314 = vld [vmem:[%s1 + $0x450] sm:$0xf]
  %v315 = vld [vmem:[%s1 + $0x454] sm:$0xf]
  %v316 = vld [vmem:[%s1 + $0x458] sm:$0xf]
  %v317 = vld [vmem:[%s1 + $0x45c] sm:$0xf]
  %v318 = vld [vmem:[%s1 + $0x460] sm:$0xf]
  %v319 = vld [vmem:[%s1 + $0x464] sm:$0xf]
  %v320 = vld [vmem:[%s1 + $0x468] sm:$0xf]
  %v321 = vld [vmem:[%s1 + $0x46c] sm:$0xf]
  %v322 = vld [vmem:[%s1 + $0x470] sm:$0xf]
  %v323 = vld [vmem:[%s1 + $0x474] sm:$0xf]
  %v324 = vld [vmem:[%s1 + $0x478] sm:$0xf]
  %v325 = vld [vmem:[%s1 + $0x47c] sm:$0xf]
  %v326 = vld [vmem:[%s1 + $0x480] sm:$0xf]
  %v327 = vld [vmem:[%s1 + $0x484] sm:$0xf]
  %v328 = vld [vmem:[%s1 + $0x488] sm:$0xf]
  %v329 = vld [vmem:[%s1 + $0x48c] sm:$0xf]
  %v330 = vld [vmem:[%s1 + $0x490] sm:$0xf]
  %v331 = vld [vmem:[%s1 + $0x494] sm:$0xf]
  %v332 = vld [vmem:[%s1 + $0x498] sm:$0xf]
  %v333 = vld [vmem:[%s1 + $0x49c] sm:$0xf]
  %v334 = vld [vmem:[%s1 + $0x4a0] sm:$0xf]
  %v335 = vld [vmem:[%s1 + $0x4a4] sm:$0xf]
  %v336 = vld [vmem:[%s1 + $0x4a8] sm:$0xf]
  %v337 = vld [vmem:[%s1 + $0x4ac] sm:$0xf]
  %v338 = vld [vmem:[%s1 + $0x4b0] sm:$0xf]
  %v339 = vld [vmem:[%s1 + $0x4b4] sm:$0xf]
  %v340 = vld [vmem:[%s1 + $0x4b8] sm:$0xf]
  %v341 = vld [vmem:[%s1 + $0x4bc] sm:$0xf]
  %v342 = vld [vmem:[%s1 + $0x4c0] sm:$0xf]
  %v343 = vld [vmem:[%s1 + $0x4c4] sm:$0xf]
  %v344 = vld [vmem:[%s1 + $0x4c8] sm:$0xf]
  %v345 = vld [vmem:[%s1 + $0x4cc] sm:$0xf]
  %v346 = vld [vmem:[%s1 + $0x4d0] sm:$0xf]
  %v347 = vld [vmem:[%s1 + $0x4d4] sm:$0xf]
  %v348 = vld [vmem:[%s1 + $0x4d8] sm:$0xf]
  %v349 = vld [vmem:[%s1 + $0x4dc] sm:$0xf]
  %v350 = vld [vmem:[%s1 + $0x4e0] sm:$0xf]
  %v351 = vld [vmem:[%s1 + $0x4e4] sm:$0xf]
  %v352 = vld [vmem:[%s1 + $0x4e8] sm:$0xf]
  %v353 = vld [vmem:[%s1 + $0x4ec] sm:$0xf]
  %v354 = vld [vmem:[%s1 + $0x4f0] sm:$0xf]
  %v355 = vld [vmem:[%s1 + $0x4f4] sm:$0xf]
  %v356 = vld [vmem:[%s1 + $0x4f8] sm:$0xf]
  %v357 = vld [vmem:[%s1 + $0x4fc] sm:$0xf]
  %v358 = vld [vmem:[%s1 + $0x500] sm:$0xf]
  %v359 = vld [vmem:[%s1 + $0x504] sm:$0xf]
  %v360 = vld [vmem:[%s1 + $0x508] sm:$0xf]
  %v361 = vld [vmem:[%s1 + $0x50c] sm:$0xf]
  %v362 = vld [vmem:[%s1 + $0x510] sm:$0xf]
  %v363 = vld [vmem:[%s1 + $0x514] sm:$0xf]
  %v364 = vld [vmem:[%s1 + $0x518] sm:$0xf]
  %v365 = vld [vmem:[%s1 + $0x51c] sm:$0xf]
  %v366 = vld [vmem:[%s1 + $0x520] sm:$0xf]
  %v367 = vld [vmem:[%s1 + $0x524] sm:$0xf]
  %v368 = vld [vmem:[%s1 + $0x528] sm:$0xf]
  %v369 = vld [vmem:[%s1 + $0x52c] sm:$0xf]
  %v370 = vld [vmem:[%s1 + $0x530] sm:$0xf]
  %v371 = vld [vmem:[%s1 + $0x534] sm:$0xf]
  %v372 = vld [vmem:[%s1 + $0x538] sm:$0xf]
  %v373 = vld [vmem:[%s1 + $0x53c] sm:$0xf]
  %v374 = vld [vmem:[%s1 + $0x540] sm:$0xf]
  %v375 = vld [vmem:[%s1 + $0x544] sm:$0xf]
  %v376 = vld [vmem:[%s1 + $0x548] sm:$0xf]
  %v377 = vld [vmem:[%s1 + $0x54c] sm:$0xf]
  %v378 = vld [vmem:[%s1 + $0x550] sm:$0xf]
  %v379 = vld [vmem:[%s1 + $0x554] sm:$0xf]
  %v380 = vld [vmem:[%s1 + $0x558] sm:$0xf]
  %v381 = vld [vmem:[%s1 + $0x55c] sm:$0xf]
  %v382 = vld [vmem:[%s1 + $0x560] sm:$0xf]
  %v383 = vld [vmem:[%s1 + $0x564] sm:$0xf]
  %v384 = vld [vmem:[%s1 + $0x568] sm:$0xf]
  %v385 = vld [vmem:[%s1 + $0x56c] sm:$0xf]
  %v386 = vld [vmem:[%s1 + $0x570] sm:$0xf]
  %v387 = vld [vmem:[%s1 + $0x574] sm:$0xf]
  %v388 = vld [vmem:[%s1 + $0x578] sm:$0xf]
  %v389 = vld [vmem:[%s1 + $0x57c] sm:$0xf]
  %v390 = vld [vmem:[%s1 + $0x580] sm:$0xf]
  %v391 = vld [vmem:[%s1 + $0x584] sm:$0xf]
  %v392 = vld [vmem:[%s1 + $0x588] sm:$0xf]
  %v393 = vld [vmem:[%s1 + $0x58c] sm:$0xf]
  %v394 = vld [vmem:[%s1 + $0x590] sm:$0xf]
  %v395 = vld [vmem:[%s1 + $0x594] sm:$0xf]
  %v396 = vld [vmem:[%s1 + $0x598] sm:$0xf]
  %v397 = vld [vmem:[%s1 + $0x59c] sm:$0xf]
  %v398 = vld [vmem:[%s1 + $0x5a0] sm:$0xf]
  %v399 = vld [vmem:[%s1 + $0x5a4] sm:$0xf]
  %v400 = vld [vmem:[%s1 + $0x5a8] sm:$0xf]
  %v401 = vld [vmem:[%s1 + $0x5ac] sm:$0xf]
  %v402 = vld [vmem:[%s1 + $0x5b0] sm:$0xf]
  %v403 = vld [vmem:[%s1 + $0x5b4] sm:$0xf]
  %v404 = vld [vmem:[%s1 + $0x5b8] sm:$0xf]
  %v405 = vld [vmem:[%s1 + $0x5bc] sm:$0xf]
  %v406 = vld [vmem:[%s1 + $0x5c0] sm:$0xf]
  %v407 = vld [vmem:[%s1 + $0x5c4] sm:$0xf]
  %v408 = vld [vmem:[%s1 + $0x5c8] sm:$0xf]
  %v409 = vld [vmem:[%s1 + $0x5cc] sm:$0xf]
  %v410 = vld [vmem:[%s1 + $0x5d0] sm:$0xf]
  %v411 = vld [vmem:[%s1 + $0x5d4] sm:$0xf]
  %v412 = vld [vmem:[%s1 + $0x5d8] sm:$0xf]
  %v413 = vld [vmem:[%s1 + $0x5dc] sm:$0xf]
  %v414 = vld [vmem:[%s1 + $0x5e0] sm:$0xf]
  %v415 = vld [vmem:[%s1 + $0x5e4] sm:$0xf]
  %v416 = vld [vmem:[%s1 + $0x5e8] sm:$0xf]
  %v417 = vld [vmem:[%s1 + $0x5ec] sm:$0xf]
  %v418 = vld [vmem:[%s1 + $0x5f0] sm:$0xf]
  %v419 = vld [vmem:[%s1 + $0x5f4] sm:$0xf]
  %v420 = vld [vmem:[%s1 + $0x5f8] sm:$0xf]
  %v421 = vld [vmem:[%s1 + $0x5fc] sm:$0xf]
  %v422 = vld [vmem:[%s2] sm:$0x1]
  %v424 = vperm.slane %v422, 0
  %v450 = vunpack.c.l.b16 %v14
  %v451 = vunpack.c.h.b16 %v14
  %v452 = vunpack.c.l.b16 %v15
  %v453 = vunpack.c.h.b16 %v15
  %v454 = vunpack.c.l.b16 %v16
  %v455 = vunpack.c.h.b16 %v16
  %v456 = vunpack.c.l.b16 %v17
  %v457 = vunpack.c.h.b16 %v17
  %v458 = vunpack.c.l.b16 %v18
  %v459 = vunpack.c.h.b16 %v18
  %v460 = vunpack.c.l.b16 %v19
  %v461 = vunpack.c.h.b16 %v19
  %v462 = vunpack.c.l.b16 %v20
  %v463 = vunpack.c.h.b16 %v20
  %v464 = vunpack.c.l.b16 %v21
  %v465 = vunpack.c.h.b16 %v21
  %v466 = vunpack.c.l.b16 %v22
  %v467 = vunpack.c.h.b16 %v22
  %v468 = vunpack.c.l.b16 %v23
  %v469 = vunpack.c.h.b16 %v23
  %v470 = vunpack.c.l.b16 %v24
  %v471 = vunpack.c.h.b16 %v24
  %v472 = vunpack.c.l.b16 %v25
  %v473 = vunpack.c.h.b16 %v25
  %v474 = vunpack.c.l.b16 %v26
  %v475 = vunpack.c.h.b16 %v26
  %v476 = vunpack.c.l.b16 %v27
  %v477 = vunpack.c.h.b16 %v27
  %v478 = vunpack.c.l.b16 %v28
  %v479 = vunpack.c.h.b16 %v28
  %v480 = vunpack.c.l.b16 %v29
  %v481 = vunpack.c.h.b16 %v29
  %v482 = vunpack.c.l.b16 %v30
  %v483 = vunpack.c.h.b16 %v30
  %v484 = vunpack.c.l.b16 %v31
  %v485 = vunpack.c.h.b16 %v31
  %v486 = vunpack.c.l.b16 %v32
  %v487 = vunpack.c.h.b16 %v32
  %v488 = vunpack.c.l.b16 %v33
  %v489 = vunpack.c.h.b16 %v33
  %v490 = vunpack.c.l.b16 %v34
  %v491 = vunpack.c.h.b16 %v34
  %v492 = vunpack.c.l.b16 %v35
  %v493 = vunpack.c.h.b16 %v35
  %v494 = vunpack.c.l.b16 %v36
  %v495 = vunpack.c.h.b16 %v36
  %v496 = vunpack.c.l.b16 %v37
  %v497 = vunpack.c.h.b16 %v37
  %v498 = vpack.c.b16 %v474, %v450
  %v499 = vpack.c.b16 %v475, %v451
  %v500 = vpack.c.b16 %v476, %v452
  %v501 = vpack.c.b16 %v477, %v453
  %v502 = vpack.c.b16 %v478, %v454
  %v503 = vpack.c.b16 %v479, %v455
  %v504 = vpack.c.b16 %v480, %v456
  %v505 = vpack.c.b16 %v481, %v457
  %v506 = vpack.c.b16 %v482, %v458
  %v507 = vpack.c.b16 %v483, %v459
  %v508 = vpack.c.b16 %v484, %v460
  %v509 = vpack.c.b16 %v485, %v461
  %v510 = vpack.c.b16 %v486, %v462
  %v511 = vpack.c.b16 %v487, %v463
  %v512 = vpack.c.b16 %v488, %v464
  %v513 = vpack.c.b16 %v489, %v465
  %v514 = vpack.c.b16 %v490, %v466
  %v515 = vpack.c.b16 %v491, %v467
  %v516 = vpack.c.b16 %v492, %v468
  %v517 = vpack.c.b16 %v493, %v469
  %v518 = vpack.c.b16 %v494, %v470
  %v519 = vpack.c.b16 %v495, %v471
  %v520 = vpack.c.b16 %v496, %v472
  %v521 = vpack.c.b16 %v497, %v473
  %v930 = vunpack.c.l.b16 %v38
  %v931 = vunpack.c.l.b16 %v39
  %v932 = vunpack.c.l.b16 %v40
  %v933 = vunpack.c.l.b16 %v41
  %v934 = vunpack.c.l.b16 %v42
  %v935 = vunpack.c.l.b16 %v43
  %v936 = vunpack.c.l.b16 %v44
  %v937 = vunpack.c.l.b16 %v45
  %v938 = vunpack.c.l.b16 %v46
  %v939 = vunpack.c.l.b16 %v47
  %v940 = vunpack.c.l.b16 %v48
  %v941 = vunpack.c.l.b16 %v49
  %v942 = vunpack.c.l.b16 %v50
  %v943 = vunpack.c.l.b16 %v51
  %v944 = vunpack.c.l.b16 %v52
  %v945 = vunpack.c.l.b16 %v53
  %v946 = vunpack.c.l.b16 %v54
  %v947 = vunpack.c.l.b16 %v55
  %v948 = vunpack.c.l.b16 %v56
  %v949 = vunpack.c.l.b16 %v57
  %v950 = vunpack.c.l.b16 %v58
  %v951 = vunpack.c.l.b16 %v59
  %v952 = vunpack.c.l.b16 %v60
  %v953 = vunpack.c.l.b16 %v61
  %v954 = vunpack.c.l.b16 %v62
  %v955 = vunpack.c.l.b16 %v63
  %v956 = vunpack.c.l.b16 %v64
  %v957 = vunpack.c.l.b16 %v65
  %v958 = vunpack.c.l.b16 %v66
  %v959 = vunpack.c.l.b16 %v67
  %v960 = vunpack.c.l.b16 %v68
  %v961 = vunpack.c.l.b16 %v69
  %v962 = vunpack.c.l.b16 %v70
  %v963 = vunpack.c.l.b16 %v71
  %v964 = vunpack.c.l.b16 %v72
  %v965 = vunpack.c.l.b16 %v73
  %v966 = vunpack.c.l.b16 %v74
  %v967 = vunpack.c.l.b16 %v75
  %v968 = vunpack.c.l.b16 %v76
  %v969 = vunpack.c.l.b16 %v77
  %v970 = vunpack.c.l.b16 %v78
  %v971 = vunpack.c.l.b16 %v79
  %v972 = vunpack.c.l.b16 %v80
  %v973 = vunpack.c.l.b16 %v81
  %v974 = vunpack.c.l.b16 %v82
  %v975 = vunpack.c.l.b16 %v83
  %v976 = vunpack.c.l.b16 %v84
  %v977 = vunpack.c.l.b16 %v85
  %v978 = vunpack.c.l.b16 %v86
  %v979 = vunpack.c.l.b16 %v87
  %v980 = vunpack.c.l.b16 %v88
  %v981 = vunpack.c.l.b16 %v89
  %v982 = vunpack.c.l.b16 %v90
  %v983 = vunpack.c.l.b16 %v91
  %v984 = vunpack.c.l.b16 %v92
  %v985 = vunpack.c.l.b16 %v93
  %v986 = vunpack.c.l.b16 %v94
  %v987 = vunpack.c.l.b16 %v95
  %v988 = vunpack.c.l.b16 %v96
  %v989 = vunpack.c.l.b16 %v97
  %v990 = vunpack.c.l.b16 %v98
  %v991 = vunpack.c.l.b16 %v99
  %v992 = vunpack.c.l.b16 %v100
  %v993 = vunpack.c.l.b16 %v101
  %v994 = vunpack.c.l.b16 %v102
  %v995 = vunpack.c.l.b16 %v103
  %v996 = vunpack.c.l.b16 %v104
  %v997 = vunpack.c.l.b16 %v105
  %v998 = vunpack.c.l.b16 %v106
  %v999 = vunpack.c.l.b16 %v107
  %v1000 = vunpack.c.l.b16 %v108
  %v1001 = vunpack.c.l.b16 %v109
  %v1002 = vunpack.c.l.b16 %v110
  %v1003 = vunpack.c.l.b16 %v111
  %v1004 = vunpack.c.l.b16 %v112
  %v1005 = vunpack.c.l.b16 %v113
  %v1006 = vunpack.c.l.b16 %v114
  %v1007 = vunpack.c.l.b16 %v115
  %v1008 = vunpack.c.l.b16 %v116
  %v1009 = vunpack.c.l.b16 %v117
  %v1010 = vunpack.c.l.b16 %v118
  %v1011 = vunpack.c.l.b16 %v119
  %v1012 = vunpack.c.l.b16 %v120
  %v1013 = vunpack.c.l.b16 %v121
  %v1014 = vunpack.c.l.b16 %v122
  %v1015 = vunpack.c.l.b16 %v123
  %v1016 = vunpack.c.l.b16 %v124
  %v1017 = vunpack.c.l.b16 %v125
  %v1018 = vunpack.c.l.b16 %v126
  %v1019 = vunpack.c.l.b16 %v127
  %v1020 = vunpack.c.l.b16 %v128
  %v1021 = vunpack.c.l.b16 %v129
  %v1022 = vunpack.c.l.b16 %v130
  %v1023 = vunpack.c.l.b16 %v131
  %v1024 = vunpack.c.l.b16 %v132
  %v1025 = vunpack.c.l.b16 %v133
  %v1026 = vunpack.c.l.b16 %v134
  %v1027 = vunpack.c.l.b16 %v135
  %v1028 = vunpack.c.l.b16 %v136
  %v1029 = vunpack.c.l.b16 %v137
  %v1030 = vunpack.c.l.b16 %v138
  %v1031 = vunpack.c.l.b16 %v139
  %v1032 = vunpack.c.l.b16 %v140
  %v1033 = vunpack.c.l.b16 %v141
  %v1034 = vunpack.c.l.b16 %v142
  %v1035 = vunpack.c.l.b16 %v143
  %v1036 = vunpack.c.l.b16 %v144
  %v1037 = vunpack.c.l.b16 %v145
  %v1038 = vunpack.c.l.b16 %v146
  %v1039 = vunpack.c.l.b16 %v147
  %v1040 = vunpack.c.l.b16 %v148
  %v1041 = vunpack.c.l.b16 %v149
  %v1042 = vunpack.c.l.b16 %v150
  %v1043 = vunpack.c.l.b16 %v151
  %v1044 = vunpack.c.l.b16 %v152
  %v1045 = vunpack.c.l.b16 %v153
  %v1046 = vunpack.c.l.b16 %v154
  %v1047 = vunpack.c.l.b16 %v155
  %v1048 = vunpack.c.l.b16 %v156
  %v1049 = vunpack.c.l.b16 %v157
  %v1050 = vunpack.c.l.b16 %v158
  %v1051 = vunpack.c.l.b16 %v159
  %v1052 = vunpack.c.l.b16 %v160
  %v1053 = vunpack.c.l.b16 %v161
  %v1054 = vunpack.c.l.b16 %v162
  %v1055 = vunpack.c.l.b16 %v163
  %v1056 = vunpack.c.l.b16 %v164
  %v1057 = vunpack.c.l.b16 %v165
  %v1058 = vunpack.c.l.b16 %v166
  %v1059 = vunpack.c.l.b16 %v167
  %v1060 = vunpack.c.l.b16 %v168
  %v1061 = vunpack.c.l.b16 %v169
  %v1062 = vunpack.c.l.b16 %v170
  %v1063 = vunpack.c.l.b16 %v171
  %v1064 = vunpack.c.l.b16 %v172
  %v1065 = vunpack.c.l.b16 %v173
  %v1066 = vunpack.c.l.b16 %v174
  %v1067 = vunpack.c.l.b16 %v175
  %v1068 = vunpack.c.l.b16 %v176
  %v1069 = vunpack.c.l.b16 %v177
  %v1070 = vunpack.c.l.b16 %v178
  %v1071 = vunpack.c.l.b16 %v179
  %v1072 = vunpack.c.l.b16 %v180
  %v1073 = vunpack.c.l.b16 %v181
  %v1074 = vunpack.c.l.b16 %v182
  %v1075 = vunpack.c.l.b16 %v183
  %v1076 = vunpack.c.l.b16 %v184
  %v1077 = vunpack.c.l.b16 %v185
  %v1078 = vunpack.c.l.b16 %v186
  %v1079 = vunpack.c.l.b16 %v187
  %v1080 = vunpack.c.l.b16 %v188
  %v1081 = vunpack.c.l.b16 %v189
  %v1082 = vunpack.c.l.b16 %v190
  %v1083 = vunpack.c.l.b16 %v191
  %v1084 = vunpack.c.l.b16 %v192
  %v1085 = vunpack.c.l.b16 %v193
  %v1086 = vunpack.c.l.b16 %v194
  %v1087 = vunpack.c.l.b16 %v195
  %v1088 = vunpack.c.l.b16 %v196
  %v1089 = vunpack.c.l.b16 %v197
  %v1090 = vunpack.c.l.b16 %v198
  %v1091 = vunpack.c.l.b16 %v199
  %v1092 = vunpack.c.l.b16 %v200
  %v1093 = vunpack.c.l.b16 %v201
  %v1094 = vunpack.c.l.b16 %v202
  %v1095 = vunpack.c.l.b16 %v203
  %v1096 = vunpack.c.l.b16 %v204
  %v1097 = vunpack.c.l.b16 %v205
  %v1098 = vunpack.c.l.b16 %v206
  %v1099 = vunpack.c.l.b16 %v207
  %v1100 = vunpack.c.l.b16 %v208
  %v1101 = vunpack.c.l.b16 %v209
  %v1102 = vunpack.c.l.b16 %v210
  %v1103 = vunpack.c.l.b16 %v211
  %v1104 = vunpack.c.l.b16 %v212
  %v1105 = vunpack.c.l.b16 %v213
  %v1106 = vunpack.c.l.b16 %v214
  %v1107 = vunpack.c.l.b16 %v215
  %v1108 = vunpack.c.l.b16 %v216
  %v1109 = vunpack.c.l.b16 %v217
  %v1110 = vunpack.c.l.b16 %v218
  %v1111 = vunpack.c.l.b16 %v219
  %v1112 = vunpack.c.l.b16 %v220
  %v1113 = vunpack.c.l.b16 %v221
  %v1114 = vunpack.c.l.b16 %v222
  %v1115 = vunpack.c.l.b16 %v223
  %v1116 = vunpack.c.l.b16 %v224
  %v1117 = vunpack.c.l.b16 %v225
  %v1118 = vunpack.c.l.b16 %v226
  %v1119 = vunpack.c.l.b16 %v227
  %v1120 = vunpack.c.l.b16 %v228
  %v1121 = vunpack.c.l.b16 %v229
  %v1122 = vunpack.c.l.b16 %v230
  %v1123 = vunpack.c.l.b16 %v231
  %v1124 = vunpack.c.l.b16 %v232
  %v1125 = vunpack.c.l.b16 %v233
  %v1126 = vunpack.c.l.b16 %v234
  %v1127 = vunpack.c.l.b16 %v235
  %v1128 = vunpack.c.l.b16 %v236
  %v1129 = vunpack.c.l.b16 %v237
  %v1130 = vunpack.c.l.b16 %v238
  %v1131 = vunpack.c.l.b16 %v239
  %v1132 = vunpack.c.l.b16 %v240
  %v1133 = vunpack.c.l.b16 %v241
  %v1134 = vunpack.c.l.b16 %v242
  %v1135 = vunpack.c.l.b16 %v243
  %v1136 = vunpack.c.l.b16 %v244
  %v1137 = vunpack.c.l.b16 %v245
  %v1138 = vunpack.c.l.b16 %v246
  %v1139 = vunpack.c.l.b16 %v247
  %v1140 = vunpack.c.l.b16 %v248
  %v1141 = vunpack.c.l.b16 %v249
  %v1142 = vunpack.c.l.b16 %v250
  %v1143 = vunpack.c.l.b16 %v251
  %v1144 = vunpack.c.l.b16 %v252
  %v1145 = vunpack.c.l.b16 %v253
  %v1146 = vunpack.c.l.b16 %v254
  %v1147 = vunpack.c.l.b16 %v255
  %v1148 = vunpack.c.l.b16 %v256
  %v1149 = vunpack.c.l.b16 %v257
  %v1150 = vunpack.c.l.b16 %v258
  %v1151 = vunpack.c.l.b16 %v259
  %v1152 = vunpack.c.l.b16 %v260
  %v1153 = vunpack.c.l.b16 %v261
  %v1154 = vunpack.c.l.b16 %v262
  %v1155 = vunpack.c.l.b16 %v263
  %v1156 = vunpack.c.l.b16 %v264
  %v1157 = vunpack.c.l.b16 %v265
  %v1158 = vunpack.c.l.b16 %v266
  %v1159 = vunpack.c.l.b16 %v267
  %v1160 = vunpack.c.l.b16 %v268
  %v1161 = vunpack.c.l.b16 %v269
  %v1162 = vunpack.c.l.b16 %v270
  %v1163 = vunpack.c.l.b16 %v271
  %v1164 = vunpack.c.l.b16 %v272
  %v1165 = vunpack.c.l.b16 %v273
  %v1166 = vunpack.c.l.b16 %v274
  %v1167 = vunpack.c.l.b16 %v275
  %v1168 = vunpack.c.l.b16 %v276
  %v1169 = vunpack.c.l.b16 %v277
  %v1170 = vunpack.c.l.b16 %v278
  %v1171 = vunpack.c.l.b16 %v279
  %v1172 = vunpack.c.l.b16 %v280
  %v1173 = vunpack.c.l.b16 %v281
  %v1174 = vunpack.c.l.b16 %v282
  %v1175 = vunpack.c.l.b16 %v283
  %v1176 = vunpack.c.l.b16 %v284
  %v1177 = vunpack.c.l.b16 %v285
  %v1178 = vunpack.c.l.b16 %v286
  %v1179 = vunpack.c.l.b16 %v287
  %v1180 = vunpack.c.l.b16 %v288
  %v1181 = vunpack.c.l.b16 %v289
  %v1182 = vunpack.c.l.b16 %v290
  %v1183 = vunpack.c.l.b16 %v291
  %v1184 = vunpack.c.l.b16 %v292
  %v1185 = vunpack.c.l.b16 %v293
  %v1186 = vunpack.c.l.b16 %v294
  %v1187 = vunpack.c.l.b16 %v295
  %v1188 = vunpack.c.l.b16 %v296
  %v1189 = vunpack.c.l.b16 %v297
  %v1190 = vunpack.c.l.b16 %v298
  %v1191 = vunpack.c.l.b16 %v299
  %v1192 = vunpack.c.l.b16 %v300
  %v1193 = vunpack.c.l.b16 %v301
  %v1194 = vunpack.c.l.b16 %v302
  %v1195 = vunpack.c.l.b16 %v303
  %v1196 = vunpack.c.l.b16 %v304
  %v1197 = vunpack.c.l.b16 %v305
  %v1198 = vunpack.c.l.b16 %v306
  %v1199 = vunpack.c.l.b16 %v307
  %v1200 = vunpack.c.l.b16 %v308
  %v1201 = vunpack.c.l.b16 %v309
  %v1202 = vunpack.c.l.b16 %v310
  %v1203 = vunpack.c.l.b16 %v311
  %v1204 = vunpack.c.l.b16 %v312
  %v1205 = vunpack.c.l.b16 %v313
  %v1206 = vunpack.c.l.b16 %v314
  %v1207 = vunpack.c.l.b16 %v315
  %v1208 = vunpack.c.l.b16 %v316
  %v1209 = vunpack.c.l.b16 %v317
  %v1210 = vunpack.c.l.b16 %v318
  %v1211 = vunpack.c.l.b16 %v319
  %v1212 = vunpack.c.l.b16 %v320
  %v1213 = vunpack.c.l.b16 %v321
  %v1214 = vunpack.c.l.b16 %v322
  %v1215 = vunpack.c.l.b16 %v323
  %v1216 = vunpack.c.l.b16 %v324
  %v1217 = vunpack.c.l.b16 %v325
  %v1218 = vunpack.c.l.b16 %v326
  %v1219 = vunpack.c.l.b16 %v327
  %v1220 = vunpack.c.l.b16 %v328
  %v1221 = vunpack.c.l.b16 %v329
  %v1222 = vunpack.c.l.b16 %v330
  %v1223 = vunpack.c.l.b16 %v331
  %v1224 = vunpack.c.l.b16 %v332
  %v1225 = vunpack.c.l.b16 %v333
  %v1226 = vunpack.c.l.b16 %v334
  %v1227 = vunpack.c.l.b16 %v335
  %v1228 = vunpack.c.l.b16 %v336
  %v1229 = vunpack.c.l.b16 %v337
  %v1230 = vunpack.c.l.b16 %v338
  %v1231 = vunpack.c.l.b16 %v339
  %v1232 = vunpack.c.l.b16 %v340
  %v1233 = vunpack.c.l.b16 %v341
  %v1234 = vunpack.c.l.b16 %v342
  %v1235 = vunpack.c.l.b16 %v343
  %v1236 = vunpack.c.l.b16 %v344
  %v1237 = vunpack.c.l.b16 %v345
  %v1238 = vunpack.c.l.b16 %v346
  %v1239 = vunpack.c.l.b16 %v347
  %v1240 = vunpack.c.l.b16 %v348
  %v1241 = vunpack.c.l.b16 %v349
  %v1242 = vunpack.c.l.b16 %v350
  %v1243 = vunpack.c.l.b16 %v351
  %v1244 = vunpack.c.l.b16 %v352
  %v1245 = vunpack.c.l.b16 %v353
  %v1246 = vunpack.c.l.b16 %v354
  %v1247 = vunpack.c.l.b16 %v355
  %v1248 = vunpack.c.l.b16 %v356
  %v1249 = vunpack.c.l.b16 %v357
  %v1250 = vunpack.c.l.b16 %v358
  %v1251 = vunpack.c.l.b16 %v359
  %v1252 = vunpack.c.l.b16 %v360
  %v1253 = vunpack.c.l.b16 %v361
  %v1254 = vunpack.c.l.b16 %v362
  %v1255 = vunpack.c.l.b16 %v363
  %v1256 = vunpack.c.l.b16 %v364
  %v1257 = vunpack.c.l.b16 %v365
  %v1258 = vunpack.c.l.b16 %v366
  %v1259 = vunpack.c.l.b16 %v367
  %v1260 = vunpack.c.l.b16 %v368
  %v1261 = vunpack.c.l.b16 %v369
  %v1262 = vunpack.c.l.b16 %v370
  %v1263 = vunpack.c.l.b16 %v371
  %v1264 = vunpack.c.l.b16 %v372
  %v1265 = vunpack.c.l.b16 %v373
  %v1266 = vunpack.c.l.b16 %v374
  %v1267 = vunpack.c.l.b16 %v375
  %v1268 = vunpack.c.l.b16 %v376
  %v1269 = vunpack.c.l.b16 %v377
  %v1270 = vunpack.c.l.b16 %v378
  %v1271 = vunpack.c.l.b16 %v379
  %v1272 = vunpack.c.l.b16 %v380
  %v1273 = vunpack.c.l.b16 %v381
  %v1274 = vunpack.c.l.b16 %v382
  %v1275 = vunpack.c.l.b16 %v383
  %v1276 = vunpack.c.l.b16 %v384
  %v1277 = vunpack.c.l.b16 %v385
  %v1278 = vunpack.c.l.b16 %v386
  %v1279 = vunpack.c.l.b16 %v387
  %v1280 = vunpack.c.l.b16 %v388
  %v1281 = vunpack.c.l.b16 %v389
  %v1282 = vunpack.c.l.b16 %v390
  %v1283 = vunpack.c.l.b16 %v391
  %v1284 = vunpack.c.l.b16 %v392
  %v1285 = vunpack.c.l.b16 %v393
  %v1286 = vunpack.c.l.b16 %v394
  %v1287 = vunpack.c.l.b16 %v395
  %v1288 = vunpack.c.l.b16 %v396
  %v1289 = vunpack.c.l.b16 %v397
  %v1290 = vunpack.c.l.b16 %v398
  %v1291 = vunpack.c.l.b16 %v399
  %v1292 = vunpack.c.l.b16 %v400
  %v1293 = vunpack.c.l.b16 %v401
  %v1294 = vunpack.c.l.b16 %v402
  %v1295 = vunpack.c.l.b16 %v403
  %v1296 = vunpack.c.l.b16 %v404
  %v1297 = vunpack.c.l.b16 %v405
  %v1298 = vunpack.c.l.b16 %v406
  %v1299 = vunpack.c.l.b16 %v407
  %v1300 = vunpack.c.l.b16 %v408
  %v1301 = vunpack.c.l.b16 %v409
  %v1302 = vunpack.c.l.b16 %v410
  %v1303 = vunpack.c.l.b16 %v411
  %v1304 = vunpack.c.l.b16 %v412
  %v1305 = vunpack.c.l.b16 %v413
  %v1306 = vunpack.c.l.b16 %v414
  %v1307 = vunpack.c.l.b16 %v415
  %v1308 = vunpack.c.l.b16 %v416
  %v1309 = vunpack.c.l.b16 %v417
  %v1310 = vunpack.c.l.b16 %v418
  %v1311 = vunpack.c.l.b16 %v419
  %v1312 = vunpack.c.l.b16 %v420
  %v1313 = vunpack.c.l.b16 %v421
  %v1314 = vpack.c.b16 %v931, %v930
  %v1315 = vpack.c.b16 %v933, %v932
  %v1316 = vpack.c.b16 %v935, %v934
  %v1317 = vpack.c.b16 %v937, %v936
  %v1318 = vpack.c.b16 %v939, %v938
  %v1319 = vpack.c.b16 %v941, %v940
  %v1320 = vpack.c.b16 %v943, %v942
  %v1321 = vpack.c.b16 %v945, %v944
  %v1322 = vpack.c.b16 %v947, %v946
  %v1323 = vpack.c.b16 %v949, %v948
  %v1324 = vpack.c.b16 %v951, %v950
  %v1325 = vpack.c.b16 %v953, %v952
  %v1326 = vpack.c.b16 %v955, %v954
  %v1327 = vpack.c.b16 %v957, %v956
  %v1328 = vpack.c.b16 %v959, %v958
  %v1329 = vpack.c.b16 %v961, %v960
  %v1330 = vpack.c.b16 %v963, %v962
  %v1331 = vpack.c.b16 %v965, %v964
  %v1332 = vpack.c.b16 %v967, %v966
  %v1333 = vpack.c.b16 %v969, %v968
  %v1334 = vpack.c.b16 %v971, %v970
  %v1335 = vpack.c.b16 %v973, %v972
  %v1336 = vpack.c.b16 %v975, %v974
  %v1337 = vpack.c.b16 %v977, %v976
  %v1338 = vpack.c.b16 %v979, %v978
  %v1339 = vpack.c.b16 %v981, %v980
  %v1340 = vpack.c.b16 %v983, %v982
  %v1341 = vpack.c.b16 %v985, %v984
  %v1342 = vpack.c.b16 %v987, %v986
  %v1343 = vpack.c.b16 %v989, %v988
  %v1344 = vpack.c.b16 %v991, %v990
  %v1345 = vpack.c.b16 %v993, %v992
  %v1346 = vpack.c.b16 %v995, %v994
  %v1347 = vpack.c.b16 %v997, %v996
  %v1348 = vpack.c.b16 %v999, %v998
  %v1349 = vpack.c.b16 %v1001, %v1000
  %v1350 = vpack.c.b16 %v1003, %v1002
  %v1351 = vpack.c.b16 %v1005, %v1004
  %v1352 = vpack.c.b16 %v1007, %v1006
  %v1353 = vpack.c.b16 %v1009, %v1008
  %v1354 = vpack.c.b16 %v1011, %v1010
  %v1355 = vpack.c.b16 %v1013, %v1012
  %v1356 = vpack.c.b16 %v1015, %v1014
  %v1357 = vpack.c.b16 %v1017, %v1016
  %v1358 = vpack.c.b16 %v1019, %v1018
  %v1359 = vpack.c.b16 %v1021, %v1020
  %v1360 = vpack.c.b16 %v1023, %v1022
  %v1361 = vpack.c.b16 %v1025, %v1024
  %v1362 = vpack.c.b16 %v1027, %v1026
  %v1363 = vpack.c.b16 %v1029, %v1028
  %v1364 = vpack.c.b16 %v1031, %v1030
  %v1365 = vpack.c.b16 %v1033, %v1032
  %v1366 = vpack.c.b16 %v1035, %v1034
  %v1367 = vpack.c.b16 %v1037, %v1036
  %v1368 = vpack.c.b16 %v1039, %v1038
  %v1369 = vpack.c.b16 %v1041, %v1040
  %v1370 = vpack.c.b16 %v1043, %v1042
  %v1371 = vpack.c.b16 %v1045, %v1044
  %v1372 = vpack.c.b16 %v1047, %v1046
  %v1373 = vpack.c.b16 %v1049, %v1048
  %v1374 = vpack.c.b16 %v1051, %v1050
  %v1375 = vpack.c.b16 %v1053, %v1052
  %v1376 = vpack.c.b16 %v1055, %v1054
  %v1377 = vpack.c.b16 %v1057, %v1056
  %v1378 = vpack.c.b16 %v1059, %v1058
  %v1379 = vpack.c.b16 %v1061, %v1060
  %v1380 = vpack.c.b16 %v1063, %v1062
  %v1381 = vpack.c.b16 %v1065, %v1064
  %v1382 = vpack.c.b16 %v1067, %v1066
  %v1383 = vpack.c.b16 %v1069, %v1068
  %v1384 = vpack.c.b16 %v1071, %v1070
  %v1385 = vpack.c.b16 %v1073, %v1072
  %v1386 = vpack.c.b16 %v1075, %v1074
  %v1387 = vpack.c.b16 %v1077, %v1076
  %v1388 = vpack.c.b16 %v1079, %v1078
  %v1389 = vpack.c.b16 %v1081, %v1080
  %v1390 = vpack.c.b16 %v1083, %v1082
  %v1391 = vpack.c.b16 %v1085, %v1084
  %v1392 = vpack.c.b16 %v1087, %v1086
  %v1393 = vpack.c.b16 %v1089, %v1088
  %v1394 = vpack.c.b16 %v1091, %v1090
  %v1395 = vpack.c.b16 %v1093, %v1092
  %v1396 = vpack.c.b16 %v1095, %v1094
  %v1397 = vpack.c.b16 %v1097, %v1096
  %v1398 = vpack.c.b16 %v1099, %v1098
  %v1399 = vpack.c.b16 %v1101, %v1100
  %v1400 = vpack.c.b16 %v1103, %v1102
  %v1401 = vpack.c.b16 %v1105, %v1104
  %v1402 = vpack.c.b16 %v1107, %v1106
  %v1403 = vpack.c.b16 %v1109, %v1108
  %v1404 = vpack.c.b16 %v1111, %v1110
  %v1405 = vpack.c.b16 %v1113, %v1112
  %v1406 = vpack.c.b16 %v1115, %v1114
  %v1407 = vpack.c.b16 %v1117, %v1116
  %v1408 = vpack.c.b16 %v1119, %v1118
  %v1409 = vpack.c.b16 %v1121, %v1120
  %v1410 = vpack.c.b16 %v1123, %v1122
  %v1411 = vpack.c.b16 %v1125, %v1124
  %v1412 = vpack.c.b16 %v1127, %v1126
  %v1413 = vpack.c.b16 %v1129, %v1128
  %v1414 = vpack.c.b16 %v1131, %v1130
  %v1415 = vpack.c.b16 %v1133, %v1132
  %v1416 = vpack.c.b16 %v1135, %v1134
  %v1417 = vpack.c.b16 %v1137, %v1136
  %v1418 = vpack.c.b16 %v1139, %v1138
  %v1419 = vpack.c.b16 %v1141, %v1140
  %v1420 = vpack.c.b16 %v1143, %v1142
  %v1421 = vpack.c.b16 %v1145, %v1144
  %v1422 = vpack.c.b16 %v1147, %v1146
  %v1423 = vpack.c.b16 %v1149, %v1148
  %v1424 = vpack.c.b16 %v1151, %v1150
  %v1425 = vpack.c.b16 %v1153, %v1152
  %v1426 = vpack.c.b16 %v1155, %v1154
  %v1427 = vpack.c.b16 %v1157, %v1156
  %v1428 = vpack.c.b16 %v1159, %v1158
  %v1429 = vpack.c.b16 %v1161, %v1160
  %v1430 = vpack.c.b16 %v1163, %v1162
  %v1431 = vpack.c.b16 %v1165, %v1164
  %v1432 = vpack.c.b16 %v1167, %v1166
  %v1433 = vpack.c.b16 %v1169, %v1168
  %v1434 = vpack.c.b16 %v1171, %v1170
  %v1435 = vpack.c.b16 %v1173, %v1172
  %v1436 = vpack.c.b16 %v1175, %v1174
  %v1437 = vpack.c.b16 %v1177, %v1176
  %v1438 = vpack.c.b16 %v1179, %v1178
  %v1439 = vpack.c.b16 %v1181, %v1180
  %v1440 = vpack.c.b16 %v1183, %v1182
  %v1441 = vpack.c.b16 %v1185, %v1184
  %v1442 = vpack.c.b16 %v1187, %v1186
  %v1443 = vpack.c.b16 %v1189, %v1188
  %v1444 = vpack.c.b16 %v1191, %v1190
  %v1445 = vpack.c.b16 %v1193, %v1192
  %v1446 = vpack.c.b16 %v1195, %v1194
  %v1447 = vpack.c.b16 %v1197, %v1196
  %v1448 = vpack.c.b16 %v1199, %v1198
  %v1449 = vpack.c.b16 %v1201, %v1200
  %v1450 = vpack.c.b16 %v1203, %v1202
  %v1451 = vpack.c.b16 %v1205, %v1204
  %v1452 = vpack.c.b16 %v1207, %v1206
  %v1453 = vpack.c.b16 %v1209, %v1208
  %v1454 = vpack.c.b16 %v1211, %v1210
  %v1455 = vpack.c.b16 %v1213, %v1212
  %v1456 = vpack.c.b16 %v1215, %v1214
  %v1457 = vpack.c.b16 %v1217, %v1216
  %v1458 = vpack.c.b16 %v1219, %v1218
  %v1459 = vpack.c.b16 %v1221, %v1220
  %v1460 = vpack.c.b16 %v1223, %v1222
  %v1461 = vpack.c.b16 %v1225, %v1224
  %v1462 = vpack.c.b16 %v1227, %v1226
  %v1463 = vpack.c.b16 %v1229, %v1228
  %v1464 = vpack.c.b16 %v1231, %v1230
  %v1465 = vpack.c.b16 %v1233, %v1232
  %v1466 = vpack.c.b16 %v1235, %v1234
  %v1467 = vpack.c.b16 %v1237, %v1236
  %v1468 = vpack.c.b16 %v1239, %v1238
  %v1469 = vpack.c.b16 %v1241, %v1240
  %v1470 = vpack.c.b16 %v1243, %v1242
  %v1471 = vpack.c.b16 %v1245, %v1244
  %v1472 = vpack.c.b16 %v1247, %v1246
  %v1473 = vpack.c.b16 %v1249, %v1248
  %v1474 = vpack.c.b16 %v1251, %v1250
  %v1475 = vpack.c.b16 %v1253, %v1252
  %v1476 = vpack.c.b16 %v1255, %v1254
  %v1477 = vpack.c.b16 %v1257, %v1256
  %v1478 = vpack.c.b16 %v1259, %v1258
  %v1479 = vpack.c.b16 %v1261, %v1260
  %v1480 = vpack.c.b16 %v1263, %v1262
  %v1481 = vpack.c.b16 %v1265, %v1264
  %v1482 = vpack.c.b16 %v1267, %v1266
  %v1483 = vpack.c.b16 %v1269, %v1268
  %v1484 = vpack.c.b16 %v1271, %v1270
  %v1485 = vpack.c.b16 %v1273, %v1272
  %v1486 = vpack.c.b16 %v1275, %v1274
  %v1487 = vpack.c.b16 %v1277, %v1276
  %v1488 = vpack.c.b16 %v1279, %v1278
  %v1489 = vpack.c.b16 %v1281, %v1280
  %v1490 = vpack.c.b16 %v1283, %v1282
  %v1491 = vpack.c.b16 %v1285, %v1284
  %v1492 = vpack.c.b16 %v1287, %v1286
  %v1493 = vpack.c.b16 %v1289, %v1288
  %v1494 = vpack.c.b16 %v1291, %v1290
  %v1495 = vpack.c.b16 %v1293, %v1292
  %v1496 = vpack.c.b16 %v1295, %v1294
  %v1497 = vpack.c.b16 %v1297, %v1296
  %v1498 = vpack.c.b16 %v1299, %v1298
  %v1499 = vpack.c.b16 %v1301, %v1300
  %v1500 = vpack.c.b16 %v1303, %v1302
  %v1501 = vpack.c.b16 %v1305, %v1304
  %v1502 = vpack.c.b16 %v1307, %v1306
  %v1503 = vpack.c.b16 %v1309, %v1308
  %v1504 = vpack.c.b16 %v1311, %v1310
  %v1505 = vpack.c.b16 %v1313, %v1312
  %1698 = vmatpush.bf16.msra.mxu0 %v1321
  %1699 = vmatpush.bf16.msra.mxu0 %v1320
  %1700 = vmatpush.bf16.msra.mxu0 %v1319
  %1701 = vmatpush.bf16.msra.mxu0 %v1318
  %1702 = vmatpush.bf16.msra.mxu0 %v1317
  %1703 = vmatpush.bf16.msra.mxu0 %v1316
  %1704 = vmatpush.bf16.msra.mxu0 %v1315
  %1705 = vmatpush.bf16.msra.mxu0 %v1314
  %1706 = vmatmul.bf16.gmra.mxu0 %v498
  %v1707 = vpop.f32.mrf.mxu0
  %v1708 = vadd.f32 %v424, %v1707
  %v1709 = vpop.f32.mrf.mxu0
  %v1710 = vadd.f32 %v424, %v1709
  %1711 = vdwg.mxu0
  %1712 = vmatpush.bf16.msra.mxu0 %v1329
  %1713 = vmatpush.bf16.msra.mxu0 %v1328
  %1714 = vmatpush.bf16.msra.mxu0 %v1327
  %1715 = vmatpush.bf16.msra.mxu0 %v1326
  %1716 = vmatpush.bf16.msra.mxu0 %v1325
  %1717 = vmatpush.bf16.msra.mxu0 %v1324
  %1718 = vmatpush.bf16.msra.mxu0 %v1323
  %1719 = vmatpush.bf16.msra.mxu0 %v1322
  %1720 = vmatmul.bf16.gmra.mxu0 %v499
  %v1721 = vpop.f32.mrf.mxu0
  %v1722 = vadd.f32 %v1708, %v1721
  %v1723 = vpop.f32.mrf.mxu0
  %v1724 = vadd.f32 %v1710, %v1723
  %1725 = vdwg.mxu0
  %1726 = vmatpush.bf16.msra.mxu0 %v1337
  %1727 = vmatpush.bf16.msra.mxu0 %v1336
  %1728 = vmatpush.bf16.msra.mxu0 %v1335
  %1729 = vmatpush.bf16.msra.mxu0 %v1334
  %1730 = vmatpush.bf16.msra.mxu0 %v1333
  %1731 = vmatpush.bf16.msra.mxu0 %v1332
  %1732 = vmatpush.bf16.msra.mxu0 %v1331
  %1733 = vmatpush.bf16.msra.mxu0 %v1330
  %1734 = vmatmul.bf16.gmra.mxu0 %v500
  %v1735 = vpop.f32.mrf.mxu0
  %v1736 = vadd.f32 %v1722, %v1735
  %v1737 = vpop.f32.mrf.mxu0
  %v1738 = vadd.f32 %v1724, %v1737
  %1739 = vdwg.mxu0
  %1740 = vmatpush.bf16.msra.mxu0 %v1345
  %1741 = vmatpush.bf16.msra.mxu0 %v1344
  %1742 = vmatpush.bf16.msra.mxu0 %v1343
  %1743 = vmatpush.bf16.msra.mxu0 %v1342
  %1744 = vmatpush.bf16.msra.mxu0 %v1341
  %1745 = vmatpush.bf16.msra.mxu0 %v1340
  %1746 = vmatpush.bf16.msra.mxu0 %v1339
  %1747 = vmatpush.bf16.msra.mxu0 %v1338
  %1748 = vmatmul.bf16.gmra.mxu0 %v501
  %v1749 = vpop.f32.mrf.mxu0
  %v1750 = vadd.f32 %v1736, %v1749
  %v1751 = vpop.f32.mrf.mxu0
  %v1752 = vadd.f32 %v1738, %v1751
  %1753 = vdwg.mxu0
  %1754 = vmatpush.bf16.msra.mxu0 %v1353
  %1755 = vmatpush.bf16.msra.mxu0 %v1352
  %1756 = vmatpush.bf16.msra.mxu0 %v1351
  %1757 = vmatpush.bf16.msra.mxu0 %v1350
  %1758 = vmatpush.bf16.msra.mxu0 %v1349
  %1759 = vmatpush.bf16.msra.mxu0 %v1348
  %1760 = vmatpush.bf16.msra.mxu0 %v1347
  %1761 = vmatpush.bf16.msra.mxu0 %v1346
  %1762 = vmatmul.bf16.gmra.mxu0 %v502
  %v1763 = vpop.f32.mrf.mxu0
  %v1764 = vadd.f32 %v1750, %v1763
  %v1765 = vpop.f32.mrf.mxu0
  %v1766 = vadd.f32 %v1752, %v1765
  %1767 = vdwg.mxu0
  %1768 = vmatpush.bf16.msra.mxu0 %v1361
  %1769 = vmatpush.bf16.msra.mxu0 %v1360
  %1770 = vmatpush.bf16.msra.mxu0 %v1359
  %1771 = vmatpush.bf16.msra.mxu0 %v1358
  %1772 = vmatpush.bf16.msra.mxu0 %v1357
  %1773 = vmatpush.bf16.msra.mxu0 %v1356
  %1774 = vmatpush.bf16.msra.mxu0 %v1355
  %1775 = vmatpush.bf16.msra.mxu0 %v1354
  %1776 = vmatmul.bf16.gmra.mxu0 %v503
  %v1777 = vpop.f32.mrf.mxu0
  %v1778 = vadd.f32 %v1764, %v1777
  %v1779 = vpop.f32.mrf.mxu0
  %v1780 = vadd.f32 %v1766, %v1779
  %1781 = vdwg.mxu0
  %1782 = vmatpush.bf16.msra.mxu0 %v1369
  %1783 = vmatpush.bf16.msra.mxu0 %v1368
  %1784 = vmatpush.bf16.msra.mxu0 %v1367
  %1785 = vmatpush.bf16.msra.mxu0 %v1366
  %1786 = vmatpush.bf16.msra.mxu0 %v1365
  %1787 = vmatpush.bf16.msra.mxu0 %v1364
  %1788 = vmatpush.bf16.msra.mxu0 %v1363
  %1789 = vmatpush.bf16.msra.mxu0 %v1362
  %1790 = vmatmul.bf16.gmra.mxu0 %v504
  %v1791 = vpop.f32.mrf.mxu0
  %v1792 = vadd.f32 %v1778, %v1791
  %v1793 = vpop.f32.mrf.mxu0
  %v1794 = vadd.f32 %v1780, %v1793
  %1795 = vdwg.mxu0
  %1796 = vmatpush.bf16.msra.mxu0 %v1377
  %1797 = vmatpush.bf16.msra.mxu0 %v1376
  %1798 = vmatpush.bf16.msra.mxu0 %v1375
  %1799 = vmatpush.bf16.msra.mxu0 %v1374
  %1800 = vmatpush.bf16.msra.mxu0 %v1373
  %1801 = vmatpush.bf16.msra.mxu0 %v1372
  %1802 = vmatpush.bf16.msra.mxu0 %v1371
  %1803 = vmatpush.bf16.msra.mxu0 %v1370
  %1804 = vmatmul.bf16.gmra.mxu0 %v505
  %v1805 = vpop.f32.mrf.mxu0
  %v1806 = vadd.f32 %v1792, %v1805
  %v1807 = vpop.f32.mrf.mxu0
  %v1808 = vadd.f32 %v1794, %v1807
  %1809 = vdwg.mxu0
  %1810 = vmatpush.bf16.msra.mxu0 %v1385
  %1811 = vmatpush.bf16.msra.mxu0 %v1384
  %1812 = vmatpush.bf16.msra.mxu0 %v1383
  %1813 = vmatpush.bf16.msra.mxu0 %v1382
  %1814 = vmatpush.bf16.msra.mxu0 %v1381
  %1815 = vmatpush.bf16.msra.mxu0 %v1380
  %1816 = vmatpush.bf16.msra.mxu0 %v1379
  %1817 = vmatpush.bf16.msra.mxu0 %v1378
  %1818 = vmatmul.bf16.gmra.mxu0 %v506
  %v1819 = vpop.f32.mrf.mxu0
  %v1820 = vadd.f32 %v1806, %v1819
  %v1821 = vpop.f32.mrf.mxu0
  %v1822 = vadd.f32 %v1808, %v1821
  %1823 = vdwg.mxu0
  %1824 = vmatpush.bf16.msra.mxu0 %v1393
  %1825 = vmatpush.bf16.msra.mxu0 %v1392
  %1826 = vmatpush.bf16.msra.mxu0 %v1391
  %1827 = vmatpush.bf16.msra.mxu0 %v1390
  %1828 = vmatpush.bf16.msra.mxu0 %v1389
  %1829 = vmatpush.bf16.msra.mxu0 %v1388
  %1830 = vmatpush.bf16.msra.mxu0 %v1387
  %1831 = vmatpush.bf16.msra.mxu0 %v1386
  %1832 = vmatmul.bf16.gmra.mxu0 %v507
  %v1833 = vpop.f32.mrf.mxu0
  %v1834 = vadd.f32 %v1820, %v1833
  %v1835 = vpop.f32.mrf.mxu0
  %v1836 = vadd.f32 %v1822, %v1835
  %1837 = vdwg.mxu0
  %1838 = vmatpush.bf16.msra.mxu0 %v1401
  %1839 = vmatpush.bf16.msra.mxu0 %v1400
  %1840 = vmatpush.bf16.msra.mxu0 %v1399
  %1841 = vmatpush.bf16.msra.mxu0 %v1398
  %1842 = vmatpush.bf16.msra.mxu0 %v1397
  %1843 = vmatpush.bf16.msra.mxu0 %v1396
  %1844 = vmatpush.bf16.msra.mxu0 %v1395
  %1845 = vmatpush.bf16.msra.mxu0 %v1394
  %1846 = vmatmul.bf16.gmra.mxu0 %v508
  %v1847 = vpop.f32.mrf.mxu0
  %v1848 = vadd.f32 %v1834, %v1847
  %v1849 = vpop.f32.mrf.mxu0
  %v1850 = vadd.f32 %v1836, %v1849
  %1851 = vdwg.mxu0
  %1852 = vmatpush.bf16.msra.mxu0 %v1409
  %1853 = vmatpush.bf16.msra.mxu0 %v1408
  %1854 = vmatpush.bf16.msra.mxu0 %v1407
  %1855 = vmatpush.bf16.msra.mxu0 %v1406
  %1856 = vmatpush.bf16.msra.mxu0 %v1405
  %1857 = vmatpush.bf16.msra.mxu0 %v1404
  %1858 = vmatpush.bf16.msra.mxu0 %v1403
  %1859 = vmatpush.bf16.msra.mxu0 %v1402
  %1860 = vmatmul.bf16.gmra.mxu0 %v509
  %v1861 = vpop.f32.mrf.mxu0
  %v1862 = vadd.f32 %v1848, %v1861
  %v1863 = vpop.f32.mrf.mxu0
  %v1864 = vadd.f32 %v1850, %v1863
  %1865 = vdwg.mxu0
  %1866 = vmatpush.bf16.msra.mxu0 %v1417
  %1867 = vmatpush.bf16.msra.mxu0 %v1416
  %1868 = vmatpush.bf16.msra.mxu0 %v1415
  %1869 = vmatpush.bf16.msra.mxu0 %v1414
  %1870 = vmatpush.bf16.msra.mxu0 %v1413
  %1871 = vmatpush.bf16.msra.mxu0 %v1412
  %1872 = vmatpush.bf16.msra.mxu0 %v1411
  %1873 = vmatpush.bf16.msra.mxu0 %v1410
  %1874 = vmatmul.bf16.gmra.mxu0 %v510
  %v1875 = vpop.f32.mrf.mxu0
  %v1876 = vadd.f32 %v1862, %v1875
  %v1877 = vpop.f32.mrf.mxu0
  %v1878 = vadd.f32 %v1864, %v1877
  %1879 = vdwg.mxu0
  %1880 = vmatpush.bf16.msra.mxu0 %v1425
  %1881 = vmatpush.bf16.msra.mxu0 %v1424
  %1882 = vmatpush.bf16.msra.mxu0 %v1423
  %1883 = vmatpush.bf16.msra.mxu0 %v1422
  %1884 = vmatpush.bf16.msra.mxu0 %v1421
  %1885 = vmatpush.bf16.msra.mxu0 %v1420
  %1886 = vmatpush.bf16.msra.mxu0 %v1419
  %1887 = vmatpush.bf16.msra.mxu0 %v1418
  %1888 = vmatmul.bf16.gmra.mxu0 %v511
  %v1889 = vpop.f32.mrf.mxu0
  %v1890 = vadd.f32 %v1876, %v1889
  %v1891 = vpop.f32.mrf.mxu0
  %v1892 = vadd.f32 %v1878, %v1891
  %1893 = vdwg.mxu0
  %1894 = vmatpush.bf16.msra.mxu0 %v1433
  %1895 = vmatpush.bf16.msra.mxu0 %v1432
  %1896 = vmatpush.bf16.msra.mxu0 %v1431
  %1897 = vmatpush.bf16.msra.mxu0 %v1430
  %1898 = vmatpush.bf16.msra.mxu0 %v1429
  %1899 = vmatpush.bf16.msra.mxu0 %v1428
  %1900 = vmatpush.bf16.msra.mxu0 %v1427
  %1901 = vmatpush.bf16.msra.mxu0 %v1426
  %1902 = vmatmul.bf16.gmra.mxu0 %v512
  %v1903 = vpop.f32.mrf.mxu0
  %v1904 = vadd.f32 %v1890, %v1903
  %v1905 = vpop.f32.mrf.mxu0
  %v1906 = vadd.f32 %v1892, %v1905
  %1907 = vdwg.mxu0
  %1908 = vmatpush.bf16.msra.mxu0 %v1441
  %1909 = vmatpush.bf16.msra.mxu0 %v1440
  %1910 = vmatpush.bf16.msra.mxu0 %v1439
  %1911 = vmatpush.bf16.msra.mxu0 %v1438
  %1912 = vmatpush.bf16.msra.mxu0 %v1437
  %1913 = vmatpush.bf16.msra.mxu0 %v1436
  %1914 = vmatpush.bf16.msra.mxu0 %v1435
  %1915 = vmatpush.bf16.msra.mxu0 %v1434
  %1916 = vmatmul.bf16.gmra.mxu0 %v513
  %v1917 = vpop.f32.mrf.mxu0
  %v1918 = vadd.f32 %v1904, %v1917
  %v1919 = vpop.f32.mrf.mxu0
  %v1920 = vadd.f32 %v1906, %v1919
  %1921 = vdwg.mxu0
  %1922 = vmatpush.bf16.msra.mxu0 %v1449
  %1923 = vmatpush.bf16.msra.mxu0 %v1448
  %1924 = vmatpush.bf16.msra.mxu0 %v1447
  %1925 = vmatpush.bf16.msra.mxu0 %v1446
  %1926 = vmatpush.bf16.msra.mxu0 %v1445
  %1927 = vmatpush.bf16.msra.mxu0 %v1444
  %1928 = vmatpush.bf16.msra.mxu0 %v1443
  %1929 = vmatpush.bf16.msra.mxu0 %v1442
  %1930 = vmatmul.bf16.gmra.mxu0 %v514
  %v1931 = vpop.f32.mrf.mxu0
  %v1932 = vadd.f32 %v1918, %v1931
  %v1933 = vpop.f32.mrf.mxu0
  %v1934 = vadd.f32 %v1920, %v1933
  %1935 = vdwg.mxu0
  %1936 = vmatpush.bf16.msra.mxu0 %v1457
  %1937 = vmatpush.bf16.msra.mxu0 %v1456
  %1938 = vmatpush.bf16.msra.mxu0 %v1455
  %1939 = vmatpush.bf16.msra.mxu0 %v1454
  %1940 = vmatpush.bf16.msra.mxu0 %v1453
  %1941 = vmatpush.bf16.msra.mxu0 %v1452
  %1942 = vmatpush.bf16.msra.mxu0 %v1451
  %1943 = vmatpush.bf16.msra.mxu0 %v1450
  %1944 = vmatmul.bf16.gmra.mxu0 %v515
  %v1945 = vpop.f32.mrf.mxu0
  %v1946 = vadd.f32 %v1932, %v1945
  %v1947 = vpop.f32.mrf.mxu0
  %v1948 = vadd.f32 %v1934, %v1947
  %1949 = vdwg.mxu0
  %1950 = vmatpush.bf16.msra.mxu0 %v1465
  %1951 = vmatpush.bf16.msra.mxu0 %v1464
  %1952 = vmatpush.bf16.msra.mxu0 %v1463
  %1953 = vmatpush.bf16.msra.mxu0 %v1462
  %1954 = vmatpush.bf16.msra.mxu0 %v1461
  %1955 = vmatpush.bf16.msra.mxu0 %v1460
  %1956 = vmatpush.bf16.msra.mxu0 %v1459
  %1957 = vmatpush.bf16.msra.mxu0 %v1458
  %1958 = vmatmul.bf16.gmra.mxu0 %v516
  %v1959 = vpop.f32.mrf.mxu0
  %v1960 = vadd.f32 %v1946, %v1959
  %v1961 = vpop.f32.mrf.mxu0
  %v1962 = vadd.f32 %v1948, %v1961
  %1963 = vdwg.mxu0
  %1964 = vmatpush.bf16.msra.mxu0 %v1473
  %1965 = vmatpush.bf16.msra.mxu0 %v1472
  %1966 = vmatpush.bf16.msra.mxu0 %v1471
  %1967 = vmatpush.bf16.msra.mxu0 %v1470
  %1968 = vmatpush.bf16.msra.mxu0 %v1469
  %1969 = vmatpush.bf16.msra.mxu0 %v1468
  %1970 = vmatpush.bf16.msra.mxu0 %v1467
  %1971 = vmatpush.bf16.msra.mxu0 %v1466
  %1972 = vmatmul.bf16.gmra.mxu0 %v517
  %v1973 = vpop.f32.mrf.mxu0
  %v1974 = vadd.f32 %v1960, %v1973
  %v1975 = vpop.f32.mrf.mxu0
  %v1976 = vadd.f32 %v1962, %v1975
  %1977 = vdwg.mxu0
  %1978 = vmatpush.bf16.msra.mxu0 %v1481
  %1979 = vmatpush.bf16.msra.mxu0 %v1480
  %1980 = vmatpush.bf16.msra.mxu0 %v1479
  %1981 = vmatpush.bf16.msra.mxu0 %v1478
  %1982 = vmatpush.bf16.msra.mxu0 %v1477
  %1983 = vmatpush.bf16.msra.mxu0 %v1476
  %1984 = vmatpush.bf16.msra.mxu0 %v1475
  %1985 = vmatpush.bf16.msra.mxu0 %v1474
  %1986 = vmatmul.bf16.gmra.mxu0 %v518
  %v1987 = vpop.f32.mrf.mxu0
  %v1988 = vadd.f32 %v1974, %v1987
  %v1989 = vpop.f32.mrf.mxu0
  %v1990 = vadd.f32 %v1976, %v1989
  %1991 = vdwg.mxu0
  %1992 = vmatpush.bf16.msra.mxu0 %v1489
  %1993 = vmatpush.bf16.msra.mxu0 %v1488
  %1994 = vmatpush.bf16.msra.mxu0 %v1487
  %1995 = vmatpush.bf16.msra.mxu0 %v1486
  %1996 = vmatpush.bf16.msra.mxu0 %v1485
  %1997 = vmatpush.bf16.msra.mxu0 %v1484
  %1998 = vmatpush.bf16.msra.mxu0 %v1483
  %1999 = vmatpush.bf16.msra.mxu0 %v1482
  %2000 = vmatmul.bf16.gmra.mxu0 %v519
  %v2001 = vpop.f32.mrf.mxu0
  %v2002 = vadd.f32 %v1988, %v2001
  %v2003 = vpop.f32.mrf.mxu0
  %v2004 = vadd.f32 %v1990, %v2003
  %2005 = vdwg.mxu0
  %2006 = vmatpush.bf16.msra.mxu0 %v1497
  %2007 = vmatpush.bf16.msra.mxu0 %v1496
  %2008 = vmatpush.bf16.msra.mxu0 %v1495
  %2009 = vmatpush.bf16.msra.mxu0 %v1494
  %2010 = vmatpush.bf16.msra.mxu0 %v1493
  %2011 = vmatpush.bf16.msra.mxu0 %v1492
  %2012 = vmatpush.bf16.msra.mxu0 %v1491
  %2013 = vmatpush.bf16.msra.mxu0 %v1490
  %2014 = vmatmul.bf16.gmra.mxu0 %v520
  %v2015 = vpop.f32.mrf.mxu0
  %v2016 = vadd.f32 %v2002, %v2015
  %v2017 = vpop.f32.mrf.mxu0
  %v2018 = vadd.f32 %v2004, %v2017
  %2019 = vdwg.mxu0
  %2020 = vmatpush.bf16.msra.mxu0 %v1505
  %2021 = vmatpush.bf16.msra.mxu0 %v1504
  %2022 = vmatpush.bf16.msra.mxu0 %v1503
  %2023 = vmatpush.bf16.msra.mxu0 %v1502
  %2024 = vmatpush.bf16.msra.mxu0 %v1501
  %2025 = vmatpush.bf16.msra.mxu0 %v1500
  %2026 = vmatpush.bf16.msra.mxu0 %v1499
  %2027 = vmatpush.bf16.msra.mxu0 %v1498
  %2028 = vmatmul.bf16.gmra.mxu0 %v521
  %v2029 = vpop.f32.mrf.mxu0
  %v2030 = vadd.f32 %v2016, %v2029
  %v2031 = vpop.f32.mrf.mxu0
  %v2032 = vadd.f32 %v2018, %v2031
  %2033 = vdwg.mxu0
  %2034 = vst [vmem:[%s3] sm:$0xff] %v2030
  %2035 = vst [vmem:[%s3 + $0x8] sm:$0xff] %v2032
  // Predicated region
  $region14: #{grad_encoder_forward.1} parent=0 // pred_check
    _
  $region15: #{grad_encoder_forward.1} parent=0 // pred_check_branch
    %2037 = sbr.rel (0) target = $region17
  $region16: #{grad_encoder_forward.1} parent=0 // pred_region
    _
  $region17: #{grad_encoder_forward.1} parent=0 // pred_fallthru
    _
  // Predicated region
  $region18: #{grad_encoder_forward.1} parent=0 // pred_check
    _
  $region19: #{grad_encoder_forward.1} parent=0 // pred_check_branch
    %2039 = sbr.rel (0) target = $region21
  $region20: #{grad_encoder_forward.1} parent=0 // pred_region
    _
  $region21: #{grad_encoder_forward.1} parent=0 // pred_fallthru
    _

</llo_original>
